<compile_context>
chip_gen: v5e
topology: v5e:2x2
jax: 0.10.0
libtpu: 0.0.40
codegen_flags: <defaults>
</compile_context>

<pallas_src>
import functools

import jax
import jax.numpy as jnp
from jax import lax
from jax.experimental import pallas as pl
from jax.experimental.pallas import tpu as pltpu

_LANE = 128
_SUBLANE = 8


def _fd_stencil_kernel(w_ref, x_ref, o_ref, *, ksize, cin, cout, cout_blk,
                       th, w_out, mode, use_roll):
    # w_ref : SMEM (cout*cin*k*k,) f32  effective weights, pre-scaled by 1/grid_width
    # x_ref : VMEM (1, cin, 1, th+2p, W_in) f32 ; W_in = w_out (roll path) or
    #         w_out + 2p (column-halo fallback)
    # o_ref : VMEM (1, cout, th, w_out) f32
    p = ksize // 2

    # Hoisted boundary-column masks (only the roll path needs them).
    col_eq = None
    if use_roll and mode != "wrap":
        col = lax.broadcasted_iota(jnp.int32, (th, w_out), 1)
        fix_cols = list(range(p)) + list(range(w_out - p, w_out))
        col_eq = {j: (col == j) for j in fix_cols}

    def col_shifts(rows):
        """rows: (th, w_out).  Returns {dj: slab} with slab[:, j] = padded_rows[:, j+dj]."""
        cache = {0: rows}

        def rolled(off):
            # np.roll semantics: roll(x, s)[..., j] == x[..., (j - s) % n]
            if off not in cache:
                cache[off] = pltpu.roll(rows, (-off) % w_out, axis=1)
            return cache[off]

        shifts = {}
        for dj in range(-p, p + 1):
            slab = rolled(dj)
            if dj != 0 and mode != "wrap":
                bad = ([w_out - 1 - b for b in range(dj)] if dj > 0
                       else list(range(-dj)))
                for j in bad:                       # wrapped column -> fix it
                    jj = j + dj                     # out-of-range source column
                    if mode == "zeros":
                        fix = jnp.zeros_like(rows)
                    else:
                        if mode == "reflect":
                            src = -jj if jj < 0 else 2 * (w_out - 1) - jj
                        else:                       # "edge" (replicate)
                            src = 0 if jj < 0 else w_out - 1
                        fix = rolled(src - j)
                    slab = jnp.where(col_eq[j], fix, slab)
            shifts[dj] = slab
        return shifts

    n_blocks = -(-cout // cout_blk)
    for cb in range(n_blocks):                      # Cout blocking: few live accs
        co0 = cb * cout_blk
        n_co = min(cout_blk, cout - co0)
        accs = [None] * n_co
        for ci in range(cin):
            for ki in range(ksize):
                if use_roll:
                    rows = x_ref[0, ci, 0, ki:ki + th, :]   # (th, W) lane-aligned
                    shifts = col_shifts(rows)                # XLU rolls, ~free
                for kj in range(ksize):
                    if use_roll:
                        patch = shifts[kj - p]
                    else:
                        patch = x_ref[0, ci, 0, ki:ki + th, kj:kj + w_out]
                    for c in range(n_co):
                        co = co0 + c
                        widx = ((co * cin + ci) * ksize + ki) * ksize + kj
                        term = w_ref[widx] * patch           # vector-scalar mul
                        accs[c] = term if accs[c] is None else accs[c] + term
        for c in range(n_co):
            o_ref[0, co0 + c] = accs[c].astype(o_ref.dtype)


def _choose_row_tile(N, H, W, Cin, Cout, p, cout_blk, K,
                     vmem_budget_bytes=10 * 1024 * 1024, vreg_budget=24):
    """Row-tile height TH: multiple of 8 dividing H (or H itself), capped by a
    conservative VMEM budget AND by the vreg working set
        (cout_blk + K) * ceil(TH/8) * ceil(W/128) <= vreg_budget
    so the VALU-bound inner loop never spills.  If N == 1, prefer nT >= 2 so
    both v7x TensorCores get work."""
    lanes = -(-W // _LANE)
    w_in = W if W % _LANE == 0 else W + 2 * p
    groups_cap = max(1, vreg_budget // ((cout_blk + K) * lanes))
    th_vreg_cap = groups_cap * _SUBLANE

    candidates = sorted({d for d in range(_SUBLANE, H + 1, _SUBLANE)
                         if H % d == 0} | {H})

    def fits_vmem(th):
        blk = 4 * (Cin * (th + 2 * p) * w_in + Cout * th * W)
        return 2 * blk <= vmem_budget_bytes        # x2: double-buffered blocks

    vmem_ok = [th for th in candidates if fits_vmem(th)]
    if not vmem_ok:
        # TODO(synk): add column tiling for extreme Cin*W; out of scope here.
        raise ValueError("no row tile fits the conservative VMEM budget; "
                         "image too wide for row-only tiling")
    ok = [th for th in vmem_ok if th <= th_vreg_cap] or [vmem_ok[0]]
    if N == 1:                                      # keep both TCs busy on v7x
        split = [th for th in ok if th < H]
        if split:
            ok = split
    return max(ok)


def finite_difference_conv(x_nchw, weight, grid_width, *, kernel_size=3,
                           padding="reflect", row_tile=None, cout_block=4):
    """Pallas implementation of FiniteDifferenceConvolution.forward (n_dim=2, groups=1).

    x_nchw : (N, Cin, H, W) float32
    weight : (Cout, Cin, k, k) float32  (the nn.Conv2d weight)
    grid_width : scalar
    returns (N, Cout, H, W) float32
    """
    N, Cin, H, W = x_nchw.shape
    Cout = weight.shape[0]
    K = kernel_size
    if K % 2 == 0:
        raise ValueError("only odd kernel_size supported")
    if weight.shape != (Cout, Cin, K, K):
        raise ValueError("groups != 1 not supported")  # TODO(synk): grouped conv
    p = K // 2

    mode = {"reflect": "reflect", "replicate": "edge",
            "periodic": "wrap", "zeros": "zeros"}.get(padding)
    if mode is None:
        raise ValueError(padding)

    # Fold the 1x1 "conv_sum" subtraction into the centre tap (exact) and
    # pre-scale by 1/grid_width -> one stencil, no extra passes in the kernel.
    w_sum = jnp.sum(weight, axis=(2, 3))                       # (Cout, Cin)
    w_eff = weight.at[:, :, p, p].add(-w_sum)
    w_eff = w_eff.astype(jnp.float32) / jnp.asarray(grid_width, jnp.float32)
    w_flat = w_eff.reshape(-1)     # index = ((co*Cin + ci)*K + ki)*K + kj

    # Lane-dense fast path: keep the strip lane width exactly W and shift
    # columns in-kernel with pltpu.roll.  Fallback: explicit column halo.
    use_roll = (W % _LANE == 0)

    lanes = -(-W // _LANE)
    cout_blk = max(1, min(Cout, cout_block))
    while cout_blk > 1 and (cout_blk + K) * lanes > 24:        # very wide W
        cout_blk -= 1

    TH = (_choose_row_tile(N, H, W, Cin, Cout, p, cout_blk, K)
          if row_tile is None else row_tile)
    if H % TH or not (TH % _SUBLANE == 0 or TH == H):
        raise ValueError("row_tile must divide H and be a multiple of 8 (or == H)")
    nT = H // TH
    THp = TH + 2 * p

    np_mode = {"reflect": "reflect", "edge": "edge", "wrap": "wrap",
               "zeros": "constant"}[mode]
    x_src = x_nchw if use_roll else jnp.pad(
        x_nchw, ((0, 0), (0, 0), (0, 0), (p, p)), mode=np_mode)
    W_in = W if use_roll else W + 2 * p

    # Row-halo strips via one gather: reflected/clamped/wrapped row indices
    # encode the padding; layout (N, Cin, nT, THp, W_in) -> no transposes.
    if mode == "zeros":
        x_src = jnp.pad(x_src, ((0, 0), (0, 0), (p, p), (0, 0)))
        def rmap(i):
            return i + p
    else:
        def rmap(i):
            if i < 0:
                return {"reflect": -i, "edge": 0, "wrap": i % H}[mode]
            if i >= H:
                return {"reflect": 2 * (H - 1) - i, "edge": H - 1,
                        "wrap": i % H}[mode]
            return i
    row_idx = jnp.asarray([rmap(t * TH - p + r)
                           for t in range(nT) for r in range(THp)], jnp.int32)
    x_strips = jnp.take(x_src, row_idx, axis=2).reshape(N, Cin, nT, THp, W_in)

    kernel = functools.partial(
        _fd_stencil_kernel, ksize=K, cin=Cin, cout=Cout, cout_blk=cout_blk,
        th=TH, w_out=W, mode=mode, use_roll=use_roll)

    out = pl.pallas_call(
        kernel,
        out_shape=jax.ShapeDtypeStruct((N, Cout, H, W), jnp.float32),
        grid=(N, nT),
        in_specs=[
            pl.BlockSpec(memory_space=pltpu.MemorySpace.SMEM),            # weights
            pl.BlockSpec((1, Cin, 1, THp, W_in), lambda n, t: (n, 0, t, 0, 0)),
        ],
        out_specs=pl.BlockSpec((1, Cout, TH, W), lambda n, t: (n, 0, t, 0)),
        compiler_params=pltpu.CompilerParams(
            dimension_semantics=("parallel", "parallel")),
    )(w_flat, x_strips)

    return out


def _reference(x_nchw, weight, grid_width):
    """Pure-JAX replica of the PyTorch forward (two convs), reflect padding."""
    k = weight.shape[-1]
    p = k // 2
    x_pad = jnp.pad(x_nchw, ((0, 0), (0, 0), (p, p), (p, p)), mode="reflect")
    dn = lax.conv_dimension_numbers(x_pad.shape, weight.shape,
                                    ("NCHW", "OIHW", "NCHW"))
    conv = lax.conv_general_dilated(x_pad, weight, (1, 1), "VALID",
                                    dimension_numbers=dn)
    w_sum = jnp.sum(weight, axis=(2, 3), keepdims=True)
    conv_sum = lax.conv_general_dilated(x_nchw, w_sum, (1, 1), "VALID",
                                        dimension_numbers=dn)
    return (conv - conv_sum) / grid_width


if __name__ == "__main__":
    key = jax.random.PRNGKey(0)
    kx, kw, kx2 = jax.random.split(key, 3)

    N, Cin, Cout, H, K = 2, 4, 8, 16, 3
    grid_width = 0.25
    weight = jax.random.normal(kw, (Cout, Cin, K, K), jnp.float32) * 0.1

    # 1) Lane-dense fast path (W multiple of 128): pltpu.roll column shifts.
    W = 128
    x = jax.random.normal(kx, (N, Cin, H, W), jnp.float32)
    ref = _reference(x, weight, grid_width)
    out = finite_difference_conv(x, weight, grid_width, kernel_size=K,
                                 padding="reflect")
    out = jax.block_until_ready(out)
    assert out.shape == (N, Cout, H, W)
    assert jnp.allclose(out, ref, atol=2e-4, rtol=2e-4), (
        float(jnp.max(jnp.abs(out - ref))))

    # 2) Multi-strip row-halo path (explicit row tiling).
    out_t = finite_difference_conv(x, weight, grid_width, kernel_size=K,
                                   padding="reflect", row_tile=8)
    out_t = jax.block_until_ready(out_t)
    assert jnp.allclose(out_t, ref, atol=2e-4, rtol=2e-4), (
        float(jnp.max(jnp.abs(out_t - ref))))

    # 3) Narrow-W fallback path (column halo, W not a multiple of 128).
    Wn = 16
    xn = jax.random.normal(kx2, (N, Cin, H, Wn), jnp.float32)
    refn = _reference(xn, weight, grid_width)
    outn = finite_difference_conv(xn, weight, grid_width, kernel_size=K,
                                  padding="reflect")
    outn = jax.block_until_ready(outn)
    assert jnp.allclose(outn, refn, atol=2e-4, rtol=2e-4), (
        float(jnp.max(jnp.abs(outn - refn))))

    print("KERNEL_OK")
</pallas_src>

<mosaic_0001>
module attributes {stable_mosaic.version = 11 : i64} {
  func.func @_fd_stencil_kernel(%arg0: i32, %arg1: i32, %arg2: memref<288xf32, #tpu.memory_space<smem>>, %arg3: memref<1x4x1x18x128xf32, #tpu.memory_space<vmem>>, %arg4: memref<1x8x16x128xf32, #tpu.memory_space<vmem>>) attributes {dimension_semantics = [#tpu.dimension_semantics<parallel>, #tpu.dimension_semantics<parallel>], iteration_bounds = array<i64: 2, 1>, scalar_prefetch = 0 : i64, scratch_operands = 0 : i64, tpu.core_type = #tpu.core_type<tc>, window_params = [{transform_indices = @transform_0, window_bounds = array<i64: 288>}, {transform_indices = @transform_1, window_bounds = array<i64: 1, 4, 1, 18, 128>}, {transform_indices = @transform_2, window_bounds = array<i64: 1, 8, 16, 128>}]} {
    %0 = tpu.iota {dimensions = array<i32: 1>} : vector<16x128xi32>
    %c0_i32 = arith.constant 0 : i32
    %1 = vector.broadcast %c0_i32 : i32 to vector<16x128xi32>
    %2 = arith.cmpi eq, %0, %1 : vector<16x128xi32>
    %c127_i32 = arith.constant 127 : i32
    %3 = vector.broadcast %c127_i32 : i32 to vector<16x128xi32>
    %4 = arith.cmpi eq, %0, %3 : vector<16x128xi32>
    %c0 = arith.constant 0 : index
    %c0_0 = arith.constant 0 : index
    %c0_1 = arith.constant 0 : index
    %c0_2 = arith.constant 0 : index
    %c0_3 = arith.constant 0 : index
    %5 = vector.load %arg3[%c0, %c0_0, %c0_1, %c0_2, %c0_3] : memref<1x4x1x18x128xf32, #tpu.memory_space<vmem>>, vector<1x1x1x16x128xf32>
    %6 = vector.shape_cast %5 : vector<1x1x1x16x128xf32> to vector<16x128xf32>
    %c1_i32 = arith.constant 1 : i32
    %7 = tpu.dynamic_rotate %6 by %c1_i32 dim 1 : vector<16x128xf32>, i32 -> vector<16x128xf32>
    %c127_i32_4 = arith.constant 127 : i32
    %8 = tpu.dynamic_rotate %6 by %c127_i32_4 dim 1 : vector<16x128xf32>, i32 -> vector<16x128xf32>
    %9 = arith.select %2, %8, %7 : vector<16x128xi1>, vector<16x128xf32>
    %10 = arith.select %4, %7, %8 : vector<16x128xi1>, vector<16x128xf32>
    %c0_5 = arith.constant 0 : index
    %11 = memref.load %arg2[%c0_5] : memref<288xf32, #tpu.memory_space<smem>>
    %12 = vector.broadcast %11 : f32 to vector<16x128xf32>
    %13 = arith.mulf %12, %9 : vector<16x128xf32>
    %c36 = arith.constant 36 : index
    %14 = memref.load %arg2[%c36] : memref<288xf32, #tpu.memory_space<smem>>
    %15 = vector.broadcast %14 : f32 to vector<16x128xf32>
    %16 = arith.mulf %15, %9 : vector<16x128xf32>
    %c72 = arith.constant 72 : index
    %17 = memref.load %arg2[%c72] : memref<288xf32, #tpu.memory_space<smem>>
    %18 = vector.broadcast %17 : f32 to vector<16x128xf32>
    %19 = arith.mulf %18, %9 : vector<16x128xf32>
    %c108 = arith.constant 108 : index
    %20 = memref.load %arg2[%c108] : memref<288xf32, #tpu.memory_space<smem>>
    %21 = vector.broadcast %20 : f32 to vector<16x128xf32>
    %22 = arith.mulf %21, %9 : vector<16x128xf32>
    %c1 = arith.constant 1 : index
    %23 = memref.load %arg2[%c1] : memref<288xf32, #tpu.memory_space<smem>>
    %24 = vector.broadcast %23 : f32 to vector<16x128xf32>
    %25 = arith.mulf %24, %6 : vector<16x128xf32>
    %26 = arith.addf %13, %25 : vector<16x128xf32>
    %c37 = arith.constant 37 : index
    %27 = memref.load %arg2[%c37] : memref<288xf32, #tpu.memory_space<smem>>
    %28 = vector.broadcast %27 : f32 to vector<16x128xf32>
    %29 = arith.mulf %28, %6 : vector<16x128xf32>
    %30 = arith.addf %16, %29 : vector<16x128xf32>
    %c73 = arith.constant 73 : index
    %31 = memref.load %arg2[%c73] : memref<288xf32, #tpu.memory_space<smem>>
    %32 = vector.broadcast %31 : f32 to vector<16x128xf32>
    %33 = arith.mulf %32, %6 : vector<16x128xf32>
    %34 = arith.addf %19, %33 : vector<16x128xf32>
    %c109 = arith.constant 109 : index
    %35 = memref.load %arg2[%c109] : memref<288xf32, #tpu.memory_space<smem>>
    %36 = vector.broadcast %35 : f32 to vector<16x128xf32>
    %37 = arith.mulf %36, %6 : vector<16x128xf32>
    %38 = arith.addf %22, %37 : vector<16x128xf32>
    %c2 = arith.constant 2 : index
    %39 = memref.load %arg2[%c2] : memref<288xf32, #tpu.memory_space<smem>>
    %40 = vector.broadcast %39 : f32 to vector<16x128xf32>
    %41 = arith.mulf %40, %10 : vector<16x128xf32>
    %42 = arith.addf %26, %41 : vector<16x128xf32>
    %c38 = arith.constant 38 : index
    %43 = memref.load %arg2[%c38] : memref<288xf32, #tpu.memory_space<smem>>
    %44 = vector.broadcast %43 : f32 to vector<16x128xf32>
    %45 = arith.mulf %44, %10 : vector<16x128xf32>
    %46 = arith.addf %30, %45 : vector<16x128xf32>
    %c74 = arith.constant 74 : index
    %47 = memref.load %arg2[%c74] : memref<288xf32, #tpu.memory_space<smem>>
    %48 = vector.broadcast %47 : f32 to vector<16x128xf32>
    %49 = arith.mulf %48, %10 : vector<16x128xf32>
    %50 = arith.addf %34, %49 : vector<16x128xf32>
    %c110 = arith.constant 110 : index
    %51 = memref.load %arg2[%c110] : memref<288xf32, #tpu.memory_space<smem>>
    %52 = vector.broadcast %51 : f32 to vector<16x128xf32>
    %53 = arith.mulf %52, %10 : vector<16x128xf32>
    %54 = arith.addf %38, %53 : vector<16x128xf32>
    %c0_6 = arith.constant 0 : index
    %c0_7 = arith.constant 0 : index
    %c0_8 = arith.constant 0 : index
    %c1_9 = arith.constant 1 : index
    %c0_10 = arith.constant 0 : index
    %55 = vector.load %arg3[%c0_6, %c0_7, %c0_8, %c1_9, %c0_10] : memref<1x4x1x18x128xf32, #tpu.memory_space<vmem>>, vector<1x1x1x16x128xf32>
    %56 = vector.shape_cast %55 : vector<1x1x1x16x128xf32> to vector<16x128xf32>
    %c1_i32_11 = arith.constant 1 : i32
    %57 = tpu.dynamic_rotate %56 by %c1_i32_11 dim 1 : vector<16x128xf32>, i32 -> vector<16x128xf32>
    %c127_i32_12 = arith.constant 127 : i32
    %58 = tpu.dynamic_rotate %56 by %c127_i32_12 dim 1 : vector<16x128xf32>, i32 -> vector<16x128xf32>
    %59 = arith.select %2, %58, %57 : vector<16x128xi1>, vector<16x128xf32>
    %60 = arith.select %4, %57, %58 : vector<16x128xi1>, vector<16x128xf32>
    %c3 = arith.constant 3 : index
    %61 = memref.load %arg2[%c3] : memref<288xf32, #tpu.memory_space<smem>>
    %62 = vector.broadcast %61 : f32 to vector<16x128xf32>
    %63 = arith.mulf %62, %59 : vector<16x128xf32>
    %64 = arith.addf %42, %63 : vector<16x128xf32>
    %c39 = arith.constant 39 : index
    %65 = memref.load %arg2[%c39] : memref<288xf32, #tpu.memory_space<smem>>
    %66 = vector.broadcast %65 : f32 to vector<16x128xf32>
    %67 = arith.mulf %66, %59 : vector<16x128xf32>
    %68 = arith.addf %46, %67 : vector<16x128xf32>
    %c75 = arith.constant 75 : index
    %69 = memref.load %arg2[%c75] : memref<288xf32, #tpu.memory_space<smem>>
    %70 = vector.broadcast %69 : f32 to vector<16x128xf32>
    %71 = arith.mulf %70, %59 : vector<16x128xf32>
    %72 = arith.addf %50, %71 : vector<16x128xf32>
    %c111 = arith.constant 111 : index
    %73 = memref.load %arg2[%c111] : memref<288xf32, #tpu.memory_space<smem>>
    %74 = vector.broadcast %73 : f32 to vector<16x128xf32>
    %75 = arith.mulf %74, %59 : vector<16x128xf32>
    %76 = arith.addf %54, %75 : vector<16x128xf32>
    %c4 = arith.constant 4 : index
    %77 = memref.load %arg2[%c4] : memref<288xf32, #tpu.memory_space<smem>>
    %78 = vector.broadcast %77 : f32 to vector<16x128xf32>
    %79 = arith.mulf %78, %56 : vector<16x128xf32>
    %80 = arith.addf %64, %79 : vector<16x128xf32>
    %c40 = arith.constant 40 : index
    %81 = memref.load %arg2[%c40] : memref<288xf32, #tpu.memory_space<smem>>
    %82 = vector.broadcast %81 : f32 to vector<16x128xf32>
    %83 = arith.mulf %82, %56 : vector<16x128xf32>
    %84 = arith.addf %68, %83 : vector<16x128xf32>
    %c76 = arith.constant 76 : index
    %85 = memref.load %arg2[%c76] : memref<288xf32, #tpu.memory_space<smem>>
    %86 = vector.broadcast %85 : f32 to vector<16x128xf32>
    %87 = arith.mulf %86, %56 : vector<16x128xf32>
    %88 = arith.addf %72, %87 : vector<16x128xf32>
    %c112 = arith.constant 112 : index
    %89 = memref.load %arg2[%c112] : memref<288xf32, #tpu.memory_space<smem>>
    %90 = vector.broadcast %89 : f32 to vector<16x128xf32>
    %91 = arith.mulf %90, %56 : vector<16x128xf32>
    %92 = arith.addf %76, %91 : vector<16x128xf32>
    %c5 = arith.constant 5 : index
    %93 = memref.load %arg2[%c5] : memref<288xf32, #tpu.memory_space<smem>>
    %94 = vector.broadcast %93 : f32 to vector<16x128xf32>
    %95 = arith.mulf %94, %60 : vector<16x128xf32>
    %96 = arith.addf %80, %95 : vector<16x128xf32>
    %c41 = arith.constant 41 : index
    %97 = memref.load %arg2[%c41] : memref<288xf32, #tpu.memory_space<smem>>
    %98 = vector.broadcast %97 : f32 to vector<16x128xf32>
    %99 = arith.mulf %98, %60 : vector<16x128xf32>
    %100 = arith.addf %84, %99 : vector<16x128xf32>
    %c77 = arith.constant 77 : index
    %101 = memref.load %arg2[%c77] : memref<288xf32, #tpu.memory_space<smem>>
    %102 = vector.broadcast %101 : f32 to vector<16x128xf32>
    %103 = arith.mulf %102, %60 : vector<16x128xf32>
    %104 = arith.addf %88, %103 : vector<16x128xf32>
    %c113 = arith.constant 113 : index
    %105 = memref.load %arg2[%c113] : memref<288xf32, #tpu.memory_space<smem>>
    %106 = vector.broadcast %105 : f32 to vector<16x128xf32>
    %107 = arith.mulf %106, %60 : vector<16x128xf32>
    %108 = arith.addf %92, %107 : vector<16x128xf32>
    %c0_13 = arith.constant 0 : index
    %c0_14 = arith.constant 0 : index
    %c0_15 = arith.constant 0 : index
    %c2_16 = arith.constant 2 : index
    %c0_17 = arith.constant 0 : index
    %109 = vector.load %arg3[%c0_13, %c0_14, %c0_15, %c2_16, %c0_17] : memref<1x4x1x18x128xf32, #tpu.memory_space<vmem>>, vector<1x1x1x16x128xf32>
    %110 = vector.shape_cast %109 : vector<1x1x1x16x128xf32> to vector<16x128xf32>
    %c1_i32_18 = arith.constant 1 : i32
    %111 = tpu.dynamic_rotate %110 by %c1_i32_18 dim 1 : vector<16x128xf32>, i32 -> vector<16x128xf32>
    %c127_i32_19 = arith.constant 127 : i32
    %112 = tpu.dynamic_rotate %110 by %c127_i32_19 dim 1 : vector<16x128xf32>, i32 -> vector<16x128xf32>
    %113 = arith.select %2, %112, %111 : vector<16x128xi1>, vector<16x128xf32>
    %114 = arith.select %4, %111, %112 : vector<16x128xi1>, vector<16x128xf32>
    %c6 = arith.constant 6 : index
    %115 = memref.load %arg2[%c6] : memref<288xf32, #tpu.memory_space<smem>>
    %116 = vector.broadcast %115 : f32 to vector<16x128xf32>
    %117 = arith.mulf %116, %113 : vector<16x128xf32>
    %118 = arith.addf %96, %117 : vector<16x128xf32>
    %c42 = arith.constant 42 : index
    %119 = memref.load %arg2[%c42] : memref<288xf32, #tpu.memory_space<smem>>
    %120 = vector.broadcast %119 : f32 to vector<16x128xf32>
    %121 = arith.mulf %120, %113 : vector<16x128xf32>
    %122 = arith.addf %100, %121 : vector<16x128xf32>
    %c78 = arith.constant 78 : index
    %123 = memref.load %arg2[%c78] : memref<288xf32, #tpu.memory_space<smem>>
    %124 = vector.broadcast %123 : f32 to vector<16x128xf32>
    %125 = arith.mulf %124, %113 : vector<16x128xf32>
    %126 = arith.addf %104, %125 : vector<16x128xf32>
    %c114 = arith.constant 114 : index
    %127 = memref.load %arg2[%c114] : memref<288xf32, #tpu.memory_space<smem>>
    %128 = vector.broadcast %127 : f32 to vector<16x128xf32>
    %129 = arith.mulf %128, %113 : vector<16x128xf32>
    %130 = arith.addf %108, %129 : vector<16x128xf32>
    %c7 = arith.constant 7 : index
    %131 = memref.load %arg2[%c7] : memref<288xf32, #tpu.memory_space<smem>>
    %132 = vector.broadcast %131 : f32 to vector<16x128xf32>
    %133 = arith.mulf %132, %110 : vector<16x128xf32>
    %134 = arith.addf %118, %133 : vector<16x128xf32>
    %c43 = arith.constant 43 : index
    %135 = memref.load %arg2[%c43] : memref<288xf32, #tpu.memory_space<smem>>
    %136 = vector.broadcast %135 : f32 to vector<16x128xf32>
    %137 = arith.mulf %136, %110 : vector<16x128xf32>
    %138 = arith.addf %122, %137 : vector<16x128xf32>
    %c79 = arith.constant 79 : index
    %139 = memref.load %arg2[%c79] : memref<288xf32, #tpu.memory_space<smem>>
    %140 = vector.broadcast %139 : f32 to vector<16x128xf32>
    %141 = arith.mulf %140, %110 : vector<16x128xf32>
    %142 = arith.addf %126, %141 : vector<16x128xf32>
    %c115 = arith.constant 115 : index
    %143 = memref.load %arg2[%c115] : memref<288xf32, #tpu.memory_space<smem>>
    %144 = vector.broadcast %143 : f32 to vector<16x128xf32>
    %145 = arith.mulf %144, %110 : vector<16x128xf32>
    %146 = arith.addf %130, %145 : vector<16x128xf32>
    %c8 = arith.constant 8 : index
    %147 = memref.load %arg2[%c8] : memref<288xf32, #tpu.memory_space<smem>>
    %148 = vector.broadcast %147 : f32 to vector<16x128xf32>
    %149 = arith.mulf %148, %114 : vector<16x128xf32>
    %150 = arith.addf %134, %149 : vector<16x128xf32>
    %c44 = arith.constant 44 : index
    %151 = memref.load %arg2[%c44] : memref<288xf32, #tpu.memory_space<smem>>
    %152 = vector.broadcast %151 : f32 to vector<16x128xf32>
    %153 = arith.mulf %152, %114 : vector<16x128xf32>
    %154 = arith.addf %138, %153 : vector<16x128xf32>
    %c80 = arith.constant 80 : index
    %155 = memref.load %arg2[%c80] : memref<288xf32, #tpu.memory_space<smem>>
    %156 = vector.broadcast %155 : f32 to vector<16x128xf32>
    %157 = arith.mulf %156, %114 : vector<16x128xf32>
    %158 = arith.addf %142, %157 : vector<16x128xf32>
    %c116 = arith.constant 116 : index
    %159 = memref.load %arg2[%c116] : memref<288xf32, #tpu.memory_space<smem>>
    %160 = vector.broadcast %159 : f32 to vector<16x128xf32>
    %161 = arith.mulf %160, %114 : vector<16x128xf32>
    %162 = arith.addf %146, %161 : vector<16x128xf32>
    %c0_20 = arith.constant 0 : index
    %c1_21 = arith.constant 1 : index
    %c0_22 = arith.constant 0 : index
    %c0_23 = arith.constant 0 : index
    %c0_24 = arith.constant 0 : index
    %163 = vector.load %arg3[%c0_20, %c1_21, %c0_22, %c0_23, %c0_24] : memref<1x4x1x18x128xf32, #tpu.memory_space<vmem>>, vector<1x1x1x16x128xf32>
    %164 = vector.shape_cast %163 : vector<1x1x1x16x128xf32> to vector<16x128xf32>
    %c1_i32_25 = arith.constant 1 : i32
    %165 = tpu.dynamic_rotate %164 by %c1_i32_25 dim 1 : vector<16x128xf32>, i32 -> vector<16x128xf32>
    %c127_i32_26 = arith.constant 127 : i32
    %166 = tpu.dynamic_rotate %164 by %c127_i32_26 dim 1 : vector<16x128xf32>, i32 -> vector<16x128xf32>
    %167 = arith.select %2, %166, %165 : vector<16x128xi1>, vector<16x128xf32>
    %168 = arith.select %4, %165, %166 : vector<16x128xi1>, vector<16x128xf32>
    %c9 = arith.constant 9 : index
    %169 = memref.load %arg2[%c9] : memref<288xf32, #tpu.memory_space<smem>>
    %170 = vector.broadcast %169 : f32 to vector<16x128xf32>
    %171 = arith.mulf %170, %167 : vector<16x128xf32>
    %172 = arith.addf %150, %171 : vector<16x128xf32>
    %c45 = arith.constant 45 : index
    %173 = memref.load %arg2[%c45] : memref<288xf32, #tpu.memory_space<smem>>
    %174 = vector.broadcast %173 : f32 to vector<16x128xf32>
    %175 = arith.mulf %174, %167 : vector<16x128xf32>
    %176 = arith.addf %154, %175 : vector<16x128xf32>
    %c81 = arith.constant 81 : index
    %177 = memref.load %arg2[%c81] : memref<288xf32, #tpu.memory_space<smem>>
    %178 = vector.broadcast %177 : f32 to vector<16x128xf32>
    %179 = arith.mulf %178, %167 : vector<16x128xf32>
    %180 = arith.addf %158, %179 : vector<16x128xf32>
    %c117 = arith.constant 117 : index
    %181 = memref.load %arg2[%c117] : memref<288xf32, #tpu.memory_space<smem>>
    %182 = vector.broadcast %181 : f32 to vector<16x128xf32>
    %183 = arith.mulf %182, %167 : vector<16x128xf32>
    %184 = arith.addf %162, %183 : vector<16x128xf32>
    %c10 = arith.constant 10 : index
    %185 = memref.load %arg2[%c10] : memref<288xf32, #tpu.memory_space<smem>>
    %186 = vector.broadcast %185 : f32 to vector<16x128xf32>
    %187 = arith.mulf %186, %164 : vector<16x128xf32>
    %188 = arith.addf %172, %187 : vector<16x128xf32>
    %c46 = arith.constant 46 : index
    %189 = memref.load %arg2[%c46] : memref<288xf32, #tpu.memory_space<smem>>
    %190 = vector.broadcast %189 : f32 to vector<16x128xf32>
    %191 = arith.mulf %190, %164 : vector<16x128xf32>
    %192 = arith.addf %176, %191 : vector<16x128xf32>
    %c82 = arith.constant 82 : index
    %193 = memref.load %arg2[%c82] : memref<288xf32, #tpu.memory_space<smem>>
    %194 = vector.broadcast %193 : f32 to vector<16x128xf32>
    %195 = arith.mulf %194, %164 : vector<16x128xf32>
    %196 = arith.addf %180, %195 : vector<16x128xf32>
    %c118 = arith.constant 118 : index
    %197 = memref.load %arg2[%c118] : memref<288xf32, #tpu.memory_space<smem>>
    %198 = vector.broadcast %197 : f32 to vector<16x128xf32>
    %199 = arith.mulf %198, %164 : vector<16x128xf32>
    %200 = arith.addf %184, %199 : vector<16x128xf32>
    %c11 = arith.constant 11 : index
    %201 = memref.load %arg2[%c11] : memref<288xf32, #tpu.memory_space<smem>>
    %202 = vector.broadcast %201 : f32 to vector<16x128xf32>
    %203 = arith.mulf %202, %168 : vector<16x128xf32>
    %204 = arith.addf %188, %203 : vector<16x128xf32>
    %c47 = arith.constant 47 : index
    %205 = memref.load %arg2[%c47] : memref<288xf32, #tpu.memory_space<smem>>
    %206 = vector.broadcast %205 : f32 to vector<16x128xf32>
    %207 = arith.mulf %206, %168 : vector<16x128xf32>
    %208 = arith.addf %192, %207 : vector<16x128xf32>
    %c83 = arith.constant 83 : index
    %209 = memref.load %arg2[%c83] : memref<288xf32, #tpu.memory_space<smem>>
    %210 = vector.broadcast %209 : f32 to vector<16x128xf32>
    %211 = arith.mulf %210, %168 : vector<16x128xf32>
    %212 = arith.addf %196, %211 : vector<16x128xf32>
    %c119 = arith.constant 119 : index
    %213 = memref.load %arg2[%c119] : memref<288xf32, #tpu.memory_space<smem>>
    %214 = vector.broadcast %213 : f32 to vector<16x128xf32>
    %215 = arith.mulf %214, %168 : vector<16x128xf32>
    %216 = arith.addf %200, %215 : vector<16x128xf32>
    %c0_27 = arith.constant 0 : index
    %c1_28 = arith.constant 1 : index
    %c0_29 = arith.constant 0 : index
    %c1_30 = arith.constant 1 : index
    %c0_31 = arith.constant 0 : index
    %217 = vector.load %arg3[%c0_27, %c1_28, %c0_29, %c1_30, %c0_31] : memref<1x4x1x18x128xf32, #tpu.memory_space<vmem>>, vector<1x1x1x16x128xf32>
    %218 = vector.shape_cast %217 : vector<1x1x1x16x128xf32> to vector<16x128xf32>
    %c1_i32_32 = arith.constant 1 : i32
    %219 = tpu.dynamic_rotate %218 by %c1_i32_32 dim 1 : vector<16x128xf32>, i32 -> vector<16x128xf32>
    %c127_i32_33 = arith.constant 127 : i32
    %220 = tpu.dynamic_rotate %218 by %c127_i32_33 dim 1 : vector<16x128xf32>, i32 -> vector<16x128xf32>
    %221 = arith.select %2, %220, %219 : vector<16x128xi1>, vector<16x128xf32>
    %222 = arith.select %4, %219, %220 : vector<16x128xi1>, vector<16x128xf32>
    %c12 = arith.constant 12 : index
    %223 = memref.load %arg2[%c12] : memref<288xf32, #tpu.memory_space<smem>>
    %224 = vector.broadcast %223 : f32 to vector<16x128xf32>
    %225 = arith.mulf %224, %221 : vector<16x128xf32>
    %226 = arith.addf %204, %225 : vector<16x128xf32>
    %c48 = arith.constant 48 : index
    %227 = memref.load %arg2[%c48] : memref<288xf32, #tpu.memory_space<smem>>
    %228 = vector.broadcast %227 : f32 to vector<16x128xf32>
    %229 = arith.mulf %228, %221 : vector<16x128xf32>
    %230 = arith.addf %208, %229 : vector<16x128xf32>
    %c84 = arith.constant 84 : index
    %231 = memref.load %arg2[%c84] : memref<288xf32, #tpu.memory_space<smem>>
    %232 = vector.broadcast %231 : f32 to vector<16x128xf32>
    %233 = arith.mulf %232, %221 : vector<16x128xf32>
    %234 = arith.addf %212, %233 : vector<16x128xf32>
    %c120 = arith.constant 120 : index
    %235 = memref.load %arg2[%c120] : memref<288xf32, #tpu.memory_space<smem>>
    %236 = vector.broadcast %235 : f32 to vector<16x128xf32>
    %237 = arith.mulf %236, %221 : vector<16x128xf32>
    %238 = arith.addf %216, %237 : vector<16x128xf32>
    %c13 = arith.constant 13 : index
    %239 = memref.load %arg2[%c13] : memref<288xf32, #tpu.memory_space<smem>>
    %240 = vector.broadcast %239 : f32 to vector<16x128xf32>
    %241 = arith.mulf %240, %218 : vector<16x128xf32>
    %242 = arith.addf %226, %241 : vector<16x128xf32>
    %c49 = arith.constant 49 : index
    %243 = memref.load %arg2[%c49] : memref<288xf32, #tpu.memory_space<smem>>
    %244 = vector.broadcast %243 : f32 to vector<16x128xf32>
    %245 = arith.mulf %244, %218 : vector<16x128xf32>
    %246 = arith.addf %230, %245 : vector<16x128xf32>
    %c85 = arith.constant 85 : index
    %247 = memref.load %arg2[%c85] : memref<288xf32, #tpu.memory_space<smem>>
    %248 = vector.broadcast %247 : f32 to vector<16x128xf32>
    %249 = arith.mulf %248, %218 : vector<16x128xf32>
    %250 = arith.addf %234, %249 : vector<16x128xf32>
    %c121 = arith.constant 121 : index
    %251 = memref.load %arg2[%c121] : memref<288xf32, #tpu.memory_space<smem>>
    %252 = vector.broadcast %251 : f32 to vector<16x128xf32>
    %253 = arith.mulf %252, %218 : vector<16x128xf32>
    %254 = arith.addf %238, %253 : vector<16x128xf32>
    %c14 = arith.constant 14 : index
    %255 = memref.load %arg2[%c14] : memref<288xf32, #tpu.memory_space<smem>>
    %256 = vector.broadcast %255 : f32 to vector<16x128xf32>
    %257 = arith.mulf %256, %222 : vector<16x128xf32>
    %258 = arith.addf %242, %257 : vector<16x128xf32>
    %c50 = arith.constant 50 : index
    %259 = memref.load %arg2[%c50] : memref<288xf32, #tpu.memory_space<smem>>
    %260 = vector.broadcast %259 : f32 to vector<16x128xf32>
    %261 = arith.mulf %260, %222 : vector<16x128xf32>
    %262 = arith.addf %246, %261 : vector<16x128xf32>
    %c86 = arith.constant 86 : index
    %263 = memref.load %arg2[%c86] : memref<288xf32, #tpu.memory_space<smem>>
    %264 = vector.broadcast %263 : f32 to vector<16x128xf32>
    %265 = arith.mulf %264, %222 : vector<16x128xf32>
    %266 = arith.addf %250, %265 : vector<16x128xf32>
    %c122 = arith.constant 122 : index
    %267 = memref.load %arg2[%c122] : memref<288xf32, #tpu.memory_space<smem>>
    %268 = vector.broadcast %267 : f32 to vector<16x128xf32>
    %269 = arith.mulf %268, %222 : vector<16x128xf32>
    %270 = arith.addf %254, %269 : vector<16x128xf32>
    %c0_34 = arith.constant 0 : index
    %c1_35 = arith.constant 1 : index
    %c0_36 = arith.constant 0 : index
    %c2_37 = arith.constant 2 : index
    %c0_38 = arith.constant 0 : index
    %271 = vector.load %arg3[%c0_34, %c1_35, %c0_36, %c2_37, %c0_38] : memref<1x4x1x18x128xf32, #tpu.memory_space<vmem>>, vector<1x1x1x16x128xf32>
    %272 = vector.shape_cast %271 : vector<1x1x1x16x128xf32> to vector<16x128xf32>
    %c1_i32_39 = arith.constant 1 : i32
    %273 = tpu.dynamic_rotate %272 by %c1_i32_39 dim 1 : vector<16x128xf32>, i32 -> vector<16x128xf32>
    %c127_i32_40 = arith.constant 127 : i32
    %274 = tpu.dynamic_rotate %272 by %c127_i32_40 dim 1 : vector<16x128xf32>, i32 -> vector<16x128xf32>
    %275 = arith.select %2, %274, %273 : vector<16x128xi1>, vector<16x128xf32>
    %276 = arith.select %4, %273, %274 : vector<16x128xi1>, vector<16x128xf32>
    %c15 = arith.constant 15 : index
    %277 = memref.load %arg2[%c15] : memref<288xf32, #tpu.memory_space<smem>>
    %278 = vector.broadcast %277 : f32 to vector<16x128xf32>
    %279 = arith.mulf %278, %275 : vector<16x128xf32>
    %280 = arith.addf %258, %279 : vector<16x128xf32>
    %c51 = arith.constant 51 : index
    %281 = memref.load %arg2[%c51] : memref<288xf32, #tpu.memory_space<smem>>
    %282 = vector.broadcast %281 : f32 to vector<16x128xf32>
    %283 = arith.mulf %282, %275 : vector<16x128xf32>
    %284 = arith.addf %262, %283 : vector<16x128xf32>
    %c87 = arith.constant 87 : index
    %285 = memref.load %arg2[%c87] : memref<288xf32, #tpu.memory_space<smem>>
    %286 = vector.broadcast %285 : f32 to vector<16x128xf32>
    %287 = arith.mulf %286, %275 : vector<16x128xf32>
    %288 = arith.addf %266, %287 : vector<16x128xf32>
    %c123 = arith.constant 123 : index
    %289 = memref.load %arg2[%c123] : memref<288xf32, #tpu.memory_space<smem>>
    %290 = vector.broadcast %289 : f32 to vector<16x128xf32>
    %291 = arith.mulf %290, %275 : vector<16x128xf32>
    %292 = arith.addf %270, %291 : vector<16x128xf32>
    %c16 = arith.constant 16 : index
    %293 = memref.load %arg2[%c16] : memref<288xf32, #tpu.memory_space<smem>>
    %294 = vector.broadcast %293 : f32 to vector<16x128xf32>
    %295 = arith.mulf %294, %272 : vector<16x128xf32>
    %296 = arith.addf %280, %295 : vector<16x128xf32>
    %c52 = arith.constant 52 : index
    %297 = memref.load %arg2[%c52] : memref<288xf32, #tpu.memory_space<smem>>
    %298 = vector.broadcast %297 : f32 to vector<16x128xf32>
    %299 = arith.mulf %298, %272 : vector<16x128xf32>
    %300 = arith.addf %284, %299 : vector<16x128xf32>
    %c88 = arith.constant 88 : index
    %301 = memref.load %arg2[%c88] : memref<288xf32, #tpu.memory_space<smem>>
    %302 = vector.broadcast %301 : f32 to vector<16x128xf32>
    %303 = arith.mulf %302, %272 : vector<16x128xf32>
    %304 = arith.addf %288, %303 : vector<16x128xf32>
    %c124 = arith.constant 124 : index
    %305 = memref.load %arg2[%c124] : memref<288xf32, #tpu.memory_space<smem>>
    %306 = vector.broadcast %305 : f32 to vector<16x128xf32>
    %307 = arith.mulf %306, %272 : vector<16x128xf32>
    %308 = arith.addf %292, %307 : vector<16x128xf32>
    %c17 = arith.constant 17 : index
    %309 = memref.load %arg2[%c17] : memref<288xf32, #tpu.memory_space<smem>>
    %310 = vector.broadcast %309 : f32 to vector<16x128xf32>
    %311 = arith.mulf %310, %276 : vector<16x128xf32>
    %312 = arith.addf %296, %311 : vector<16x128xf32>
    %c53 = arith.constant 53 : index
    %313 = memref.load %arg2[%c53] : memref<288xf32, #tpu.memory_space<smem>>
    %314 = vector.broadcast %313 : f32 to vector<16x128xf32>
    %315 = arith.mulf %314, %276 : vector<16x128xf32>
    %316 = arith.addf %300, %315 : vector<16x128xf32>
    %c89 = arith.constant 89 : index
    %317 = memref.load %arg2[%c89] : memref<288xf32, #tpu.memory_space<smem>>
    %318 = vector.broadcast %317 : f32 to vector<16x128xf32>
    %319 = arith.mulf %318, %276 : vector<16x128xf32>
    %320 = arith.addf %304, %319 : vector<16x128xf32>
    %c125 = arith.constant 125 : index
    %321 = memref.load %arg2[%c125] : memref<288xf32, #tpu.memory_space<smem>>
    %322 = vector.broadcast %321 : f32 to vector<16x128xf32>
    %323 = arith.mulf %322, %276 : vector<16x128xf32>
    %324 = arith.addf %308, %323 : vector<16x128xf32>
    %c0_41 = arith.constant 0 : index
    %c2_42 = arith.constant 2 : index
    %c0_43 = arith.constant 0 : index
    %c0_44 = arith.constant 0 : index
    %c0_45 = arith.constant 0 : index
    %325 = vector.load %arg3[%c0_41, %c2_42, %c0_43, %c0_44, %c0_45] : memref<1x4x1x18x128xf32, #tpu.memory_space<vmem>>, vector<1x1x1x16x128xf32>
    %326 = vector.shape_cast %325 : vector<1x1x1x16x128xf32> to vector<16x128xf32>
    %c1_i32_46 = arith.constant 1 : i32
    %327 = tpu.dynamic_rotate %326 by %c1_i32_46 dim 1 : vector<16x128xf32>, i32 -> vector<16x128xf32>
    %c127_i32_47 = arith.constant 127 : i32
    %328 = tpu.dynamic_rotate %326 by %c127_i32_47 dim 1 : vector<16x128xf32>, i32 -> vector<16x128xf32>
    %329 = arith.select %2, %328, %327 : vector<16x128xi1>, vector<16x128xf32>
    %330 = arith.select %4, %327, %328 : vector<16x128xi1>, vector<16x128xf32>
    %c18 = arith.constant 18 : index
    %331 = memref.load %arg2[%c18] : memref<288xf32, #tpu.memory_space<smem>>
    %332 = vector.broadcast %331 : f32 to vector<16x128xf32>
    %333 = arith.mulf %332, %329 : vector<16x128xf32>
    %334 = arith.addf %312, %333 : vector<16x128xf32>
    %c54 = arith.constant 54 : index
    %335 = memref.load %arg2[%c54] : memref<288xf32, #tpu.memory_space<smem>>
    %336 = vector.broadcast %335 : f32 to vector<16x128xf32>
    %337 = arith.mulf %336, %329 : vector<16x128xf32>
    %338 = arith.addf %316, %337 : vector<16x128xf32>
    %c90 = arith.constant 90 : index
    %339 = memref.load %arg2[%c90] : memref<288xf32, #tpu.memory_space<smem>>
    %340 = vector.broadcast %339 : f32 to vector<16x128xf32>
    %341 = arith.mulf %340, %329 : vector<16x128xf32>
    %342 = arith.addf %320, %341 : vector<16x128xf32>
    %c126 = arith.constant 126 : index
    %343 = memref.load %arg2[%c126] : memref<288xf32, #tpu.memory_space<smem>>
    %344 = vector.broadcast %343 : f32 to vector<16x128xf32>
    %345 = arith.mulf %344, %329 : vector<16x128xf32>
    %346 = arith.addf %324, %345 : vector<16x128xf32>
    %c19 = arith.constant 19 : index
    %347 = memref.load %arg2[%c19] : memref<288xf32, #tpu.memory_space<smem>>
    %348 = vector.broadcast %347 : f32 to vector<16x128xf32>
    %349 = arith.mulf %348, %326 : vector<16x128xf32>
    %350 = arith.addf %334, %349 : vector<16x128xf32>
    %c55 = arith.constant 55 : index
    %351 = memref.load %arg2[%c55] : memref<288xf32, #tpu.memory_space<smem>>
    %352 = vector.broadcast %351 : f32 to vector<16x128xf32>
    %353 = arith.mulf %352, %326 : vector<16x128xf32>
    %354 = arith.addf %338, %353 : vector<16x128xf32>
    %c91 = arith.constant 91 : index
    %355 = memref.load %arg2[%c91] : memref<288xf32, #tpu.memory_space<smem>>
    %356 = vector.broadcast %355 : f32 to vector<16x128xf32>
    %357 = arith.mulf %356, %326 : vector<16x128xf32>
    %358 = arith.addf %342, %357 : vector<16x128xf32>
    %c127 = arith.constant 127 : index
    %359 = memref.load %arg2[%c127] : memref<288xf32, #tpu.memory_space<smem>>
    %360 = vector.broadcast %359 : f32 to vector<16x128xf32>
    %361 = arith.mulf %360, %326 : vector<16x128xf32>
    %362 = arith.addf %346, %361 : vector<16x128xf32>
    %c20 = arith.constant 20 : index
    %363 = memref.load %arg2[%c20] : memref<288xf32, #tpu.memory_space<smem>>
    %364 = vector.broadcast %363 : f32 to vector<16x128xf32>
    %365 = arith.mulf %364, %330 : vector<16x128xf32>
    %366 = arith.addf %350, %365 : vector<16x128xf32>
    %c56 = arith.constant 56 : index
    %367 = memref.load %arg2[%c56] : memref<288xf32, #tpu.memory_space<smem>>
    %368 = vector.broadcast %367 : f32 to vector<16x128xf32>
    %369 = arith.mulf %368, %330 : vector<16x128xf32>
    %370 = arith.addf %354, %369 : vector<16x128xf32>
    %c92 = arith.constant 92 : index
    %371 = memref.load %arg2[%c92] : memref<288xf32, #tpu.memory_space<smem>>
    %372 = vector.broadcast %371 : f32 to vector<16x128xf32>
    %373 = arith.mulf %372, %330 : vector<16x128xf32>
    %374 = arith.addf %358, %373 : vector<16x128xf32>
    %c128 = arith.constant 128 : index
    %375 = memref.load %arg2[%c128] : memref<288xf32, #tpu.memory_space<smem>>
    %376 = vector.broadcast %375 : f32 to vector<16x128xf32>
    %377 = arith.mulf %376, %330 : vector<16x128xf32>
    %378 = arith.addf %362, %377 : vector<16x128xf32>
    %c0_48 = arith.constant 0 : index
    %c2_49 = arith.constant 2 : index
    %c0_50 = arith.constant 0 : index
    %c1_51 = arith.constant 1 : index
    %c0_52 = arith.constant 0 : index
    %379 = vector.load %arg3[%c0_48, %c2_49, %c0_50, %c1_51, %c0_52] : memref<1x4x1x18x128xf32, #tpu.memory_space<vmem>>, vector<1x1x1x16x128xf32>
    %380 = vector.shape_cast %379 : vector<1x1x1x16x128xf32> to vector<16x128xf32>
    %c1_i32_53 = arith.constant 1 : i32
    %381 = tpu.dynamic_rotate %380 by %c1_i32_53 dim 1 : vector<16x128xf32>, i32 -> vector<16x128xf32>
    %c127_i32_54 = arith.constant 127 : i32
    %382 = tpu.dynamic_rotate %380 by %c127_i32_54 dim 1 : vector<16x128xf32>, i32 -> vector<16x128xf32>
    %383 = arith.select %2, %382, %381 : vector<16x128xi1>, vector<16x128xf32>
    %384 = arith.select %4, %381, %382 : vector<16x128xi1>, vector<16x128xf32>
    %c21 = arith.constant 21 : index
    %385 = memref.load %arg2[%c21] : memref<288xf32, #tpu.memory_space<smem>>
    %386 = vector.broadcast %385 : f32 to vector<16x128xf32>
    %387 = arith.mulf %386, %383 : vector<16x128xf32>
    %388 = arith.addf %366, %387 : vector<16x128xf32>
    %c57 = arith.constant 57 : index
    %389 = memref.load %arg2[%c57] : memref<288xf32, #tpu.memory_space<smem>>
    %390 = vector.broadcast %389 : f32 to vector<16x128xf32>
    %391 = arith.mulf %390, %383 : vector<16x128xf32>
    %392 = arith.addf %370, %391 : vector<16x128xf32>
    %c93 = arith.constant 93 : index
    %393 = memref.load %arg2[%c93] : memref<288xf32, #tpu.memory_space<smem>>
    %394 = vector.broadcast %393 : f32 to vector<16x128xf32>
    %395 = arith.mulf %394, %383 : vector<16x128xf32>
    %396 = arith.addf %374, %395 : vector<16x128xf32>
    %c129 = arith.constant 129 : index
    %397 = memref.load %arg2[%c129] : memref<288xf32, #tpu.memory_space<smem>>
    %398 = vector.broadcast %397 : f32 to vector<16x128xf32>
    %399 = arith.mulf %398, %383 : vector<16x128xf32>
    %400 = arith.addf %378, %399 : vector<16x128xf32>
    %c22 = arith.constant 22 : index
    %401 = memref.load %arg2[%c22] : memref<288xf32, #tpu.memory_space<smem>>
    %402 = vector.broadcast %401 : f32 to vector<16x128xf32>
    %403 = arith.mulf %402, %380 : vector<16x128xf32>
    %404 = arith.addf %388, %403 : vector<16x128xf32>
    %c58 = arith.constant 58 : index
    %405 = memref.load %arg2[%c58] : memref<288xf32, #tpu.memory_space<smem>>
    %406 = vector.broadcast %405 : f32 to vector<16x128xf32>
    %407 = arith.mulf %406, %380 : vector<16x128xf32>
    %408 = arith.addf %392, %407 : vector<16x128xf32>
    %c94 = arith.constant 94 : index
    %409 = memref.load %arg2[%c94] : memref<288xf32, #tpu.memory_space<smem>>
    %410 = vector.broadcast %409 : f32 to vector<16x128xf32>
    %411 = arith.mulf %410, %380 : vector<16x128xf32>
    %412 = arith.addf %396, %411 : vector<16x128xf32>
    %c130 = arith.constant 130 : index
    %413 = memref.load %arg2[%c130] : memref<288xf32, #tpu.memory_space<smem>>
    %414 = vector.broadcast %413 : f32 to vector<16x128xf32>
    %415 = arith.mulf %414, %380 : vector<16x128xf32>
    %416 = arith.addf %400, %415 : vector<16x128xf32>
    %c23 = arith.constant 23 : index
    %417 = memref.load %arg2[%c23] : memref<288xf32, #tpu.memory_space<smem>>
    %418 = vector.broadcast %417 : f32 to vector<16x128xf32>
    %419 = arith.mulf %418, %384 : vector<16x128xf32>
    %420 = arith.addf %404, %419 : vector<16x128xf32>
    %c59 = arith.constant 59 : index
    %421 = memref.load %arg2[%c59] : memref<288xf32, #tpu.memory_space<smem>>
    %422 = vector.broadcast %421 : f32 to vector<16x128xf32>
    %423 = arith.mulf %422, %384 : vector<16x128xf32>
    %424 = arith.addf %408, %423 : vector<16x128xf32>
    %c95 = arith.constant 95 : index
    %425 = memref.load %arg2[%c95] : memref<288xf32, #tpu.memory_space<smem>>
    %426 = vector.broadcast %425 : f32 to vector<16x128xf32>
    %427 = arith.mulf %426, %384 : vector<16x128xf32>
    %428 = arith.addf %412, %427 : vector<16x128xf32>
    %c131 = arith.constant 131 : index
    %429 = memref.load %arg2[%c131] : memref<288xf32, #tpu.memory_space<smem>>
    %430 = vector.broadcast %429 : f32 to vector<16x128xf32>
    %431 = arith.mulf %430, %384 : vector<16x128xf32>
    %432 = arith.addf %416, %431 : vector<16x128xf32>
    %c0_55 = arith.constant 0 : index
    %c2_56 = arith.constant 2 : index
    %c0_57 = arith.constant 0 : index
    %c2_58 = arith.constant 2 : index
    %c0_59 = arith.constant 0 : index
    %433 = vector.load %arg3[%c0_55, %c2_56, %c0_57, %c2_58, %c0_59] : memref<1x4x1x18x128xf32, #tpu.memory_space<vmem>>, vector<1x1x1x16x128xf32>
    %434 = vector.shape_cast %433 : vector<1x1x1x16x128xf32> to vector<16x128xf32>
    %c1_i32_60 = arith.constant 1 : i32
    %435 = tpu.dynamic_rotate %434 by %c1_i32_60 dim 1 : vector<16x128xf32>, i32 -> vector<16x128xf32>
    %c127_i32_61 = arith.constant 127 : i32
    %436 = tpu.dynamic_rotate %434 by %c127_i32_61 dim 1 : vector<16x128xf32>, i32 -> vector<16x128xf32>
    %437 = arith.select %2, %436, %435 : vector<16x128xi1>, vector<16x128xf32>
    %438 = arith.select %4, %435, %436 : vector<16x128xi1>, vector<16x128xf32>
    %c24 = arith.constant 24 : index
    %439 = memref.load %arg2[%c24] : memref<288xf32, #tpu.memory_space<smem>>
    %440 = vector.broadcast %439 : f32 to vector<16x128xf32>
    %441 = arith.mulf %440, %437 : vector<16x128xf32>
    %442 = arith.addf %420, %441 : vector<16x128xf32>
    %c60 = arith.constant 60 : index
    %443 = memref.load %arg2[%c60] : memref<288xf32, #tpu.memory_space<smem>>
    %444 = vector.broadcast %443 : f32 to vector<16x128xf32>
    %445 = arith.mulf %444, %437 : vector<16x128xf32>
    %446 = arith.addf %424, %445 : vector<16x128xf32>
    %c96 = arith.constant 96 : index
    %447 = memref.load %arg2[%c96] : memref<288xf32, #tpu.memory_space<smem>>
    %448 = vector.broadcast %447 : f32 to vector<16x128xf32>
    %449 = arith.mulf %448, %437 : vector<16x128xf32>
    %450 = arith.addf %428, %449 : vector<16x128xf32>
    %c132 = arith.constant 132 : index
    %451 = memref.load %arg2[%c132] : memref<288xf32, #tpu.memory_space<smem>>
    %452 = vector.broadcast %451 : f32 to vector<16x128xf32>
    %453 = arith.mulf %452, %437 : vector<16x128xf32>
    %454 = arith.addf %432, %453 : vector<16x128xf32>
    %c25 = arith.constant 25 : index
    %455 = memref.load %arg2[%c25] : memref<288xf32, #tpu.memory_space<smem>>
    %456 = vector.broadcast %455 : f32 to vector<16x128xf32>
    %457 = arith.mulf %456, %434 : vector<16x128xf32>
    %458 = arith.addf %442, %457 : vector<16x128xf32>
    %c61 = arith.constant 61 : index
    %459 = memref.load %arg2[%c61] : memref<288xf32, #tpu.memory_space<smem>>
    %460 = vector.broadcast %459 : f32 to vector<16x128xf32>
    %461 = arith.mulf %460, %434 : vector<16x128xf32>
    %462 = arith.addf %446, %461 : vector<16x128xf32>
    %c97 = arith.constant 97 : index
    %463 = memref.load %arg2[%c97] : memref<288xf32, #tpu.memory_space<smem>>
    %464 = vector.broadcast %463 : f32 to vector<16x128xf32>
    %465 = arith.mulf %464, %434 : vector<16x128xf32>
    %466 = arith.addf %450, %465 : vector<16x128xf32>
    %c133 = arith.constant 133 : index
    %467 = memref.load %arg2[%c133] : memref<288xf32, #tpu.memory_space<smem>>
    %468 = vector.broadcast %467 : f32 to vector<16x128xf32>
    %469 = arith.mulf %468, %434 : vector<16x128xf32>
    %470 = arith.addf %454, %469 : vector<16x128xf32>
    %c26 = arith.constant 26 : index
    %471 = memref.load %arg2[%c26] : memref<288xf32, #tpu.memory_space<smem>>
    %472 = vector.broadcast %471 : f32 to vector<16x128xf32>
    %473 = arith.mulf %472, %438 : vector<16x128xf32>
    %474 = arith.addf %458, %473 : vector<16x128xf32>
    %c62 = arith.constant 62 : index
    %475 = memref.load %arg2[%c62] : memref<288xf32, #tpu.memory_space<smem>>
    %476 = vector.broadcast %475 : f32 to vector<16x128xf32>
    %477 = arith.mulf %476, %438 : vector<16x128xf32>
    %478 = arith.addf %462, %477 : vector<16x128xf32>
    %c98 = arith.constant 98 : index
    %479 = memref.load %arg2[%c98] : memref<288xf32, #tpu.memory_space<smem>>
    %480 = vector.broadcast %479 : f32 to vector<16x128xf32>
    %481 = arith.mulf %480, %438 : vector<16x128xf32>
    %482 = arith.addf %466, %481 : vector<16x128xf32>
    %c134 = arith.constant 134 : index
    %483 = memref.load %arg2[%c134] : memref<288xf32, #tpu.memory_space<smem>>
    %484 = vector.broadcast %483 : f32 to vector<16x128xf32>
    %485 = arith.mulf %484, %438 : vector<16x128xf32>
    %486 = arith.addf %470, %485 : vector<16x128xf32>
    %c0_62 = arith.constant 0 : index
    %c3_63 = arith.constant 3 : index
    %c0_64 = arith.constant 0 : index
    %c0_65 = arith.constant 0 : index
    %c0_66 = arith.constant 0 : index
    %487 = vector.load %arg3[%c0_62, %c3_63, %c0_64, %c0_65, %c0_66] : memref<1x4x1x18x128xf32, #tpu.memory_space<vmem>>, vector<1x1x1x16x128xf32>
    %488 = vector.shape_cast %487 : vector<1x1x1x16x128xf32> to vector<16x128xf32>
    %c1_i32_67 = arith.constant 1 : i32
    %489 = tpu.dynamic_rotate %488 by %c1_i32_67 dim 1 : vector<16x128xf32>, i32 -> vector<16x128xf32>
    %c127_i32_68 = arith.constant 127 : i32
    %490 = tpu.dynamic_rotate %488 by %c127_i32_68 dim 1 : vector<16x128xf32>, i32 -> vector<16x128xf32>
    %491 = arith.select %2, %490, %489 : vector<16x128xi1>, vector<16x128xf32>
    %492 = arith.select %4, %489, %490 : vector<16x128xi1>, vector<16x128xf32>
    %c27 = arith.constant 27 : index
    %493 = memref.load %arg2[%c27] : memref<288xf32, #tpu.memory_space<smem>>
    %494 = vector.broadcast %493 : f32 to vector<16x128xf32>
    %495 = arith.mulf %494, %491 : vector<16x128xf32>
    %496 = arith.addf %474, %495 : vector<16x128xf32>
    %c63 = arith.constant 63 : index
    %497 = memref.load %arg2[%c63] : memref<288xf32, #tpu.memory_space<smem>>
    %498 = vector.broadcast %497 : f32 to vector<16x128xf32>
    %499 = arith.mulf %498, %491 : vector<16x128xf32>
    %500 = arith.addf %478, %499 : vector<16x128xf32>
    %c99 = arith.constant 99 : index
    %501 = memref.load %arg2[%c99] : memref<288xf32, #tpu.memory_space<smem>>
    %502 = vector.broadcast %501 : f32 to vector<16x128xf32>
    %503 = arith.mulf %502, %491 : vector<16x128xf32>
    %504 = arith.addf %482, %503 : vector<16x128xf32>
    %c135 = arith.constant 135 : index
    %505 = memref.load %arg2[%c135] : memref<288xf32, #tpu.memory_space<smem>>
    %506 = vector.broadcast %505 : f32 to vector<16x128xf32>
    %507 = arith.mulf %506, %491 : vector<16x128xf32>
    %508 = arith.addf %486, %507 : vector<16x128xf32>
    %c28 = arith.constant 28 : index
    %509 = memref.load %arg2[%c28] : memref<288xf32, #tpu.memory_space<smem>>
    %510 = vector.broadcast %509 : f32 to vector<16x128xf32>
    %511 = arith.mulf %510, %488 : vector<16x128xf32>
    %512 = arith.addf %496, %511 : vector<16x128xf32>
    %c64 = arith.constant 64 : index
    %513 = memref.load %arg2[%c64] : memref<288xf32, #tpu.memory_space<smem>>
    %514 = vector.broadcast %513 : f32 to vector<16x128xf32>
    %515 = arith.mulf %514, %488 : vector<16x128xf32>
    %516 = arith.addf %500, %515 : vector<16x128xf32>
    %c100 = arith.constant 100 : index
    %517 = memref.load %arg2[%c100] : memref<288xf32, #tpu.memory_space<smem>>
    %518 = vector.broadcast %517 : f32 to vector<16x128xf32>
    %519 = arith.mulf %518, %488 : vector<16x128xf32>
    %520 = arith.addf %504, %519 : vector<16x128xf32>
    %c136 = arith.constant 136 : index
    %521 = memref.load %arg2[%c136] : memref<288xf32, #tpu.memory_space<smem>>
    %522 = vector.broadcast %521 : f32 to vector<16x128xf32>
    %523 = arith.mulf %522, %488 : vector<16x128xf32>
    %524 = arith.addf %508, %523 : vector<16x128xf32>
    %c29 = arith.constant 29 : index
    %525 = memref.load %arg2[%c29] : memref<288xf32, #tpu.memory_space<smem>>
    %526 = vector.broadcast %525 : f32 to vector<16x128xf32>
    %527 = arith.mulf %526, %492 : vector<16x128xf32>
    %528 = arith.addf %512, %527 : vector<16x128xf32>
    %c65 = arith.constant 65 : index
    %529 = memref.load %arg2[%c65] : memref<288xf32, #tpu.memory_space<smem>>
    %530 = vector.broadcast %529 : f32 to vector<16x128xf32>
    %531 = arith.mulf %530, %492 : vector<16x128xf32>
    %532 = arith.addf %516, %531 : vector<16x128xf32>
    %c101 = arith.constant 101 : index
    %533 = memref.load %arg2[%c101] : memref<288xf32, #tpu.memory_space<smem>>
    %534 = vector.broadcast %533 : f32 to vector<16x128xf32>
    %535 = arith.mulf %534, %492 : vector<16x128xf32>
    %536 = arith.addf %520, %535 : vector<16x128xf32>
    %c137 = arith.constant 137 : index
    %537 = memref.load %arg2[%c137] : memref<288xf32, #tpu.memory_space<smem>>
    %538 = vector.broadcast %537 : f32 to vector<16x128xf32>
    %539 = arith.mulf %538, %492 : vector<16x128xf32>
    %540 = arith.addf %524, %539 : vector<16x128xf32>
    %c0_69 = arith.constant 0 : index
    %c3_70 = arith.constant 3 : index
    %c0_71 = arith.constant 0 : index
    %c1_72 = arith.constant 1 : index
    %c0_73 = arith.constant 0 : index
    %541 = vector.load %arg3[%c0_69, %c3_70, %c0_71, %c1_72, %c0_73] : memref<1x4x1x18x128xf32, #tpu.memory_space<vmem>>, vector<1x1x1x16x128xf32>
    %542 = vector.shape_cast %541 : vector<1x1x1x16x128xf32> to vector<16x128xf32>
    %c1_i32_74 = arith.constant 1 : i32
    %543 = tpu.dynamic_rotate %542 by %c1_i32_74 dim 1 : vector<16x128xf32>, i32 -> vector<16x128xf32>
    %c127_i32_75 = arith.constant 127 : i32
    %544 = tpu.dynamic_rotate %542 by %c127_i32_75 dim 1 : vector<16x128xf32>, i32 -> vector<16x128xf32>
    %545 = arith.select %2, %544, %543 : vector<16x128xi1>, vector<16x128xf32>
    %546 = arith.select %4, %543, %544 : vector<16x128xi1>, vector<16x128xf32>
    %c30 = arith.constant 30 : index
    %547 = memref.load %arg2[%c30] : memref<288xf32, #tpu.memory_space<smem>>
    %548 = vector.broadcast %547 : f32 to vector<16x128xf32>
    %549 = arith.mulf %548, %545 : vector<16x128xf32>
    %550 = arith.addf %528, %549 : vector<16x128xf32>
    %c66 = arith.constant 66 : index
    %551 = memref.load %arg2[%c66] : memref<288xf32, #tpu.memory_space<smem>>
    %552 = vector.broadcast %551 : f32 to vector<16x128xf32>
    %553 = arith.mulf %552, %545 : vector<16x128xf32>
    %554 = arith.addf %532, %553 : vector<16x128xf32>
    %c102 = arith.constant 102 : index
    %555 = memref.load %arg2[%c102] : memref<288xf32, #tpu.memory_space<smem>>
    %556 = vector.broadcast %555 : f32 to vector<16x128xf32>
    %557 = arith.mulf %556, %545 : vector<16x128xf32>
    %558 = arith.addf %536, %557 : vector<16x128xf32>
    %c138 = arith.constant 138 : index
    %559 = memref.load %arg2[%c138] : memref<288xf32, #tpu.memory_space<smem>>
    %560 = vector.broadcast %559 : f32 to vector<16x128xf32>
    %561 = arith.mulf %560, %545 : vector<16x128xf32>
    %562 = arith.addf %540, %561 : vector<16x128xf32>
    %c31 = arith.constant 31 : index
    %563 = memref.load %arg2[%c31] : memref<288xf32, #tpu.memory_space<smem>>
    %564 = vector.broadcast %563 : f32 to vector<16x128xf32>
    %565 = arith.mulf %564, %542 : vector<16x128xf32>
    %566 = arith.addf %550, %565 : vector<16x128xf32>
    %c67 = arith.constant 67 : index
    %567 = memref.load %arg2[%c67] : memref<288xf32, #tpu.memory_space<smem>>
    %568 = vector.broadcast %567 : f32 to vector<16x128xf32>
    %569 = arith.mulf %568, %542 : vector<16x128xf32>
    %570 = arith.addf %554, %569 : vector<16x128xf32>
    %c103 = arith.constant 103 : index
    %571 = memref.load %arg2[%c103] : memref<288xf32, #tpu.memory_space<smem>>
    %572 = vector.broadcast %571 : f32 to vector<16x128xf32>
    %573 = arith.mulf %572, %542 : vector<16x128xf32>
    %574 = arith.addf %558, %573 : vector<16x128xf32>
    %c139 = arith.constant 139 : index
    %575 = memref.load %arg2[%c139] : memref<288xf32, #tpu.memory_space<smem>>
    %576 = vector.broadcast %575 : f32 to vector<16x128xf32>
    %577 = arith.mulf %576, %542 : vector<16x128xf32>
    %578 = arith.addf %562, %577 : vector<16x128xf32>
    %c32 = arith.constant 32 : index
    %579 = memref.load %arg2[%c32] : memref<288xf32, #tpu.memory_space<smem>>
    %580 = vector.broadcast %579 : f32 to vector<16x128xf32>
    %581 = arith.mulf %580, %546 : vector<16x128xf32>
    %582 = arith.addf %566, %581 : vector<16x128xf32>
    %c68 = arith.constant 68 : index
    %583 = memref.load %arg2[%c68] : memref<288xf32, #tpu.memory_space<smem>>
    %584 = vector.broadcast %583 : f32 to vector<16x128xf32>
    %585 = arith.mulf %584, %546 : vector<16x128xf32>
    %586 = arith.addf %570, %585 : vector<16x128xf32>
    %c104 = arith.constant 104 : index
    %587 = memref.load %arg2[%c104] : memref<288xf32, #tpu.memory_space<smem>>
    %588 = vector.broadcast %587 : f32 to vector<16x128xf32>
    %589 = arith.mulf %588, %546 : vector<16x128xf32>
    %590 = arith.addf %574, %589 : vector<16x128xf32>
    %c140 = arith.constant 140 : index
    %591 = memref.load %arg2[%c140] : memref<288xf32, #tpu.memory_space<smem>>
    %592 = vector.broadcast %591 : f32 to vector<16x128xf32>
    %593 = arith.mulf %592, %546 : vector<16x128xf32>
    %594 = arith.addf %578, %593 : vector<16x128xf32>
    %c0_76 = arith.constant 0 : index
    %c3_77 = arith.constant 3 : index
    %c0_78 = arith.constant 0 : index
    %c2_79 = arith.constant 2 : index
    %c0_80 = arith.constant 0 : index
    %595 = vector.load %arg3[%c0_76, %c3_77, %c0_78, %c2_79, %c0_80] : memref<1x4x1x18x128xf32, #tpu.memory_space<vmem>>, vector<1x1x1x16x128xf32>
    %596 = vector.shape_cast %595 : vector<1x1x1x16x128xf32> to vector<16x128xf32>
    %c1_i32_81 = arith.constant 1 : i32
    %597 = tpu.dynamic_rotate %596 by %c1_i32_81 dim 1 : vector<16x128xf32>, i32 -> vector<16x128xf32>
    %c127_i32_82 = arith.constant 127 : i32
    %598 = tpu.dynamic_rotate %596 by %c127_i32_82 dim 1 : vector<16x128xf32>, i32 -> vector<16x128xf32>
    %599 = arith.select %2, %598, %597 : vector<16x128xi1>, vector<16x128xf32>
    %600 = arith.select %4, %597, %598 : vector<16x128xi1>, vector<16x128xf32>
    %c33 = arith.constant 33 : index
    %601 = memref.load %arg2[%c33] : memref<288xf32, #tpu.memory_space<smem>>
    %602 = vector.broadcast %601 : f32 to vector<16x128xf32>
    %603 = arith.mulf %602, %599 : vector<16x128xf32>
    %604 = arith.addf %582, %603 : vector<16x128xf32>
    %c69 = arith.constant 69 : index
    %605 = memref.load %arg2[%c69] : memref<288xf32, #tpu.memory_space<smem>>
    %606 = vector.broadcast %605 : f32 to vector<16x128xf32>
    %607 = arith.mulf %606, %599 : vector<16x128xf32>
    %608 = arith.addf %586, %607 : vector<16x128xf32>
    %c105 = arith.constant 105 : index
    %609 = memref.load %arg2[%c105] : memref<288xf32, #tpu.memory_space<smem>>
    %610 = vector.broadcast %609 : f32 to vector<16x128xf32>
    %611 = arith.mulf %610, %599 : vector<16x128xf32>
    %612 = arith.addf %590, %611 : vector<16x128xf32>
    %c141 = arith.constant 141 : index
    %613 = memref.load %arg2[%c141] : memref<288xf32, #tpu.memory_space<smem>>
    %614 = vector.broadcast %613 : f32 to vector<16x128xf32>
    %615 = arith.mulf %614, %599 : vector<16x128xf32>
    %616 = arith.addf %594, %615 : vector<16x128xf32>
    %c34 = arith.constant 34 : index
    %617 = memref.load %arg2[%c34] : memref<288xf32, #tpu.memory_space<smem>>
    %618 = vector.broadcast %617 : f32 to vector<16x128xf32>
    %619 = arith.mulf %618, %596 : vector<16x128xf32>
    %620 = arith.addf %604, %619 : vector<16x128xf32>
    %c70 = arith.constant 70 : index
    %621 = memref.load %arg2[%c70] : memref<288xf32, #tpu.memory_space<smem>>
    %622 = vector.broadcast %621 : f32 to vector<16x128xf32>
    %623 = arith.mulf %622, %596 : vector<16x128xf32>
    %624 = arith.addf %608, %623 : vector<16x128xf32>
    %c106 = arith.constant 106 : index
    %625 = memref.load %arg2[%c106] : memref<288xf32, #tpu.memory_space<smem>>
    %626 = vector.broadcast %625 : f32 to vector<16x128xf32>
    %627 = arith.mulf %626, %596 : vector<16x128xf32>
    %628 = arith.addf %612, %627 : vector<16x128xf32>
    %c142 = arith.constant 142 : index
    %629 = memref.load %arg2[%c142] : memref<288xf32, #tpu.memory_space<smem>>
    %630 = vector.broadcast %629 : f32 to vector<16x128xf32>
    %631 = arith.mulf %630, %596 : vector<16x128xf32>
    %632 = arith.addf %616, %631 : vector<16x128xf32>
    %c35 = arith.constant 35 : index
    %633 = memref.load %arg2[%c35] : memref<288xf32, #tpu.memory_space<smem>>
    %634 = vector.broadcast %633 : f32 to vector<16x128xf32>
    %635 = arith.mulf %634, %600 : vector<16x128xf32>
    %636 = arith.addf %620, %635 : vector<16x128xf32>
    %c71 = arith.constant 71 : index
    %637 = memref.load %arg2[%c71] : memref<288xf32, #tpu.memory_space<smem>>
    %638 = vector.broadcast %637 : f32 to vector<16x128xf32>
    %639 = arith.mulf %638, %600 : vector<16x128xf32>
    %640 = arith.addf %624, %639 : vector<16x128xf32>
    %c107 = arith.constant 107 : index
    %641 = memref.load %arg2[%c107] : memref<288xf32, #tpu.memory_space<smem>>
    %642 = vector.broadcast %641 : f32 to vector<16x128xf32>
    %643 = arith.mulf %642, %600 : vector<16x128xf32>
    %644 = arith.addf %628, %643 : vector<16x128xf32>
    %c143 = arith.constant 143 : index
    %645 = memref.load %arg2[%c143] : memref<288xf32, #tpu.memory_space<smem>>
    %646 = vector.broadcast %645 : f32 to vector<16x128xf32>
    %647 = arith.mulf %646, %600 : vector<16x128xf32>
    %648 = arith.addf %632, %647 : vector<16x128xf32>
    %c0_83 = arith.constant 0 : index
    %c0_84 = arith.constant 0 : index
    %c0_85 = arith.constant 0 : index
    %c0_86 = arith.constant 0 : index
    %649 = vector.load %arg4[%c0_83, %c0_84, %c0_85, %c0_86] : memref<1x8x16x128xf32, #tpu.memory_space<vmem>>, vector<1x1x16x128xf32>
    %650 = vector.shape_cast %649 : vector<1x1x16x128xf32> to vector<16x128xf32>
    %651 = vector.shape_cast %636 : vector<16x128xf32> to vector<1x1x16x128xf32>
    tpu.vector_store %arg4[%c0_83, %c0_84, %c0_85, %c0_86], %651 {strides = array<i32>} : memref<1x8x16x128xf32, #tpu.memory_space<vmem>>, vector<1x1x16x128xf32>,
    %c0_87 = arith.constant 0 : index
    %c1_88 = arith.constant 1 : index
    %c0_89 = arith.constant 0 : index
    %c0_90 = arith.constant 0 : index
    %652 = vector.load %arg4[%c0_87, %c1_88, %c0_89, %c0_90] : memref<1x8x16x128xf32, #tpu.memory_space<vmem>>, vector<1x1x16x128xf32>
    %653 = vector.shape_cast %652 : vector<1x1x16x128xf32> to vector<16x128xf32>
    %654 = vector.shape_cast %640 : vector<16x128xf32> to vector<1x1x16x128xf32>
    tpu.vector_store %arg4[%c0_87, %c1_88, %c0_89, %c0_90], %654 {strides = array<i32>} : memref<1x8x16x128xf32, #tpu.memory_space<vmem>>, vector<1x1x16x128xf32>,
    %c0_91 = arith.constant 0 : index
    %c2_92 = arith.constant 2 : index
    %c0_93 = arith.constant 0 : index
    %c0_94 = arith.constant 0 : index
    %655 = vector.load %arg4[%c0_91, %c2_92, %c0_93, %c0_94] : memref<1x8x16x128xf32, #tpu.memory_space<vmem>>, vector<1x1x16x128xf32>
    %656 = vector.shape_cast %655 : vector<1x1x16x128xf32> to vector<16x128xf32>
    %657 = vector.shape_cast %644 : vector<16x128xf32> to vector<1x1x16x128xf32>
    tpu.vector_store %arg4[%c0_91, %c2_92, %c0_93, %c0_94], %657 {strides = array<i32>} : memref<1x8x16x128xf32, #tpu.memory_space<vmem>>, vector<1x1x16x128xf32>,
    %c0_95 = arith.constant 0 : index
    %c3_96 = arith.constant 3 : index
    %c0_97 = arith.constant 0 : index
    %c0_98 = arith.constant 0 : index
    %658 = vector.load %arg4[%c0_95, %c3_96, %c0_97, %c0_98] : memref<1x8x16x128xf32, #tpu.memory_space<vmem>>, vector<1x1x16x128xf32>
    %659 = vector.shape_cast %658 : vector<1x1x16x128xf32> to vector<16x128xf32>
    %660 = vector.shape_cast %648 : vector<16x128xf32> to vector<1x1x16x128xf32>
    tpu.vector_store %arg4[%c0_95, %c3_96, %c0_97, %c0_98], %660 {strides = array<i32>} : memref<1x8x16x128xf32, #tpu.memory_space<vmem>>, vector<1x1x16x128xf32>,
    %c0_99 = arith.constant 0 : index
    %c0_100 = arith.constant 0 : index
    %c0_101 = arith.constant 0 : index
    %c0_102 = arith.constant 0 : index
    %c0_103 = arith.constant 0 : index
    %661 = vector.load %arg3[%c0_99, %c0_100, %c0_101, %c0_102, %c0_103] : memref<1x4x1x18x128xf32, #tpu.memory_space<vmem>>, vector<1x1x1x16x128xf32>
    %662 = vector.shape_cast %661 : vector<1x1x1x16x128xf32> to vector<16x128xf32>
    %c1_i32_104 = arith.constant 1 : i32
    %663 = tpu.dynamic_rotate %662 by %c1_i32_104 dim 1 : vector<16x128xf32>, i32 -> vector<16x128xf32>
    %c127_i32_105 = arith.constant 127 : i32
    %664 = tpu.dynamic_rotate %662 by %c127_i32_105 dim 1 : vector<16x128xf32>, i32 -> vector<16x128xf32>
    %665 = arith.select %2, %664, %663 : vector<16x128xi1>, vector<16x128xf32>
    %666 = arith.select %4, %663, %664 : vector<16x128xi1>, vector<16x128xf32>
    %c144 = arith.constant 144 : index
    %667 = memref.load %arg2[%c144] : memref<288xf32, #tpu.memory_space<smem>>
    %668 = vector.broadcast %667 : f32 to vector<16x128xf32>
    %669 = arith.mulf %668, %665 : vector<16x128xf32>
    %c180 = arith.constant 180 : index
    %670 = memref.load %arg2[%c180] : memref<288xf32, #tpu.memory_space<smem>>
    %671 = vector.broadcast %670 : f32 to vector<16x128xf32>
    %672 = arith.mulf %671, %665 : vector<16x128xf32>
    %c216 = arith.constant 216 : index
    %673 = memref.load %arg2[%c216] : memref<288xf32, #tpu.memory_space<smem>>
    %674 = vector.broadcast %673 : f32 to vector<16x128xf32>
    %675 = arith.mulf %674, %665 : vector<16x128xf32>
    %c252 = arith.constant 252 : index
    %676 = memref.load %arg2[%c252] : memref<288xf32, #tpu.memory_space<smem>>
    %677 = vector.broadcast %676 : f32 to vector<16x128xf32>
    %678 = arith.mulf %677, %665 : vector<16x128xf32>
    %c145 = arith.constant 145 : index
    %679 = memref.load %arg2[%c145] : memref<288xf32, #tpu.memory_space<smem>>
    %680 = vector.broadcast %679 : f32 to vector<16x128xf32>
    %681 = arith.mulf %680, %662 : vector<16x128xf32>
    %682 = arith.addf %669, %681 : vector<16x128xf32>
    %c181 = arith.constant 181 : index
    %683 = memref.load %arg2[%c181] : memref<288xf32, #tpu.memory_space<smem>>
    %684 = vector.broadcast %683 : f32 to vector<16x128xf32>
    %685 = arith.mulf %684, %662 : vector<16x128xf32>
    %686 = arith.addf %672, %685 : vector<16x128xf32>
    %c217 = arith.constant 217 : index
    %687 = memref.load %arg2[%c217] : memref<288xf32, #tpu.memory_space<smem>>
    %688 = vector.broadcast %687 : f32 to vector<16x128xf32>
    %689 = arith.mulf %688, %662 : vector<16x128xf32>
    %690 = arith.addf %675, %689 : vector<16x128xf32>
    %c253 = arith.constant 253 : index
    %691 = memref.load %arg2[%c253] : memref<288xf32, #tpu.memory_space<smem>>
    %692 = vector.broadcast %691 : f32 to vector<16x128xf32>
    %693 = arith.mulf %692, %662 : vector<16x128xf32>
    %694 = arith.addf %678, %693 : vector<16x128xf32>
    %c146 = arith.constant 146 : index
    %695 = memref.load %arg2[%c146] : memref<288xf32, #tpu.memory_space<smem>>
    %696 = vector.broadcast %695 : f32 to vector<16x128xf32>
    %697 = arith.mulf %696, %666 : vector<16x128xf32>
    %698 = arith.addf %682, %697 : vector<16x128xf32>
    %c182 = arith.constant 182 : index
    %699 = memref.load %arg2[%c182] : memref<288xf32, #tpu.memory_space<smem>>
    %700 = vector.broadcast %699 : f32 to vector<16x128xf32>
    %701 = arith.mulf %700, %666 : vector<16x128xf32>
    %702 = arith.addf %686, %701 : vector<16x128xf32>
    %c218 = arith.constant 218 : index
    %703 = memref.load %arg2[%c218] : memref<288xf32, #tpu.memory_space<smem>>
    %704 = vector.broadcast %703 : f32 to vector<16x128xf32>
    %705 = arith.mulf %704, %666 : vector<16x128xf32>
    %706 = arith.addf %690, %705 : vector<16x128xf32>
    %c254 = arith.constant 254 : index
    %707 = memref.load %arg2[%c254] : memref<288xf32, #tpu.memory_space<smem>>
    %708 = vector.broadcast %707 : f32 to vector<16x128xf32>
    %709 = arith.mulf %708, %666 : vector<16x128xf32>
    %710 = arith.addf %694, %709 : vector<16x128xf32>
    %c0_106 = arith.constant 0 : index
    %c0_107 = arith.constant 0 : index
    %c0_108 = arith.constant 0 : index
    %c1_109 = arith.constant 1 : index
    %c0_110 = arith.constant 0 : index
    %711 = vector.load %arg3[%c0_106, %c0_107, %c0_108, %c1_109, %c0_110] : memref<1x4x1x18x128xf32, #tpu.memory_space<vmem>>, vector<1x1x1x16x128xf32>
    %712 = vector.shape_cast %711 : vector<1x1x1x16x128xf32> to vector<16x128xf32>
    %c1_i32_111 = arith.constant 1 : i32
    %713 = tpu.dynamic_rotate %712 by %c1_i32_111 dim 1 : vector<16x128xf32>, i32 -> vector<16x128xf32>
    %c127_i32_112 = arith.constant 127 : i32
    %714 = tpu.dynamic_rotate %712 by %c127_i32_112 dim 1 : vector<16x128xf32>, i32 -> vector<16x128xf32>
    %715 = arith.select %2, %714, %713 : vector<16x128xi1>, vector<16x128xf32>
    %716 = arith.select %4, %713, %714 : vector<16x128xi1>, vector<16x128xf32>
    %c147 = arith.constant 147 : index
    %717 = memref.load %arg2[%c147] : memref<288xf32, #tpu.memory_space<smem>>
    %718 = vector.broadcast %717 : f32 to vector<16x128xf32>
    %719 = arith.mulf %718, %715 : vector<16x128xf32>
    %720 = arith.addf %698, %719 : vector<16x128xf32>
    %c183 = arith.constant 183 : index
    %721 = memref.load %arg2[%c183] : memref<288xf32, #tpu.memory_space<smem>>
    %722 = vector.broadcast %721 : f32 to vector<16x128xf32>
    %723 = arith.mulf %722, %715 : vector<16x128xf32>
    %724 = arith.addf %702, %723 : vector<16x128xf32>
    %c219 = arith.constant 219 : index
    %725 = memref.load %arg2[%c219] : memref<288xf32, #tpu.memory_space<smem>>
    %726 = vector.broadcast %725 : f32 to vector<16x128xf32>
    %727 = arith.mulf %726, %715 : vector<16x128xf32>
    %728 = arith.addf %706, %727 : vector<16x128xf32>
    %c255 = arith.constant 255 : index
    %729 = memref.load %arg2[%c255] : memref<288xf32, #tpu.memory_space<smem>>
    %730 = vector.broadcast %729 : f32 to vector<16x128xf32>
    %731 = arith.mulf %730, %715 : vector<16x128xf32>
    %732 = arith.addf %710, %731 : vector<16x128xf32>
    %c148 = arith.constant 148 : index
    %733 = memref.load %arg2[%c148] : memref<288xf32, #tpu.memory_space<smem>>
    %734 = vector.broadcast %733 : f32 to vector<16x128xf32>
    %735 = arith.mulf %734, %712 : vector<16x128xf32>
    %736 = arith.addf %720, %735 : vector<16x128xf32>
    %c184 = arith.constant 184 : index
    %737 = memref.load %arg2[%c184] : memref<288xf32, #tpu.memory_space<smem>>
    %738 = vector.broadcast %737 : f32 to vector<16x128xf32>
    %739 = arith.mulf %738, %712 : vector<16x128xf32>
    %740 = arith.addf %724, %739 : vector<16x128xf32>
    %c220 = arith.constant 220 : index
    %741 = memref.load %arg2[%c220] : memref<288xf32, #tpu.memory_space<smem>>
    %742 = vector.broadcast %741 : f32 to vector<16x128xf32>
    %743 = arith.mulf %742, %712 : vector<16x128xf32>
    %744 = arith.addf %728, %743 : vector<16x128xf32>
    %c256 = arith.constant 256 : index
    %745 = memref.load %arg2[%c256] : memref<288xf32, #tpu.memory_space<smem>>
    %746 = vector.broadcast %745 : f32 to vector<16x128xf32>
    %747 = arith.mulf %746, %712 : vector<16x128xf32>
    %748 = arith.addf %732, %747 : vector<16x128xf32>
    %c149 = arith.constant 149 : index
    %749 = memref.load %arg2[%c149] : memref<288xf32, #tpu.memory_space<smem>>
    %750 = vector.broadcast %749 : f32 to vector<16x128xf32>
    %751 = arith.mulf %750, %716 : vector<16x128xf32>
    %752 = arith.addf %736, %751 : vector<16x128xf32>
    %c185 = arith.constant 185 : index
    %753 = memref.load %arg2[%c185] : memref<288xf32, #tpu.memory_space<smem>>
    %754 = vector.broadcast %753 : f32 to vector<16x128xf32>
    %755 = arith.mulf %754, %716 : vector<16x128xf32>
    %756 = arith.addf %740, %755 : vector<16x128xf32>
    %c221 = arith.constant 221 : index
    %757 = memref.load %arg2[%c221] : memref<288xf32, #tpu.memory_space<smem>>
    %758 = vector.broadcast %757 : f32 to vector<16x128xf32>
    %759 = arith.mulf %758, %716 : vector<16x128xf32>
    %760 = arith.addf %744, %759 : vector<16x128xf32>
    %c257 = arith.constant 257 : index
    %761 = memref.load %arg2[%c257] : memref<288xf32, #tpu.memory_space<smem>>
    %762 = vector.broadcast %761 : f32 to vector<16x128xf32>
    %763 = arith.mulf %762, %716 : vector<16x128xf32>
    %764 = arith.addf %748, %763 : vector<16x128xf32>
    %c0_113 = arith.constant 0 : index
    %c0_114 = arith.constant 0 : index
    %c0_115 = arith.constant 0 : index
    %c2_116 = arith.constant 2 : index
    %c0_117 = arith.constant 0 : index
    %765 = vector.load %arg3[%c0_113, %c0_114, %c0_115, %c2_116, %c0_117] : memref<1x4x1x18x128xf32, #tpu.memory_space<vmem>>, vector<1x1x1x16x128xf32>
    %766 = vector.shape_cast %765 : vector<1x1x1x16x128xf32> to vector<16x128xf32>
    %c1_i32_118 = arith.constant 1 : i32
    %767 = tpu.dynamic_rotate %766 by %c1_i32_118 dim 1 : vector<16x128xf32>, i32 -> vector<16x128xf32>
    %c127_i32_119 = arith.constant 127 : i32
    %768 = tpu.dynamic_rotate %766 by %c127_i32_119 dim 1 : vector<16x128xf32>, i32 -> vector<16x128xf32>
    %769 = arith.select %2, %768, %767 : vector<16x128xi1>, vector<16x128xf32>
    %770 = arith.select %4, %767, %768 : vector<16x128xi1>, vector<16x128xf32>
    %c150 = arith.constant 150 : index
    %771 = memref.load %arg2[%c150] : memref<288xf32, #tpu.memory_space<smem>>
    %772 = vector.broadcast %771 : f32 to vector<16x128xf32>
    %773 = arith.mulf %772, %769 : vector<16x128xf32>
    %774 = arith.addf %752, %773 : vector<16x128xf32>
    %c186 = arith.constant 186 : index
    %775 = memref.load %arg2[%c186] : memref<288xf32, #tpu.memory_space<smem>>
    %776 = vector.broadcast %775 : f32 to vector<16x128xf32>
    %777 = arith.mulf %776, %769 : vector<16x128xf32>
    %778 = arith.addf %756, %777 : vector<16x128xf32>
    %c222 = arith.constant 222 : index
    %779 = memref.load %arg2[%c222] : memref<288xf32, #tpu.memory_space<smem>>
    %780 = vector.broadcast %779 : f32 to vector<16x128xf32>
    %781 = arith.mulf %780, %769 : vector<16x128xf32>
    %782 = arith.addf %760, %781 : vector<16x128xf32>
    %c258 = arith.constant 258 : index
    %783 = memref.load %arg2[%c258] : memref<288xf32, #tpu.memory_space<smem>>
    %784 = vector.broadcast %783 : f32 to vector<16x128xf32>
    %785 = arith.mulf %784, %769 : vector<16x128xf32>
    %786 = arith.addf %764, %785 : vector<16x128xf32>
    %c151 = arith.constant 151 : index
    %787 = memref.load %arg2[%c151] : memref<288xf32, #tpu.memory_space<smem>>
    %788 = vector.broadcast %787 : f32 to vector<16x128xf32>
    %789 = arith.mulf %788, %766 : vector<16x128xf32>
    %790 = arith.addf %774, %789 : vector<16x128xf32>
    %c187 = arith.constant 187 : index
    %791 = memref.load %arg2[%c187] : memref<288xf32, #tpu.memory_space<smem>>
    %792 = vector.broadcast %791 : f32 to vector<16x128xf32>
    %793 = arith.mulf %792, %766 : vector<16x128xf32>
    %794 = arith.addf %778, %793 : vector<16x128xf32>
    %c223 = arith.constant 223 : index
    %795 = memref.load %arg2[%c223] : memref<288xf32, #tpu.memory_space<smem>>
    %796 = vector.broadcast %795 : f32 to vector<16x128xf32>
    %797 = arith.mulf %796, %766 : vector<16x128xf32>
    %798 = arith.addf %782, %797 : vector<16x128xf32>
    %c259 = arith.constant 259 : index
    %799 = memref.load %arg2[%c259] : memref<288xf32, #tpu.memory_space<smem>>
    %800 = vector.broadcast %799 : f32 to vector<16x128xf32>
    %801 = arith.mulf %800, %766 : vector<16x128xf32>
    %802 = arith.addf %786, %801 : vector<16x128xf32>
    %c152 = arith.constant 152 : index
    %803 = memref.load %arg2[%c152] : memref<288xf32, #tpu.memory_space<smem>>
    %804 = vector.broadcast %803 : f32 to vector<16x128xf32>
    %805 = arith.mulf %804, %770 : vector<16x128xf32>
    %806 = arith.addf %790, %805 : vector<16x128xf32>
    %c188 = arith.constant 188 : index
    %807 = memref.load %arg2[%c188] : memref<288xf32, #tpu.memory_space<smem>>
    %808 = vector.broadcast %807 : f32 to vector<16x128xf32>
    %809 = arith.mulf %808, %770 : vector<16x128xf32>
    %810 = arith.addf %794, %809 : vector<16x128xf32>
    %c224 = arith.constant 224 : index
    %811 = memref.load %arg2[%c224] : memref<288xf32, #tpu.memory_space<smem>>
    %812 = vector.broadcast %811 : f32 to vector<16x128xf32>
    %813 = arith.mulf %812, %770 : vector<16x128xf32>
    %814 = arith.addf %798, %813 : vector<16x128xf32>
    %c260 = arith.constant 260 : index
    %815 = memref.load %arg2[%c260] : memref<288xf32, #tpu.memory_space<smem>>
    %816 = vector.broadcast %815 : f32 to vector<16x128xf32>
    %817 = arith.mulf %816, %770 : vector<16x128xf32>
    %818 = arith.addf %802, %817 : vector<16x128xf32>
    %c0_120 = arith.constant 0 : index
    %c1_121 = arith.constant 1 : index
    %c0_122 = arith.constant 0 : index
    %c0_123 = arith.constant 0 : index
    %c0_124 = arith.constant 0 : index
    %819 = vector.load %arg3[%c0_120, %c1_121, %c0_122, %c0_123, %c0_124] : memref<1x4x1x18x128xf32, #tpu.memory_space<vmem>>, vector<1x1x1x16x128xf32>
    %820 = vector.shape_cast %819 : vector<1x1x1x16x128xf32> to vector<16x128xf32>
    %c1_i32_125 = arith.constant 1 : i32
    %821 = tpu.dynamic_rotate %820 by %c1_i32_125 dim 1 : vector<16x128xf32>, i32 -> vector<16x128xf32>
    %c127_i32_126 = arith.constant 127 : i32
    %822 = tpu.dynamic_rotate %820 by %c127_i32_126 dim 1 : vector<16x128xf32>, i32 -> vector<16x128xf32>
    %823 = arith.select %2, %822, %821 : vector<16x128xi1>, vector<16x128xf32>
    %824 = arith.select %4, %821, %822 : vector<16x128xi1>, vector<16x128xf32>
    %c153 = arith.constant 153 : index
    %825 = memref.load %arg2[%c153] : memref<288xf32, #tpu.memory_space<smem>>
    %826 = vector.broadcast %825 : f32 to vector<16x128xf32>
    %827 = arith.mulf %826, %823 : vector<16x128xf32>
    %828 = arith.addf %806, %827 : vector<16x128xf32>
    %c189 = arith.constant 189 : index
    %829 = memref.load %arg2[%c189] : memref<288xf32, #tpu.memory_space<smem>>
    %830 = vector.broadcast %829 : f32 to vector<16x128xf32>
    %831 = arith.mulf %830, %823 : vector<16x128xf32>
    %832 = arith.addf %810, %831 : vector<16x128xf32>
    %c225 = arith.constant 225 : index
    %833 = memref.load %arg2[%c225] : memref<288xf32, #tpu.memory_space<smem>>
    %834 = vector.broadcast %833 : f32 to vector<16x128xf32>
    %835 = arith.mulf %834, %823 : vector<16x128xf32>
    %836 = arith.addf %814, %835 : vector<16x128xf32>
    %c261 = arith.constant 261 : index
    %837 = memref.load %arg2[%c261] : memref<288xf32, #tpu.memory_space<smem>>
    %838 = vector.broadcast %837 : f32 to vector<16x128xf32>
    %839 = arith.mulf %838, %823 : vector<16x128xf32>
    %840 = arith.addf %818, %839 : vector<16x128xf32>
    %c154 = arith.constant 154 : index
    %841 = memref.load %arg2[%c154] : memref<288xf32, #tpu.memory_space<smem>>
    %842 = vector.broadcast %841 : f32 to vector<16x128xf32>
    %843 = arith.mulf %842, %820 : vector<16x128xf32>
    %844 = arith.addf %828, %843 : vector<16x128xf32>
    %c190 = arith.constant 190 : index
    %845 = memref.load %arg2[%c190] : memref<288xf32, #tpu.memory_space<smem>>
    %846 = vector.broadcast %845 : f32 to vector<16x128xf32>
    %847 = arith.mulf %846, %820 : vector<16x128xf32>
    %848 = arith.addf %832, %847 : vector<16x128xf32>
    %c226 = arith.constant 226 : index
    %849 = memref.load %arg2[%c226] : memref<288xf32, #tpu.memory_space<smem>>
    %850 = vector.broadcast %849 : f32 to vector<16x128xf32>
    %851 = arith.mulf %850, %820 : vector<16x128xf32>
    %852 = arith.addf %836, %851 : vector<16x128xf32>
    %c262 = arith.constant 262 : index
    %853 = memref.load %arg2[%c262] : memref<288xf32, #tpu.memory_space<smem>>
    %854 = vector.broadcast %853 : f32 to vector<16x128xf32>
    %855 = arith.mulf %854, %820 : vector<16x128xf32>
    %856 = arith.addf %840, %855 : vector<16x128xf32>
    %c155 = arith.constant 155 : index
    %857 = memref.load %arg2[%c155] : memref<288xf32, #tpu.memory_space<smem>>
    %858 = vector.broadcast %857 : f32 to vector<16x128xf32>
    %859 = arith.mulf %858, %824 : vector<16x128xf32>
    %860 = arith.addf %844, %859 : vector<16x128xf32>
    %c191 = arith.constant 191 : index
    %861 = memref.load %arg2[%c191] : memref<288xf32, #tpu.memory_space<smem>>
    %862 = vector.broadcast %861 : f32 to vector<16x128xf32>
    %863 = arith.mulf %862, %824 : vector<16x128xf32>
    %864 = arith.addf %848, %863 : vector<16x128xf32>
    %c227 = arith.constant 227 : index
    %865 = memref.load %arg2[%c227] : memref<288xf32, #tpu.memory_space<smem>>
    %866 = vector.broadcast %865 : f32 to vector<16x128xf32>
    %867 = arith.mulf %866, %824 : vector<16x128xf32>
    %868 = arith.addf %852, %867 : vector<16x128xf32>
    %c263 = arith.constant 263 : index
    %869 = memref.load %arg2[%c263] : memref<288xf32, #tpu.memory_space<smem>>
    %870 = vector.broadcast %869 : f32 to vector<16x128xf32>
    %871 = arith.mulf %870, %824 : vector<16x128xf32>
    %872 = arith.addf %856, %871 : vector<16x128xf32>
    %c0_127 = arith.constant 0 : index
    %c1_128 = arith.constant 1 : index
    %c0_129 = arith.constant 0 : index
    %c1_130 = arith.constant 1 : index
    %c0_131 = arith.constant 0 : index
    %873 = vector.load %arg3[%c0_127, %c1_128, %c0_129, %c1_130, %c0_131] : memref<1x4x1x18x128xf32, #tpu.memory_space<vmem>>, vector<1x1x1x16x128xf32>
    %874 = vector.shape_cast %873 : vector<1x1x1x16x128xf32> to vector<16x128xf32>
    %c1_i32_132 = arith.constant 1 : i32
    %875 = tpu.dynamic_rotate %874 by %c1_i32_132 dim 1 : vector<16x128xf32>, i32 -> vector<16x128xf32>
    %c127_i32_133 = arith.constant 127 : i32
    %876 = tpu.dynamic_rotate %874 by %c127_i32_133 dim 1 : vector<16x128xf32>, i32 -> vector<16x128xf32>
    %877 = arith.select %2, %876, %875 : vector<16x128xi1>, vector<16x128xf32>
    %878 = arith.select %4, %875, %876 : vector<16x128xi1>, vector<16x128xf32>
    %c156 = arith.constant 156 : index
    %879 = memref.load %arg2[%c156] : memref<288xf32, #tpu.memory_space<smem>>
    %880 = vector.broadcast %879 : f32 to vector<16x128xf32>
    %881 = arith.mulf %880, %877 : vector<16x128xf32>
    %882 = arith.addf %860, %881 : vector<16x128xf32>
    %c192 = arith.constant 192 : index
    %883 = memref.load %arg2[%c192] : memref<288xf32, #tpu.memory_space<smem>>
    %884 = vector.broadcast %883 : f32 to vector<16x128xf32>
    %885 = arith.mulf %884, %877 : vector<16x128xf32>
    %886 = arith.addf %864, %885 : vector<16x128xf32>
    %c228 = arith.constant 228 : index
    %887 = memref.load %arg2[%c228] : memref<288xf32, #tpu.memory_space<smem>>
    %888 = vector.broadcast %887 : f32 to vector<16x128xf32>
    %889 = arith.mulf %888, %877 : vector<16x128xf32>
    %890 = arith.addf %868, %889 : vector<16x128xf32>
    %c264 = arith.constant 264 : index
    %891 = memref.load %arg2[%c264] : memref<288xf32, #tpu.memory_space<smem>>
    %892 = vector.broadcast %891 : f32 to vector<16x128xf32>
    %893 = arith.mulf %892, %877 : vector<16x128xf32>
    %894 = arith.addf %872, %893 : vector<16x128xf32>
    %c157 = arith.constant 157 : index
    %895 = memref.load %arg2[%c157] : memref<288xf32, #tpu.memory_space<smem>>
    %896 = vector.broadcast %895 : f32 to vector<16x128xf32>
    %897 = arith.mulf %896, %874 : vector<16x128xf32>
    %898 = arith.addf %882, %897 : vector<16x128xf32>
    %c193 = arith.constant 193 : index
    %899 = memref.load %arg2[%c193] : memref<288xf32, #tpu.memory_space<smem>>
    %900 = vector.broadcast %899 : f32 to vector<16x128xf32>
    %901 = arith.mulf %900, %874 : vector<16x128xf32>
    %902 = arith.addf %886, %901 : vector<16x128xf32>
    %c229 = arith.constant 229 : index
    %903 = memref.load %arg2[%c229] : memref<288xf32, #tpu.memory_space<smem>>
    %904 = vector.broadcast %903 : f32 to vector<16x128xf32>
    %905 = arith.mulf %904, %874 : vector<16x128xf32>
    %906 = arith.addf %890, %905 : vector<16x128xf32>
    %c265 = arith.constant 265 : index
    %907 = memref.load %arg2[%c265] : memref<288xf32, #tpu.memory_space<smem>>
    %908 = vector.broadcast %907 : f32 to vector<16x128xf32>
    %909 = arith.mulf %908, %874 : vector<16x128xf32>
    %910 = arith.addf %894, %909 : vector<16x128xf32>
    %c158 = arith.constant 158 : index
    %911 = memref.load %arg2[%c158] : memref<288xf32, #tpu.memory_space<smem>>
    %912 = vector.broadcast %911 : f32 to vector<16x128xf32>
    %913 = arith.mulf %912, %878 : vector<16x128xf32>
    %914 = arith.addf %898, %913 : vector<16x128xf32>
    %c194 = arith.constant 194 : index
    %915 = memref.load %arg2[%c194] : memref<288xf32, #tpu.memory_space<smem>>
    %916 = vector.broadcast %915 : f32 to vector<16x128xf32>
    %917 = arith.mulf %916, %878 : vector<16x128xf32>
    %918 = arith.addf %902, %917 : vector<16x128xf32>
    %c230 = arith.constant 230 : index
    %919 = memref.load %arg2[%c230] : memref<288xf32, #tpu.memory_space<smem>>
    %920 = vector.broadcast %919 : f32 to vector<16x128xf32>
    %921 = arith.mulf %920, %878 : vector<16x128xf32>
    %922 = arith.addf %906, %921 : vector<16x128xf32>
    %c266 = arith.constant 266 : index
    %923 = memref.load %arg2[%c266] : memref<288xf32, #tpu.memory_space<smem>>
    %924 = vector.broadcast %923 : f32 to vector<16x128xf32>
    %925 = arith.mulf %924, %878 : vector<16x128xf32>
    %926 = arith.addf %910, %925 : vector<16x128xf32>
    %c0_134 = arith.constant 0 : index
    %c1_135 = arith.constant 1 : index
    %c0_136 = arith.constant 0 : index
    %c2_137 = arith.constant 2 : index
    %c0_138 = arith.constant 0 : index
    %927 = vector.load %arg3[%c0_134, %c1_135, %c0_136, %c2_137, %c0_138] : memref<1x4x1x18x128xf32, #tpu.memory_space<vmem>>, vector<1x1x1x16x128xf32>
    %928 = vector.shape_cast %927 : vector<1x1x1x16x128xf32> to vector<16x128xf32>
    %c1_i32_139 = arith.constant 1 : i32
    %929 = tpu.dynamic_rotate %928 by %c1_i32_139 dim 1 : vector<16x128xf32>, i32 -> vector<16x128xf32>
    %c127_i32_140 = arith.constant 127 : i32
    %930 = tpu.dynamic_rotate %928 by %c127_i32_140 dim 1 : vector<16x128xf32>, i32 -> vector<16x128xf32>
    %931 = arith.select %2, %930, %929 : vector<16x128xi1>, vector<16x128xf32>
    %932 = arith.select %4, %929, %930 : vector<16x128xi1>, vector<16x128xf32>
    %c159 = arith.constant 159 : index
    %933 = memref.load %arg2[%c159] : memref<288xf32, #tpu.memory_space<smem>>
    %934 = vector.broadcast %933 : f32 to vector<16x128xf32>
    %935 = arith.mulf %934, %931 : vector<16x128xf32>
    %936 = arith.addf %914, %935 : vector<16x128xf32>
    %c195 = arith.constant 195 : index
    %937 = memref.load %arg2[%c195] : memref<288xf32, #tpu.memory_space<smem>>
    %938 = vector.broadcast %937 : f32 to vector<16x128xf32>
    %939 = arith.mulf %938, %931 : vector<16x128xf32>
    %940 = arith.addf %918, %939 : vector<16x128xf32>
    %c231 = arith.constant 231 : index
    %941 = memref.load %arg2[%c231] : memref<288xf32, #tpu.memory_space<smem>>
    %942 = vector.broadcast %941 : f32 to vector<16x128xf32>
    %943 = arith.mulf %942, %931 : vector<16x128xf32>
    %944 = arith.addf %922, %943 : vector<16x128xf32>
    %c267 = arith.constant 267 : index
    %945 = memref.load %arg2[%c267] : memref<288xf32, #tpu.memory_space<smem>>
    %946 = vector.broadcast %945 : f32 to vector<16x128xf32>
    %947 = arith.mulf %946, %931 : vector<16x128xf32>
    %948 = arith.addf %926, %947 : vector<16x128xf32>
    %c160 = arith.constant 160 : index
    %949 = memref.load %arg2[%c160] : memref<288xf32, #tpu.memory_space<smem>>
    %950 = vector.broadcast %949 : f32 to vector<16x128xf32>
    %951 = arith.mulf %950, %928 : vector<16x128xf32>
    %952 = arith.addf %936, %951 : vector<16x128xf32>
    %c196 = arith.constant 196 : index
    %953 = memref.load %arg2[%c196] : memref<288xf32, #tpu.memory_space<smem>>
    %954 = vector.broadcast %953 : f32 to vector<16x128xf32>
    %955 = arith.mulf %954, %928 : vector<16x128xf32>
    %956 = arith.addf %940, %955 : vector<16x128xf32>
    %c232 = arith.constant 232 : index
    %957 = memref.load %arg2[%c232] : memref<288xf32, #tpu.memory_space<smem>>
    %958 = vector.broadcast %957 : f32 to vector<16x128xf32>
    %959 = arith.mulf %958, %928 : vector<16x128xf32>
    %960 = arith.addf %944, %959 : vector<16x128xf32>
    %c268 = arith.constant 268 : index
    %961 = memref.load %arg2[%c268] : memref<288xf32, #tpu.memory_space<smem>>
    %962 = vector.broadcast %961 : f32 to vector<16x128xf32>
    %963 = arith.mulf %962, %928 : vector<16x128xf32>
    %964 = arith.addf %948, %963 : vector<16x128xf32>
    %c161 = arith.constant 161 : index
    %965 = memref.load %arg2[%c161] : memref<288xf32, #tpu.memory_space<smem>>
    %966 = vector.broadcast %965 : f32 to vector<16x128xf32>
    %967 = arith.mulf %966, %932 : vector<16x128xf32>
    %968 = arith.addf %952, %967 : vector<16x128xf32>
    %c197 = arith.constant 197 : index
    %969 = memref.load %arg2[%c197] : memref<288xf32, #tpu.memory_space<smem>>
    %970 = vector.broadcast %969 : f32 to vector<16x128xf32>
    %971 = arith.mulf %970, %932 : vector<16x128xf32>
    %972 = arith.addf %956, %971 : vector<16x128xf32>
    %c233 = arith.constant 233 : index
    %973 = memref.load %arg2[%c233] : memref<288xf32, #tpu.memory_space<smem>>
    %974 = vector.broadcast %973 : f32 to vector<16x128xf32>
    %975 = arith.mulf %974, %932 : vector<16x128xf32>
    %976 = arith.addf %960, %975 : vector<16x128xf32>
    %c269 = arith.constant 269 : index
    %977 = memref.load %arg2[%c269] : memref<288xf32, #tpu.memory_space<smem>>
    %978 = vector.broadcast %977 : f32 to vector<16x128xf32>
    %979 = arith.mulf %978, %932 : vector<16x128xf32>
    %980 = arith.addf %964, %979 : vector<16x128xf32>
    %c0_141 = arith.constant 0 : index
    %c2_142 = arith.constant 2 : index
    %c0_143 = arith.constant 0 : index
    %c0_144 = arith.constant 0 : index
    %c0_145 = arith.constant 0 : index
    %981 = vector.load %arg3[%c0_141, %c2_142, %c0_143, %c0_144, %c0_145] : memref<1x4x1x18x128xf32, #tpu.memory_space<vmem>>, vector<1x1x1x16x128xf32>
    %982 = vector.shape_cast %981 : vector<1x1x1x16x128xf32> to vector<16x128xf32>
    %c1_i32_146 = arith.constant 1 : i32
    %983 = tpu.dynamic_rotate %982 by %c1_i32_146 dim 1 : vector<16x128xf32>, i32 -> vector<16x128xf32>
    %c127_i32_147 = arith.constant 127 : i32
    %984 = tpu.dynamic_rotate %982 by %c127_i32_147 dim 1 : vector<16x128xf32>, i32 -> vector<16x128xf32>
    %985 = arith.select %2, %984, %983 : vector<16x128xi1>, vector<16x128xf32>
    %986 = arith.select %4, %983, %984 : vector<16x128xi1>, vector<16x128xf32>
    %c162 = arith.constant 162 : index
    %987 = memref.load %arg2[%c162] : memref<288xf32, #tpu.memory_space<smem>>
    %988 = vector.broadcast %987 : f32 to vector<16x128xf32>
    %989 = arith.mulf %988, %985 : vector<16x128xf32>
    %990 = arith.addf %968, %989 : vector<16x128xf32>
    %c198 = arith.constant 198 : index
    %991 = memref.load %arg2[%c198] : memref<288xf32, #tpu.memory_space<smem>>
    %992 = vector.broadcast %991 : f32 to vector<16x128xf32>
    %993 = arith.mulf %992, %985 : vector<16x128xf32>
    %994 = arith.addf %972, %993 : vector<16x128xf32>
    %c234 = arith.constant 234 : index
    %995 = memref.load %arg2[%c234] : memref<288xf32, #tpu.memory_space<smem>>
    %996 = vector.broadcast %995 : f32 to vector<16x128xf32>
    %997 = arith.mulf %996, %985 : vector<16x128xf32>
    %998 = arith.addf %976, %997 : vector<16x128xf32>
    %c270 = arith.constant 270 : index
    %999 = memref.load %arg2[%c270] : memref<288xf32, #tpu.memory_space<smem>>
    %1000 = vector.broadcast %999 : f32 to vector<16x128xf32>
    %1001 = arith.mulf %1000, %985 : vector<16x128xf32>
    %1002 = arith.addf %980, %1001 : vector<16x128xf32>
    %c163 = arith.constant 163 : index
    %1003 = memref.load %arg2[%c163] : memref<288xf32, #tpu.memory_space<smem>>
    %1004 = vector.broadcast %1003 : f32 to vector<16x128xf32>
    %1005 = arith.mulf %1004, %982 : vector<16x128xf32>
    %1006 = arith.addf %990, %1005 : vector<16x128xf32>
    %c199 = arith.constant 199 : index
    %1007 = memref.load %arg2[%c199] : memref<288xf32, #tpu.memory_space<smem>>
    %1008 = vector.broadcast %1007 : f32 to vector<16x128xf32>
    %1009 = arith.mulf %1008, %982 : vector<16x128xf32>
    %1010 = arith.addf %994, %1009 : vector<16x128xf32>
    %c235 = arith.constant 235 : index
    %1011 = memref.load %arg2[%c235] : memref<288xf32, #tpu.memory_space<smem>>
    %1012 = vector.broadcast %1011 : f32 to vector<16x128xf32>
    %1013 = arith.mulf %1012, %982 : vector<16x128xf32>
    %1014 = arith.addf %998, %1013 : vector<16x128xf32>
    %c271 = arith.constant 271 : index
    %1015 = memref.load %arg2[%c271] : memref<288xf32, #tpu.memory_space<smem>>
    %1016 = vector.broadcast %1015 : f32 to vector<16x128xf32>
    %1017 = arith.mulf %1016, %982 : vector<16x128xf32>
    %1018 = arith.addf %1002, %1017 : vector<16x128xf32>
    %c164 = arith.constant 164 : index
    %1019 = memref.load %arg2[%c164] : memref<288xf32, #tpu.memory_space<smem>>
    %1020 = vector.broadcast %1019 : f32 to vector<16x128xf32>
    %1021 = arith.mulf %1020, %986 : vector<16x128xf32>
    %1022 = arith.addf %1006, %1021 : vector<16x128xf32>
    %c200 = arith.constant 200 : index
    %1023 = memref.load %arg2[%c200] : memref<288xf32, #tpu.memory_space<smem>>
    %1024 = vector.broadcast %1023 : f32 to vector<16x128xf32>
    %1025 = arith.mulf %1024, %986 : vector<16x128xf32>
    %1026 = arith.addf %1010, %1025 : vector<16x128xf32>
    %c236 = arith.constant 236 : index
    %1027 = memref.load %arg2[%c236] : memref<288xf32, #tpu.memory_space<smem>>
    %1028 = vector.broadcast %1027 : f32 to vector<16x128xf32>
    %1029 = arith.mulf %1028, %986 : vector<16x128xf32>
    %1030 = arith.addf %1014, %1029 : vector<16x128xf32>
    %c272 = arith.constant 272 : index
    %1031 = memref.load %arg2[%c272] : memref<288xf32, #tpu.memory_space<smem>>
    %1032 = vector.broadcast %1031 : f32 to vector<16x128xf32>
    %1033 = arith.mulf %1032, %986 : vector<16x128xf32>
    %1034 = arith.addf %1018, %1033 : vector<16x128xf32>
    %c0_148 = arith.constant 0 : index
    %c2_149 = arith.constant 2 : index
    %c0_150 = arith.constant 0 : index
    %c1_151 = arith.constant 1 : index
    %c0_152 = arith.constant 0 : index
    %1035 = vector.load %arg3[%c0_148, %c2_149, %c0_150, %c1_151, %c0_152] : memref<1x4x1x18x128xf32, #tpu.memory_space<vmem>>, vector<1x1x1x16x128xf32>
    %1036 = vector.shape_cast %1035 : vector<1x1x1x16x128xf32> to vector<16x128xf32>
    %c1_i32_153 = arith.constant 1 : i32
    %1037 = tpu.dynamic_rotate %1036 by %c1_i32_153 dim 1 : vector<16x128xf32>, i32 -> vector<16x128xf32>
    %c127_i32_154 = arith.constant 127 : i32
    %1038 = tpu.dynamic_rotate %1036 by %c127_i32_154 dim 1 : vector<16x128xf32>, i32 -> vector<16x128xf32>
    %1039 = arith.select %2, %1038, %1037 : vector<16x128xi1>, vector<16x128xf32>
    %1040 = arith.select %4, %1037, %1038 : vector<16x128xi1>, vector<16x128xf32>
    %c165 = arith.constant 165 : index
    %1041 = memref.load %arg2[%c165] : memref<288xf32, #tpu.memory_space<smem>>
    %1042 = vector.broadcast %1041 : f32 to vector<16x128xf32>
    %1043 = arith.mulf %1042, %1039 : vector<16x128xf32>
    %1044 = arith.addf %1022, %1043 : vector<16x128xf32>
    %c201 = arith.constant 201 : index
    %1045 = memref.load %arg2[%c201] : memref<288xf32, #tpu.memory_space<smem>>
    %1046 = vector.broadcast %1045 : f32 to vector<16x128xf32>
    %1047 = arith.mulf %1046, %1039 : vector<16x128xf32>
    %1048 = arith.addf %1026, %1047 : vector<16x128xf32>
    %c237 = arith.constant 237 : index
    %1049 = memref.load %arg2[%c237] : memref<288xf32, #tpu.memory_space<smem>>
    %1050 = vector.broadcast %1049 : f32 to vector<16x128xf32>
    %1051 = arith.mulf %1050, %1039 : vector<16x128xf32>
    %1052 = arith.addf %1030, %1051 : vector<16x128xf32>
    %c273 = arith.constant 273 : index
    %1053 = memref.load %arg2[%c273] : memref<288xf32, #tpu.memory_space<smem>>
    %1054 = vector.broadcast %1053 : f32 to vector<16x128xf32>
    %1055 = arith.mulf %1054, %1039 : vector<16x128xf32>
    %1056 = arith.addf %1034, %1055 : vector<16x128xf32>
    %c166 = arith.constant 166 : index
    %1057 = memref.load %arg2[%c166] : memref<288xf32, #tpu.memory_space<smem>>
    %1058 = vector.broadcast %1057 : f32 to vector<16x128xf32>
    %1059 = arith.mulf %1058, %1036 : vector<16x128xf32>
    %1060 = arith.addf %1044, %1059 : vector<16x128xf32>
    %c202 = arith.constant 202 : index
    %1061 = memref.load %arg2[%c202] : memref<288xf32, #tpu.memory_space<smem>>
    %1062 = vector.broadcast %1061 : f32 to vector<16x128xf32>
    %1063 = arith.mulf %1062, %1036 : vector<16x128xf32>
    %1064 = arith.addf %1048, %1063 : vector<16x128xf32>
    %c238 = arith.constant 238 : index
    %1065 = memref.load %arg2[%c238] : memref<288xf32, #tpu.memory_space<smem>>
    %1066 = vector.broadcast %1065 : f32 to vector<16x128xf32>
    %1067 = arith.mulf %1066, %1036 : vector<16x128xf32>
    %1068 = arith.addf %1052, %1067 : vector<16x128xf32>
    %c274 = arith.constant 274 : index
    %1069 = memref.load %arg2[%c274] : memref<288xf32, #tpu.memory_space<smem>>
    %1070 = vector.broadcast %1069 : f32 to vector<16x128xf32>
    %1071 = arith.mulf %1070, %1036 : vector<16x128xf32>
    %1072 = arith.addf %1056, %1071 : vector<16x128xf32>
    %c167 = arith.constant 167 : index
    %1073 = memref.load %arg2[%c167] : memref<288xf32, #tpu.memory_space<smem>>
    %1074 = vector.broadcast %1073 : f32 to vector<16x128xf32>
    %1075 = arith.mulf %1074, %1040 : vector<16x128xf32>
    %1076 = arith.addf %1060, %1075 : vector<16x128xf32>
    %c203 = arith.constant 203 : index
    %1077 = memref.load %arg2[%c203] : memref<288xf32, #tpu.memory_space<smem>>
    %1078 = vector.broadcast %1077 : f32 to vector<16x128xf32>
    %1079 = arith.mulf %1078, %1040 : vector<16x128xf32>
    %1080 = arith.addf %1064, %1079 : vector<16x128xf32>
    %c239 = arith.constant 239 : index
    %1081 = memref.load %arg2[%c239] : memref<288xf32, #tpu.memory_space<smem>>
    %1082 = vector.broadcast %1081 : f32 to vector<16x128xf32>
    %1083 = arith.mulf %1082, %1040 : vector<16x128xf32>
    %1084 = arith.addf %1068, %1083 : vector<16x128xf32>
    %c275 = arith.constant 275 : index
    %1085 = memref.load %arg2[%c275] : memref<288xf32, #tpu.memory_space<smem>>
    %1086 = vector.broadcast %1085 : f32 to vector<16x128xf32>
    %1087 = arith.mulf %1086, %1040 : vector<16x128xf32>
    %1088 = arith.addf %1072, %1087 : vector<16x128xf32>
    %c0_155 = arith.constant 0 : index
    %c2_156 = arith.constant 2 : index
    %c0_157 = arith.constant 0 : index
    %c2_158 = arith.constant 2 : index
    %c0_159 = arith.constant 0 : index
    %1089 = vector.load %arg3[%c0_155, %c2_156, %c0_157, %c2_158, %c0_159] : memref<1x4x1x18x128xf32, #tpu.memory_space<vmem>>, vector<1x1x1x16x128xf32>
    %1090 = vector.shape_cast %1089 : vector<1x1x1x16x128xf32> to vector<16x128xf32>
    %c1_i32_160 = arith.constant 1 : i32
    %1091 = tpu.dynamic_rotate %1090 by %c1_i32_160 dim 1 : vector<16x128xf32>, i32 -> vector<16x128xf32>
    %c127_i32_161 = arith.constant 127 : i32
    %1092 = tpu.dynamic_rotate %1090 by %c127_i32_161 dim 1 : vector<16x128xf32>, i32 -> vector<16x128xf32>
    %1093 = arith.select %2, %1092, %1091 : vector<16x128xi1>, vector<16x128xf32>
    %1094 = arith.select %4, %1091, %1092 : vector<16x128xi1>, vector<16x128xf32>
    %c168 = arith.constant 168 : index
    %1095 = memref.load %arg2[%c168] : memref<288xf32, #tpu.memory_space<smem>>
    %1096 = vector.broadcast %1095 : f32 to vector<16x128xf32>
    %1097 = arith.mulf %1096, %1093 : vector<16x128xf32>
    %1098 = arith.addf %1076, %1097 : vector<16x128xf32>
    %c204 = arith.constant 204 : index
    %1099 = memref.load %arg2[%c204] : memref<288xf32, #tpu.memory_space<smem>>
    %1100 = vector.broadcast %1099 : f32 to vector<16x128xf32>
    %1101 = arith.mulf %1100, %1093 : vector<16x128xf32>
    %1102 = arith.addf %1080, %1101 : vector<16x128xf32>
    %c240 = arith.constant 240 : index
    %1103 = memref.load %arg2[%c240] : memref<288xf32, #tpu.memory_space<smem>>
    %1104 = vector.broadcast %1103 : f32 to vector<16x128xf32>
    %1105 = arith.mulf %1104, %1093 : vector<16x128xf32>
    %1106 = arith.addf %1084, %1105 : vector<16x128xf32>
    %c276 = arith.constant 276 : index
    %1107 = memref.load %arg2[%c276] : memref<288xf32, #tpu.memory_space<smem>>
    %1108 = vector.broadcast %1107 : f32 to vector<16x128xf32>
    %1109 = arith.mulf %1108, %1093 : vector<16x128xf32>
    %1110 = arith.addf %1088, %1109 : vector<16x128xf32>
    %c169 = arith.constant 169 : index
    %1111 = memref.load %arg2[%c169] : memref<288xf32, #tpu.memory_space<smem>>
    %1112 = vector.broadcast %1111 : f32 to vector<16x128xf32>
    %1113 = arith.mulf %1112, %1090 : vector<16x128xf32>
    %1114 = arith.addf %1098, %1113 : vector<16x128xf32>
    %c205 = arith.constant 205 : index
    %1115 = memref.load %arg2[%c205] : memref<288xf32, #tpu.memory_space<smem>>
    %1116 = vector.broadcast %1115 : f32 to vector<16x128xf32>
    %1117 = arith.mulf %1116, %1090 : vector<16x128xf32>
    %1118 = arith.addf %1102, %1117 : vector<16x128xf32>
    %c241 = arith.constant 241 : index
    %1119 = memref.load %arg2[%c241] : memref<288xf32, #tpu.memory_space<smem>>
    %1120 = vector.broadcast %1119 : f32 to vector<16x128xf32>
    %1121 = arith.mulf %1120, %1090 : vector<16x128xf32>
    %1122 = arith.addf %1106, %1121 : vector<16x128xf32>
    %c277 = arith.constant 277 : index
    %1123 = memref.load %arg2[%c277] : memref<288xf32, #tpu.memory_space<smem>>
    %1124 = vector.broadcast %1123 : f32 to vector<16x128xf32>
    %1125 = arith.mulf %1124, %1090 : vector<16x128xf32>
    %1126 = arith.addf %1110, %1125 : vector<16x128xf32>
    %c170 = arith.constant 170 : index
    %1127 = memref.load %arg2[%c170] : memref<288xf32, #tpu.memory_space<smem>>
    %1128 = vector.broadcast %1127 : f32 to vector<16x128xf32>
    %1129 = arith.mulf %1128, %1094 : vector<16x128xf32>
    %1130 = arith.addf %1114, %1129 : vector<16x128xf32>
    %c206 = arith.constant 206 : index
    %1131 = memref.load %arg2[%c206] : memref<288xf32, #tpu.memory_space<smem>>
    %1132 = vector.broadcast %1131 : f32 to vector<16x128xf32>
    %1133 = arith.mulf %1132, %1094 : vector<16x128xf32>
    %1134 = arith.addf %1118, %1133 : vector<16x128xf32>
    %c242 = arith.constant 242 : index
    %1135 = memref.load %arg2[%c242] : memref<288xf32, #tpu.memory_space<smem>>
    %1136 = vector.broadcast %1135 : f32 to vector<16x128xf32>
    %1137 = arith.mulf %1136, %1094 : vector<16x128xf32>
    %1138 = arith.addf %1122, %1137 : vector<16x128xf32>
    %c278 = arith.constant 278 : index
    %1139 = memref.load %arg2[%c278] : memref<288xf32, #tpu.memory_space<smem>>
    %1140 = vector.broadcast %1139 : f32 to vector<16x128xf32>
    %1141 = arith.mulf %1140, %1094 : vector<16x128xf32>
    %1142 = arith.addf %1126, %1141 : vector<16x128xf32>
    %c0_162 = arith.constant 0 : index
    %c3_163 = arith.constant 3 : index
    %c0_164 = arith.constant 0 : index
    %c0_165 = arith.constant 0 : index
    %c0_166 = arith.constant 0 : index
    %1143 = vector.load %arg3[%c0_162, %c3_163, %c0_164, %c0_165, %c0_166] : memref<1x4x1x18x128xf32, #tpu.memory_space<vmem>>, vector<1x1x1x16x128xf32>
    %1144 = vector.shape_cast %1143 : vector<1x1x1x16x128xf32> to vector<16x128xf32>
    %c1_i32_167 = arith.constant 1 : i32
    %1145 = tpu.dynamic_rotate %1144 by %c1_i32_167 dim 1 : vector<16x128xf32>, i32 -> vector<16x128xf32>
    %c127_i32_168 = arith.constant 127 : i32
    %1146 = tpu.dynamic_rotate %1144 by %c127_i32_168 dim 1 : vector<16x128xf32>, i32 -> vector<16x128xf32>
    %1147 = arith.select %2, %1146, %1145 : vector<16x128xi1>, vector<16x128xf32>
    %1148 = arith.select %4, %1145, %1146 : vector<16x128xi1>, vector<16x128xf32>
    %c171 = arith.constant 171 : index
    %1149 = memref.load %arg2[%c171] : memref<288xf32, #tpu.memory_space<smem>>
    %1150 = vector.broadcast %1149 : f32 to vector<16x128xf32>
    %1151 = arith.mulf %1150, %1147 : vector<16x128xf32>
    %1152 = arith.addf %1130, %1151 : vector<16x128xf32>
    %c207 = arith.constant 207 : index
    %1153 = memref.load %arg2[%c207] : memref<288xf32, #tpu.memory_space<smem>>
    %1154 = vector.broadcast %1153 : f32 to vector<16x128xf32>
    %1155 = arith.mulf %1154, %1147 : vector<16x128xf32>
    %1156 = arith.addf %1134, %1155 : vector<16x128xf32>
    %c243 = arith.constant 243 : index
    %1157 = memref.load %arg2[%c243] : memref<288xf32, #tpu.memory_space<smem>>
    %1158 = vector.broadcast %1157 : f32 to vector<16x128xf32>
    %1159 = arith.mulf %1158, %1147 : vector<16x128xf32>
    %1160 = arith.addf %1138, %1159 : vector<16x128xf32>
    %c279 = arith.constant 279 : index
    %1161 = memref.load %arg2[%c279] : memref<288xf32, #tpu.memory_space<smem>>
    %1162 = vector.broadcast %1161 : f32 to vector<16x128xf32>
    %1163 = arith.mulf %1162, %1147 : vector<16x128xf32>
    %1164 = arith.addf %1142, %1163 : vector<16x128xf32>
    %c172 = arith.constant 172 : index
    %1165 = memref.load %arg2[%c172] : memref<288xf32, #tpu.memory_space<smem>>
    %1166 = vector.broadcast %1165 : f32 to vector<16x128xf32>
    %1167 = arith.mulf %1166, %1144 : vector<16x128xf32>
    %1168 = arith.addf %1152, %1167 : vector<16x128xf32>
    %c208 = arith.constant 208 : index
    %1169 = memref.load %arg2[%c208] : memref<288xf32, #tpu.memory_space<smem>>
    %1170 = vector.broadcast %1169 : f32 to vector<16x128xf32>
    %1171 = arith.mulf %1170, %1144 : vector<16x128xf32>
    %1172 = arith.addf %1156, %1171 : vector<16x128xf32>
    %c244 = arith.constant 244 : index
    %1173 = memref.load %arg2[%c244] : memref<288xf32, #tpu.memory_space<smem>>
    %1174 = vector.broadcast %1173 : f32 to vector<16x128xf32>
    %1175 = arith.mulf %1174, %1144 : vector<16x128xf32>
    %1176 = arith.addf %1160, %1175 : vector<16x128xf32>
    %c280 = arith.constant 280 : index
    %1177 = memref.load %arg2[%c280] : memref<288xf32, #tpu.memory_space<smem>>
    %1178 = vector.broadcast %1177 : f32 to vector<16x128xf32>
    %1179 = arith.mulf %1178, %1144 : vector<16x128xf32>
    %1180 = arith.addf %1164, %1179 : vector<16x128xf32>
    %c173 = arith.constant 173 : index
    %1181 = memref.load %arg2[%c173] : memref<288xf32, #tpu.memory_space<smem>>
    %1182 = vector.broadcast %1181 : f32 to vector<16x128xf32>
    %1183 = arith.mulf %1182, %1148 : vector<16x128xf32>
    %1184 = arith.addf %1168, %1183 : vector<16x128xf32>
    %c209 = arith.constant 209 : index
    %1185 = memref.load %arg2[%c209] : memref<288xf32, #tpu.memory_space<smem>>
    %1186 = vector.broadcast %1185 : f32 to vector<16x128xf32>
    %1187 = arith.mulf %1186, %1148 : vector<16x128xf32>
    %1188 = arith.addf %1172, %1187 : vector<16x128xf32>
    %c245 = arith.constant 245 : index
    %1189 = memref.load %arg2[%c245] : memref<288xf32, #tpu.memory_space<smem>>
    %1190 = vector.broadcast %1189 : f32 to vector<16x128xf32>
    %1191 = arith.mulf %1190, %1148 : vector<16x128xf32>
    %1192 = arith.addf %1176, %1191 : vector<16x128xf32>
    %c281 = arith.constant 281 : index
    %1193 = memref.load %arg2[%c281] : memref<288xf32, #tpu.memory_space<smem>>
    %1194 = vector.broadcast %1193 : f32 to vector<16x128xf32>
    %1195 = arith.mulf %1194, %1148 : vector<16x128xf32>
    %1196 = arith.addf %1180, %1195 : vector<16x128xf32>
    %c0_169 = arith.constant 0 : index
    %c3_170 = arith.constant 3 : index
    %c0_171 = arith.constant 0 : index
    %c1_172 = arith.constant 1 : index
    %c0_173 = arith.constant 0 : index
    %1197 = vector.load %arg3[%c0_169, %c3_170, %c0_171, %c1_172, %c0_173] : memref<1x4x1x18x128xf32, #tpu.memory_space<vmem>>, vector<1x1x1x16x128xf32>
    %1198 = vector.shape_cast %1197 : vector<1x1x1x16x128xf32> to vector<16x128xf32>
    %c1_i32_174 = arith.constant 1 : i32
    %1199 = tpu.dynamic_rotate %1198 by %c1_i32_174 dim 1 : vector<16x128xf32>, i32 -> vector<16x128xf32>
    %c127_i32_175 = arith.constant 127 : i32
    %1200 = tpu.dynamic_rotate %1198 by %c127_i32_175 dim 1 : vector<16x128xf32>, i32 -> vector<16x128xf32>
    %1201 = arith.select %2, %1200, %1199 : vector<16x128xi1>, vector<16x128xf32>
    %1202 = arith.select %4, %1199, %1200 : vector<16x128xi1>, vector<16x128xf32>
    %c174 = arith.constant 174 : index
    %1203 = memref.load %arg2[%c174] : memref<288xf32, #tpu.memory_space<smem>>
    %1204 = vector.broadcast %1203 : f32 to vector<16x128xf32>
    %1205 = arith.mulf %1204, %1201 : vector<16x128xf32>
    %1206 = arith.addf %1184, %1205 : vector<16x128xf32>
    %c210 = arith.constant 210 : index
    %1207 = memref.load %arg2[%c210] : memref<288xf32, #tpu.memory_space<smem>>
    %1208 = vector.broadcast %1207 : f32 to vector<16x128xf32>
    %1209 = arith.mulf %1208, %1201 : vector<16x128xf32>
    %1210 = arith.addf %1188, %1209 : vector<16x128xf32>
    %c246 = arith.constant 246 : index
    %1211 = memref.load %arg2[%c246] : memref<288xf32, #tpu.memory_space<smem>>
    %1212 = vector.broadcast %1211 : f32 to vector<16x128xf32>
    %1213 = arith.mulf %1212, %1201 : vector<16x128xf32>
    %1214 = arith.addf %1192, %1213 : vector<16x128xf32>
    %c282 = arith.constant 282 : index
    %1215 = memref.load %arg2[%c282] : memref<288xf32, #tpu.memory_space<smem>>
    %1216 = vector.broadcast %1215 : f32 to vector<16x128xf32>
    %1217 = arith.mulf %1216, %1201 : vector<16x128xf32>
    %1218 = arith.addf %1196, %1217 : vector<16x128xf32>
    %c175 = arith.constant 175 : index
    %1219 = memref.load %arg2[%c175] : memref<288xf32, #tpu.memory_space<smem>>
    %1220 = vector.broadcast %1219 : f32 to vector<16x128xf32>
    %1221 = arith.mulf %1220, %1198 : vector<16x128xf32>
    %1222 = arith.addf %1206, %1221 : vector<16x128xf32>
    %c211 = arith.constant 211 : index
    %1223 = memref.load %arg2[%c211] : memref<288xf32, #tpu.memory_space<smem>>
    %1224 = vector.broadcast %1223 : f32 to vector<16x128xf32>
    %1225 = arith.mulf %1224, %1198 : vector<16x128xf32>
    %1226 = arith.addf %1210, %1225 : vector<16x128xf32>
    %c247 = arith.constant 247 : index
    %1227 = memref.load %arg2[%c247] : memref<288xf32, #tpu.memory_space<smem>>
    %1228 = vector.broadcast %1227 : f32 to vector<16x128xf32>
    %1229 = arith.mulf %1228, %1198 : vector<16x128xf32>
    %1230 = arith.addf %1214, %1229 : vector<16x128xf32>
    %c283 = arith.constant 283 : index
    %1231 = memref.load %arg2[%c283] : memref<288xf32, #tpu.memory_space<smem>>
    %1232 = vector.broadcast %1231 : f32 to vector<16x128xf32>
    %1233 = arith.mulf %1232, %1198 : vector<16x128xf32>
    %1234 = arith.addf %1218, %1233 : vector<16x128xf32>
    %c176 = arith.constant 176 : index
    %1235 = memref.load %arg2[%c176] : memref<288xf32, #tpu.memory_space<smem>>
    %1236 = vector.broadcast %1235 : f32 to vector<16x128xf32>
    %1237 = arith.mulf %1236, %1202 : vector<16x128xf32>
    %1238 = arith.addf %1222, %1237 : vector<16x128xf32>
    %c212 = arith.constant 212 : index
    %1239 = memref.load %arg2[%c212] : memref<288xf32, #tpu.memory_space<smem>>
    %1240 = vector.broadcast %1239 : f32 to vector<16x128xf32>
    %1241 = arith.mulf %1240, %1202 : vector<16x128xf32>
    %1242 = arith.addf %1226, %1241 : vector<16x128xf32>
    %c248 = arith.constant 248 : index
    %1243 = memref.load %arg2[%c248] : memref<288xf32, #tpu.memory_space<smem>>
    %1244 = vector.broadcast %1243 : f32 to vector<16x128xf32>
    %1245 = arith.mulf %1244, %1202 : vector<16x128xf32>
    %1246 = arith.addf %1230, %1245 : vector<16x128xf32>
    %c284 = arith.constant 284 : index
    %1247 = memref.load %arg2[%c284] : memref<288xf32, #tpu.memory_space<smem>>
    %1248 = vector.broadcast %1247 : f32 to vector<16x128xf32>
    %1249 = arith.mulf %1248, %1202 : vector<16x128xf32>
    %1250 = arith.addf %1234, %1249 : vector<16x128xf32>
    %c0_176 = arith.constant 0 : index
    %c3_177 = arith.constant 3 : index
    %c0_178 = arith.constant 0 : index
    %c2_179 = arith.constant 2 : index
    %c0_180 = arith.constant 0 : index
    %1251 = vector.load %arg3[%c0_176, %c3_177, %c0_178, %c2_179, %c0_180] : memref<1x4x1x18x128xf32, #tpu.memory_space<vmem>>, vector<1x1x1x16x128xf32>
    %1252 = vector.shape_cast %1251 : vector<1x1x1x16x128xf32> to vector<16x128xf32>
    %c1_i32_181 = arith.constant 1 : i32
    %1253 = tpu.dynamic_rotate %1252 by %c1_i32_181 dim 1 : vector<16x128xf32>, i32 -> vector<16x128xf32>
    %c127_i32_182 = arith.constant 127 : i32
    %1254 = tpu.dynamic_rotate %1252 by %c127_i32_182 dim 1 : vector<16x128xf32>, i32 -> vector<16x128xf32>
    %1255 = arith.select %2, %1254, %1253 : vector<16x128xi1>, vector<16x128xf32>
    %1256 = arith.select %4, %1253, %1254 : vector<16x128xi1>, vector<16x128xf32>
    %c177 = arith.constant 177 : index
    %1257 = memref.load %arg2[%c177] : memref<288xf32, #tpu.memory_space<smem>>
    %1258 = vector.broadcast %1257 : f32 to vector<16x128xf32>
    %1259 = arith.mulf %1258, %1255 : vector<16x128xf32>
    %1260 = arith.addf %1238, %1259 : vector<16x128xf32>
    %c213 = arith.constant 213 : index
    %1261 = memref.load %arg2[%c213] : memref<288xf32, #tpu.memory_space<smem>>
    %1262 = vector.broadcast %1261 : f32 to vector<16x128xf32>
    %1263 = arith.mulf %1262, %1255 : vector<16x128xf32>
    %1264 = arith.addf %1242, %1263 : vector<16x128xf32>
    %c249 = arith.constant 249 : index
    %1265 = memref.load %arg2[%c249] : memref<288xf32, #tpu.memory_space<smem>>
    %1266 = vector.broadcast %1265 : f32 to vector<16x128xf32>
    %1267 = arith.mulf %1266, %1255 : vector<16x128xf32>
    %1268 = arith.addf %1246, %1267 : vector<16x128xf32>
    %c285 = arith.constant 285 : index
    %1269 = memref.load %arg2[%c285] : memref<288xf32, #tpu.memory_space<smem>>
    %1270 = vector.broadcast %1269 : f32 to vector<16x128xf32>
    %1271 = arith.mulf %1270, %1255 : vector<16x128xf32>
    %1272 = arith.addf %1250, %1271 : vector<16x128xf32>
    %c178 = arith.constant 178 : index
    %1273 = memref.load %arg2[%c178] : memref<288xf32, #tpu.memory_space<smem>>
    %1274 = vector.broadcast %1273 : f32 to vector<16x128xf32>
    %1275 = arith.mulf %1274, %1252 : vector<16x128xf32>
    %1276 = arith.addf %1260, %1275 : vector<16x128xf32>
    %c214 = arith.constant 214 : index
    %1277 = memref.load %arg2[%c214] : memref<288xf32, #tpu.memory_space<smem>>
    %1278 = vector.broadcast %1277 : f32 to vector<16x128xf32>
    %1279 = arith.mulf %1278, %1252 : vector<16x128xf32>
    %1280 = arith.addf %1264, %1279 : vector<16x128xf32>
    %c250 = arith.constant 250 : index
    %1281 = memref.load %arg2[%c250] : memref<288xf32, #tpu.memory_space<smem>>
    %1282 = vector.broadcast %1281 : f32 to vector<16x128xf32>
    %1283 = arith.mulf %1282, %1252 : vector<16x128xf32>
    %1284 = arith.addf %1268, %1283 : vector<16x128xf32>
    %c286 = arith.constant 286 : index
    %1285 = memref.load %arg2[%c286] : memref<288xf32, #tpu.memory_space<smem>>
    %1286 = vector.broadcast %1285 : f32 to vector<16x128xf32>
    %1287 = arith.mulf %1286, %1252 : vector<16x128xf32>
    %1288 = arith.addf %1272, %1287 : vector<16x128xf32>
    %c179 = arith.constant 179 : index
    %1289 = memref.load %arg2[%c179] : memref<288xf32, #tpu.memory_space<smem>>
    %1290 = vector.broadcast %1289 : f32 to vector<16x128xf32>
    %1291 = arith.mulf %1290, %1256 : vector<16x128xf32>
    %1292 = arith.addf %1276, %1291 : vector<16x128xf32>
    %c215 = arith.constant 215 : index
    %1293 = memref.load %arg2[%c215] : memref<288xf32, #tpu.memory_space<smem>>
    %1294 = vector.broadcast %1293 : f32 to vector<16x128xf32>
    %1295 = arith.mulf %1294, %1256 : vector<16x128xf32>
    %1296 = arith.addf %1280, %1295 : vector<16x128xf32>
    %c251 = arith.constant 251 : index
    %1297 = memref.load %arg2[%c251] : memref<288xf32, #tpu.memory_space<smem>>
    %1298 = vector.broadcast %1297 : f32 to vector<16x128xf32>
    %1299 = arith.mulf %1298, %1256 : vector<16x128xf32>
    %1300 = arith.addf %1284, %1299 : vector<16x128xf32>
    %c287 = arith.constant 287 : index
    %1301 = memref.load %arg2[%c287] : memref<288xf32, #tpu.memory_space<smem>>
    %1302 = vector.broadcast %1301 : f32 to vector<16x128xf32>
    %1303 = arith.mulf %1302, %1256 : vector<16x128xf32>
    %1304 = arith.addf %1288, %1303 : vector<16x128xf32>
    %c0_183 = arith.constant 0 : index
    %c4_184 = arith.constant 4 : index
    %c0_185 = arith.constant 0 : index
    %c0_186 = arith.constant 0 : index
    %1305 = vector.load %arg4[%c0_183, %c4_184, %c0_185, %c0_186] : memref<1x8x16x128xf32, #tpu.memory_space<vmem>>, vector<1x1x16x128xf32>
    %1306 = vector.shape_cast %1305 : vector<1x1x16x128xf32> to vector<16x128xf32>
    %1307 = vector.shape_cast %1292 : vector<16x128xf32> to vector<1x1x16x128xf32>
    tpu.vector_store %arg4[%c0_183, %c4_184, %c0_185, %c0_186], %1307 {strides = array<i32>} : memref<1x8x16x128xf32, #tpu.memory_space<vmem>>, vector<1x1x16x128xf32>,
    %c0_187 = arith.constant 0 : index
    %c5_188 = arith.constant 5 : index
    %c0_189 = arith.constant 0 : index
    %c0_190 = arith.constant 0 : index
    %1308 = vector.load %arg4[%c0_187, %c5_188, %c0_189, %c0_190] : memref<1x8x16x128xf32, #tpu.memory_space<vmem>>, vector<1x1x16x128xf32>
    %1309 = vector.shape_cast %1308 : vector<1x1x16x128xf32> to vector<16x128xf32>
    %1310 = vector.shape_cast %1296 : vector<16x128xf32> to vector<1x1x16x128xf32>
    tpu.vector_store %arg4[%c0_187, %c5_188, %c0_189, %c0_190], %1310 {strides = array<i32>} : memref<1x8x16x128xf32, #tpu.memory_space<vmem>>, vector<1x1x16x128xf32>,
    %c0_191 = arith.constant 0 : index
    %c6_192 = arith.constant 6 : index
    %c0_193 = arith.constant 0 : index
    %c0_194 = arith.constant 0 : index
    %1311 = vector.load %arg4[%c0_191, %c6_192, %c0_193, %c0_194] : memref<1x8x16x128xf32, #tpu.memory_space<vmem>>, vector<1x1x16x128xf32>
    %1312 = vector.shape_cast %1311 : vector<1x1x16x128xf32> to vector<16x128xf32>
    %1313 = vector.shape_cast %1300 : vector<16x128xf32> to vector<1x1x16x128xf32>
    tpu.vector_store %arg4[%c0_191, %c6_192, %c0_193, %c0_194], %1313 {strides = array<i32>} : memref<1x8x16x128xf32, #tpu.memory_space<vmem>>, vector<1x1x16x128xf32>,
    %c0_195 = arith.constant 0 : index
    %c7_196 = arith.constant 7 : index
    %c0_197 = arith.constant 0 : index
    %c0_198 = arith.constant 0 : index
    %1314 = vector.load %arg4[%c0_195, %c7_196, %c0_197, %c0_198] : memref<1x8x16x128xf32, #tpu.memory_space<vmem>>, vector<1x1x16x128xf32>
    %1315 = vector.shape_cast %1314 : vector<1x1x16x128xf32> to vector<16x128xf32>
    %1316 = vector.shape_cast %1304 : vector<16x128xf32> to vector<1x1x16x128xf32>
    tpu.vector_store %arg4[%c0_195, %c7_196, %c0_197, %c0_198], %1316 {strides = array<i32>} : memref<1x8x16x128xf32, #tpu.memory_space<vmem>>, vector<1x1x16x128xf32>,
    return
  }
  func.func @transform_0(%arg0: i32, %arg1: i32) -> i32 {
    %c0_i32 = arith.constant 0 : i32
    %c0_i32_0 = arith.constant 0 : i32
    return %c0_i32 : i32
  }
  func.func @transform_1(%arg0: i32, %arg1: i32) -> (i32, i32, i32, i32, i32) {
    %c0_i32 = arith.constant 0 : i32
    %c0_i32_0 = arith.constant 0 : i32
    %c0_i32_1 = arith.constant 0 : i32
    %c0_i32_2 = arith.constant 0 : i32
    return %arg0, %c0_i32, %arg1, %c0_i32_0, %c0_i32_1 : i32, i32, i32, i32, i32
  }
  func.func @transform_2(%arg0: i32, %arg1: i32) -> (i32, i32, i32, i32) {
    %c0_i32 = arith.constant 0 : i32
    %c0_i32_0 = arith.constant 0 : i32
    %c0_i32_1 = arith.constant 0 : i32
    return %arg0, %c0_i32, %arg1, %c0_i32_0 : i32, i32, i32, i32
  }
}

</mosaic_0001>

<llo_original>
// kernel: tpu_custom_call.1
$region0: #{tpu_custom_call.1}
  #allocation0 [shape = 'u32[]', space=smem, size = 0x4, offset = 0x4, fixed_abs, tag = 'smem constant byte address 0x4 - core index']
  #allocation1 [shape = 'u32[72,128]{1,0:T(1,128)}', space=vmem, size = 0x9000, scoped, tag = 'internal scratch']
  %s0 = inlined_call_operand.vmem [shape: f32[288], index: 0, kind: input, shape index: {}]
  %s1 = inlined_call_operand.vmem [shape: f32[2,4,1,18,128], index: 1, kind: input, shape index: {}]
  %s2 = inlined_call_operand.hbm [shape: f32[2,8,16,128], index: 2, kind: output, shape index: {}]
  %s3 = sld [smem:[#allocation0]]
  $region45: #{tpu_custom_call.1} parent=0
    _
  %s5 = ssub.s32 1, %s3
  %s6 = scalar_select 0, %s5, %s3
  $region1: #{tpu_custom_call.1} parent=0
    #allocation2 [shape = 'u8[1536]{0}', space=smem, size = 0x600, scoped, tag = 'input window, operand 0, single buffered']
    #allocation3 [shape = 's32[2]{0}', space=sflag, size = 0x8, scoped, tag = 'scoped memory for tpu_custom_call.1']
    #allocation4 [shape = 's32[2]{0}', space=sflag, size = 0x8, scoped, tag = 'scoped memory for tpu_custom_call.1']
    #allocation5 [shape = 'u8[131072]{0}', space=vmem, size = 0x20000, scoped, tag = 'output window, operand 0']
    %7 = vsyncpa [#allocation4], 0
    %8 = vsyncpa [#allocation3], 0
    %s9 = scalar_lea.sflag [#allocation3], 1
    %10 = vsyncpa %s9, 0
    loop: start=0, step=1, limit=4
    $region2: #{tpu_custom_call.1} parent=1 // loop_pre_header
      _
    $region3: #{tpu_custom_call.1} parent=1 // loop_header
      %s12 = sphi 0, %s16
      %p13 = scmp.ge.s32.totalorder %s12, 4
      %s19 = sphi 0, %s31
      %s20 = sphi 0, %s27
      %s21 = sphi 0, %s19
      %s22 = sphi 0, %s20
      %s23 = sphi 0, %s21
      %s24 = sphi 0, %s22
      %s32 = sphi 0, %s32
      %s34 = sphi 0, %s32
      %s35 = sphi 0, %s34
      %s49 = sphi 0, %s35
      %s57 = sphi 0, %s59
      %s60 = sphi 0, %s57
      %s61 = sphi 0, %s60
      %s77 = sphi 0, %s61
      %s85 = sphi 0, %s87
      %s88 = sphi 0, %s85
      %s89 = sphi 0, %s88
      %s105 = sphi 0, %s89
    $region4: #{tpu_custom_call.1} parent=1 // loop_header_branch
      %15 = sbr.rel (%p13) target = $region8
    $region5: #{tpu_custom_call.1} parent=1 // loop_body
      %s17 = ssub.s32 %s12, 1
      %s18 = ssub.s32 %s12, 2
      %s25 = sadd.s32 1, %s20
      %p26 = scmp.ge.s32.totalorder %s25, 1
      %s27 = scalar_select %p26, 0, %s25
      %s28 = sadd.s32 1, %s19
      %s29 = scalar_select %p26, %s28, %s19
      %p30 = scmp.ge.s32.totalorder %s29, 2
      %s31 = scalar_select %p30, 0, %s29
      %s33 = sadd.s32 %s32, 1
      %p36 = scmp.eq.s32.totalorder %s12, 1
      %p37 = scmp.ne.s32.totalorder %s32, %s34
      %p38 = scmp.eq.s32.totalorder %s12, 0
      %p39 = por %p37, %p38
      %p40 = scmp.ne.s32.totalorder %s32, %s34
      %p41 = scmp.eq.s32.totalorder %s17, 1
      %p42 = por %p40, %p41
      %p43 = scmp.ne.s32.totalorder %s34, %s35
      %p44 = scmp.eq.s32.totalorder %s17, 0
      %p45 = por %p43, %p44
      %p46 = scmp.ne.s32.totalorder %s34, %s35
      %p47 = scmp.eq.s32.totalorder %s18, 1
      %p48 = por %p46, %p47
      %p50 = scmp.ne.s32.totalorder %s35, %s49
      %p51 = scmp.eq.s32.totalorder %s18, 0
      %p52 = por %p50, %p51
      %s53 = ssub.s32 %s19, %s31
      %s54 = ssub.s32 %s20, %s27
      %s55 = sor.u32 %s53, %s54
      %p56 = scmp.eq.s32.totalorder %s55, 0
      %s58 = sadd.s32 %s57, 1
      %s59 = scalar_select %p56, %s57, %s58
      %p62 = pneg %p56
      %p63 = scmp.eq.s32.totalorder %s12, 1
      %p64 = por %p62, %p63
      %p65 = scmp.ne.s32.totalorder %s57, %s60
      %p66 = scmp.eq.s32.totalorder %s12, 0
      %p67 = por %p65, %p66
      %p68 = scmp.ne.s32.totalorder %s57, %s60
      %p69 = scmp.eq.s32.totalorder %s17, 1
      %p70 = por %p68, %p69
      %p71 = scmp.ne.s32.totalorder %s60, %s61
      %p72 = scmp.eq.s32.totalorder %s17, 0
      %p73 = por %p71, %p72
      %p74 = scmp.ne.s32.totalorder %s60, %s61
      %p75 = scmp.eq.s32.totalorder %s18, 1
      %p76 = por %p74, %p75
      %p78 = scmp.ne.s32.totalorder %s61, %s77
      %p79 = scmp.eq.s32.totalorder %s18, 0
      %p80 = por %p78, %p79
      %s81 = ssub.s32 %s19, %s31
      %s82 = ssub.s32 %s20, %s27
      %s83 = sor.u32 %s81, %s82
      %p84 = scmp.eq.s32.totalorder %s83, 0
      %s86 = sadd.s32 %s85, 1
      %s87 = scalar_select %p84, %s85, %s86
      %p90 = pneg %p84
      %p91 = scmp.eq.s32.totalorder %s12, 1
      %p92 = por %p90, %p91
      %p93 = scmp.ne.s32.totalorder %s85, %s88
      %p94 = scmp.eq.s32.totalorder %s12, 0
      %p95 = por %p93, %p94
      %p96 = scmp.ne.s32.totalorder %s85, %s88
      %p97 = scmp.eq.s32.totalorder %s17, 1
      %p98 = por %p96, %p97
      %p99 = scmp.ne.s32.totalorder %s88, %s89
      %p100 = scmp.eq.s32.totalorder %s17, 0
      %p101 = por %p99, %p100
      %p102 = scmp.ne.s32.totalorder %s88, %s89
      %p103 = scmp.eq.s32.totalorder %s18, 1
      %p104 = por %p102, %p103
      %p106 = scmp.ne.s32.totalorder %s89, %s105
      %p107 = scmp.eq.s32.totalorder %s18, 0
      %p108 = por %p106, %p107
      %p109 = scmp.le.s32.totalorder 1, %s12
      %p110 = scmp.lt.s32.totalorder %s12, 3
      %p111 = pnand %p109, %p110
      %p112 = pneg %p111
      // Predicated region
      $region9: #{tpu_custom_call.1} parent=5 // pred_check
        _
      $region10: #{tpu_custom_call.1} parent=5 // pred_check_branch
        %114 = sbr.rel (%p111) target = $region12
      $region11: #{tpu_custom_call.1} parent=5 // pred_region
        %s115 = ssub.s32 %s12, 1
        // Predicated region
        $region13: #{tpu_custom_call.1} parent=11 // pred_check
          %p116 = pneg %p45
        $region14: #{tpu_custom_call.1} parent=11 // pred_check_branch
          %118 = sbr.rel (%p116) target = $region16
        $region15: #{tpu_custom_call.1} parent=11 // pred_region
          %120 = vsyncadd [#allocation4], 0
          %s122 = sshll.u32 %s0, 4
          %s123 = int_to_ptr.vmem [resolvable:$true] %s122
          %125 = dma.vmem_to_smem %s123, 48, [#allocation2], [#allocation4]
        $region16: #{tpu_custom_call.1} parent=11 // pred_fallthru
          _
      $region12: #{tpu_custom_call.1} parent=5 // pred_fallthru
        _
      %p126 = scmp.lt.s32.totalorder %s12, 2
      // Predicated region
      $region17: #{tpu_custom_call.1} parent=5 // pred_check
        %p127 = pneg %p126
      $region18: #{tpu_custom_call.1} parent=5 // pred_check_branch
        %129 = sbr.rel (%p127) target = $region20
      $region19: #{tpu_custom_call.1} parent=5 // pred_region
        // Predicated region
        $region21: #{tpu_custom_call.1} parent=19 // pred_check
          %p130 = pneg %p67
        $region22: #{tpu_custom_call.1} parent=19 // pred_check_branch
          %132 = sbr.rel (%p130) target = $region24
        $region23: #{tpu_custom_call.1} parent=19 // pred_region
          %p133 = scmp.lt.s32.totalorder %s19, 1
          %s134 = scalar_select %p133, %s19, 1
          %p135 = scmp.lt.s32.totalorder %s20, 0
          %s136 = scalar_select %p135, %s20, 0
          %s137 = smul.addr %s136, 3
          %s138 = smul.addr %s134, 12
          %s139 = sadd.s32 %s137, %s138
          %s140 = smul.addr %s139, 8
          %s141 = scalar_lea.vmem %s1, %s140
        $region24: #{tpu_custom_call.1} parent=19 // pred_fallthru
          _
      $region20: #{tpu_custom_call.1} parent=5 // pred_fallthru
        _
      %p142 = scmp.le.s32.totalorder 1, %s12
      %p143 = scmp.lt.s32.totalorder %s12, 3
      %p144 = pnand %p142, %p143
      %p145 = pneg %p144
      // Predicated region
      $region25: #{tpu_custom_call.1} parent=5 // pred_check
        _
      $region26: #{tpu_custom_call.1} parent=5 // pred_check_branch
        %147 = sbr.rel (%p144) target = $region28
      $region27: #{tpu_custom_call.1} parent=5 // pred_region
        %s148 = ssub.s32 %s12, 1
        // Predicated region
        $region29: #{tpu_custom_call.1} parent=27 // pred_check
          %p149 = pneg %p45
        $region30: #{tpu_custom_call.1} parent=27 // pred_check_branch
          %151 = sbr.rel (%p149) target = $region32
        $region31: #{tpu_custom_call.1} parent=27 // pred_region
          %153 = dma.done [#allocation4], 48
        $region32: #{tpu_custom_call.1} parent=27 // pred_fallthru
          _
        %154 = sfence
        %p155 = pneg %p45
        %p156 = pneg %p42
        %p157 = scmp.lt.s32.totalorder %s21, 1
        %s158 = scalar_select %p157, %s21, 1
        %p159 = scmp.lt.s32.totalorder %s22, 0
        %s160 = scalar_select %p159, %s22, 0
        %s161 = smul.addr %s160, 3
        %s162 = smul.addr %s158, 12
        %s163 = sadd.s32 %s161, %s162
        %s164 = smul.addr %s163, 8
        %s165 = scalar_lea.vmem %s1, %s164
        %p166 = pneg %p73
        %p167 = pneg %p70
        %p168 = pneg %p101
        %p169 = pneg %p98
        %s170 = sand.u32 %s88, 1
        %s171 = scalar_lea.sflag [#allocation3], %s170
        %s172 = sand.u32 %s88, 1
        %s173 = smul.addr %s172, 128
        %s174 = scalar_lea.vmem [#allocation5], %s173
        %p175 = scmp.lt.s32.totalorder %s21, 1
        %s176 = scalar_select %p175, %s21, 1
        %p177 = scmp.lt.s32.totalorder %s22, 0
        %s178 = scalar_select %p177, %s22, 0
        %s179 = smul.addr %s178, 3
        %s180 = smul.addr %s176, 12
        %s181 = sadd.s32 %s179, %s180
        %s182 = smul.addr %s181, 8
        %s183 = scalar_lea.vmem %s1, %s182
        %s184 = smul.u32 2, %s22
        %v185 = vlaneseq
        %v186 = vand.u32 %v185, 127
        %vm187 = vcmp.eq.s32.totalorder %v186, 0
        %vm188 = vcmp.eq.s32.totalorder %v186, 127
        %v189 = vld [vmem:[%s183] sm:$0xff]
        %v190 = vld [vmem:[%s183 + $0x8] sm:$0xff]
        %191 = vrot.lane.b32.xlu0 %v189, 1
        %v192 = vpop.permute.xlu0 %191
        %193 = vrot.lane.b32.xlu0 %v190, 1
        %v194 = vpop.permute.xlu0 %193
        %195 = vrot.lane.b32.xlu0 %v189, 127
        %v196 = vpop.permute.xlu0 %195
        %197 = vrot.lane.b32.xlu0 %v190, 127
        %v198 = vpop.permute.xlu0 %197
        %v199 = vsel %vm187, %v196, %v192
        %v200 = vsel %vm187, %v198, %v194
        %v201 = vsel %vm188, %v192, %v196
        %v202 = vsel %vm188, %v194, %v198
        %s203 = sld [smem:[#allocation2]]
        %v204 = vstv %s203
        %v205 = vmul.f32 %v204, %v199
        %v206 = vmul.f32 %v204, %v200
        %s207 = sld [smem:[#allocation2 + $0x24]]
        %v208 = vstv %s207
        %v209 = vmul.f32 %v208, %v199
        %v210 = vmul.f32 %v208, %v200
        %s211 = sld [smem:[#allocation2 + $0x48]]
        %v212 = vstv %s211
        %v213 = vmul.f32 %v212, %v199
        %v214 = vmul.f32 %v212, %v200
        %s215 = sld [smem:[#allocation2 + $0x6c]]
        %v216 = vstv %s215
        %v217 = vmul.f32 %v216, %v199
        %v218 = vmul.f32 %v216, %v200
        %s219 = sld [smem:[#allocation2 + $0x1]]
        %v220 = vstv %s219
        %v221 = vmul.f32 %v220, %v189
        %v222 = vmul.f32 %v220, %v190
        %v223 = vadd.f32 %v205, %v221
        %v224 = vadd.f32 %v206, %v222
        %s225 = sld [smem:[#allocation2 + $0x25]]
        %v226 = vstv %s225
        %v227 = vmul.f32 %v226, %v189
        %v228 = vmul.f32 %v226, %v190
        %v229 = vadd.f32 %v209, %v227
        %v230 = vadd.f32 %v210, %v228
        %s231 = sld [smem:[#allocation2 + $0x49]]
        %v232 = vstv %s231
        %v233 = vmul.f32 %v232, %v189
        %v234 = vmul.f32 %v232, %v190
        %v235 = vadd.f32 %v213, %v233
        %v236 = vadd.f32 %v214, %v234
        %s237 = sld [smem:[#allocation2 + $0x6d]]
        %v238 = vstv %s237
        %v239 = vmul.f32 %v238, %v189
        %v240 = vmul.f32 %v238, %v190
        %v241 = vadd.f32 %v217, %v239
        %v242 = vadd.f32 %v218, %v240
        %s243 = sld [smem:[#allocation2 + $0x2]]
        %v244 = vstv %s243
        %v245 = vmul.f32 %v244, %v201
        %v246 = vmul.f32 %v244, %v202
        %v247 = vadd.f32 %v223, %v245
        %v248 = vadd.f32 %v224, %v246
        %s249 = sld [smem:[#allocation2 + $0x26]]
        %v250 = vstv %s249
        %v251 = vmul.f32 %v250, %v201
        %v252 = vmul.f32 %v250, %v202
        %v253 = vadd.f32 %v229, %v251
        %v254 = vadd.f32 %v230, %v252
        %s255 = sld [smem:[#allocation2 + $0x4a]]
        %v256 = vstv %s255
        %v257 = vmul.f32 %v256, %v201
        %v258 = vmul.f32 %v256, %v202
        %v259 = vadd.f32 %v235, %v257
        %v260 = vadd.f32 %v236, %v258
        %s261 = sld [smem:[#allocation2 + $0x6e]]
        %v262 = vstv %s261
        %v263 = vmul.f32 %v262, %v201
        %v264 = vmul.f32 %v262, %v202
        %v265 = vadd.f32 %v241, %v263
        %v266 = vadd.f32 %v242, %v264
        %v267 = vld [vmem:[%s183 + $0x1] sm:$0xff]
        %v268 = vld [vmem:[%s183 + $0x9] sm:$0xff]
        %269 = vrot.lane.b32.xlu0 %v267, 1
        %v270 = vpop.permute.xlu0 %269
        %271 = vrot.lane.b32.xlu0 %v268, 1
        %v272 = vpop.permute.xlu0 %271
        %273 = vrot.lane.b32.xlu0 %v267, 127
        %v274 = vpop.permute.xlu0 %273
        %275 = vrot.lane.b32.xlu0 %v268, 127
        %v276 = vpop.permute.xlu0 %275
        %v277 = vsel %vm187, %v274, %v270
        %v278 = vsel %vm187, %v276, %v272
        %v279 = vsel %vm188, %v270, %v274
        %v280 = vsel %vm188, %v272, %v276
        %s281 = sld [smem:[#allocation2 + $0x3]]
        %v282 = vstv %s281
        %v283 = vmul.f32 %v282, %v277
        %v284 = vmul.f32 %v282, %v278
        %v285 = vadd.f32 %v247, %v283
        %v286 = vadd.f32 %v248, %v284
        %s287 = sld [smem:[#allocation2 + $0x27]]
        %v288 = vstv %s287
        %v289 = vmul.f32 %v288, %v277
        %v290 = vmul.f32 %v288, %v278
        %v291 = vadd.f32 %v253, %v289
        %v292 = vadd.f32 %v254, %v290
        %s293 = sld [smem:[#allocation2 + $0x4b]]
        %v294 = vstv %s293
        %v295 = vmul.f32 %v294, %v277
        %v296 = vmul.f32 %v294, %v278
        %v297 = vadd.f32 %v259, %v295
        %v298 = vadd.f32 %v260, %v296
        %s299 = sld [smem:[#allocation2 + $0x6f]]
        %v300 = vstv %s299
        %v301 = vmul.f32 %v300, %v277
        %v302 = vmul.f32 %v300, %v278
        %v303 = vadd.f32 %v265, %v301
        %v304 = vadd.f32 %v266, %v302
        %s305 = sld [smem:[#allocation2 + $0x4]]
        %v306 = vstv %s305
        %v307 = vmul.f32 %v306, %v267
        %v308 = vmul.f32 %v306, %v268
        %v309 = vadd.f32 %v285, %v307
        %v310 = vadd.f32 %v286, %v308
        %s311 = sld [smem:[#allocation2 + $0x28]]
        %v312 = vstv %s311
        %v313 = vmul.f32 %v312, %v267
        %v314 = vmul.f32 %v312, %v268
        %v315 = vadd.f32 %v291, %v313
        %v316 = vadd.f32 %v292, %v314
        %s317 = sld [smem:[#allocation2 + $0x4c]]
        %v318 = vstv %s317
        %v319 = vmul.f32 %v318, %v267
        %v320 = vmul.f32 %v318, %v268
        %v321 = vadd.f32 %v297, %v319
        %v322 = vadd.f32 %v298, %v320
        %s323 = sld [smem:[#allocation2 + $0x70]]
        %v324 = vstv %s323
        %v325 = vmul.f32 %v324, %v267
        %v326 = vmul.f32 %v324, %v268
        %v327 = vadd.f32 %v303, %v325
        %v328 = vadd.f32 %v304, %v326
        %s329 = sld [smem:[#allocation2 + $0x5]]
        %v330 = vstv %s329
        %v331 = vmul.f32 %v330, %v279
        %v332 = vmul.f32 %v330, %v280
        %v333 = vadd.f32 %v309, %v331
        %v334 = vadd.f32 %v310, %v332
        %s335 = sld [smem:[#allocation2 + $0x29]]
        %v336 = vstv %s335
        %v337 = vmul.f32 %v336, %v279
        %v338 = vmul.f32 %v336, %v280
        %v339 = vadd.f32 %v315, %v337
        %v340 = vadd.f32 %v316, %v338
        %s341 = sld [smem:[#allocation2 + $0x4d]]
        %v342 = vstv %s341
        %v343 = vmul.f32 %v342, %v279
        %v344 = vmul.f32 %v342, %v280
        %v345 = vadd.f32 %v321, %v343
        %v346 = vadd.f32 %v322, %v344
        %s347 = sld [smem:[#allocation2 + $0x71]]
        %v348 = vstv %s347
        %v349 = vmul.f32 %v348, %v279
        %v350 = vmul.f32 %v348, %v280
        %v351 = vadd.f32 %v327, %v349
        %v352 = vadd.f32 %v328, %v350
        %v353 = vld [vmem:[%s183 + $0x2] sm:$0xff]
        %v354 = vld [vmem:[%s183 + $0xa] sm:$0xff]
        %355 = vrot.lane.b32.xlu0 %v353, 1
        %v356 = vpop.permute.xlu0 %355
        %357 = vrot.lane.b32.xlu0 %v354, 1
        %v358 = vpop.permute.xlu0 %357
        %359 = vrot.lane.b32.xlu0 %v353, 127
        %v360 = vpop.permute.xlu0 %359
        %361 = vrot.lane.b32.xlu0 %v354, 127
        %v362 = vpop.permute.xlu0 %361
        %v363 = vsel %vm187, %v360, %v356
        %v364 = vsel %vm187, %v362, %v358
        %v365 = vsel %vm188, %v356, %v360
        %v366 = vsel %vm188, %v358, %v362
        %s367 = sld [smem:[#allocation2 + $0x6]]
        %v368 = vstv %s367
        %v369 = vmul.f32 %v368, %v363
        %v370 = vmul.f32 %v368, %v364
        %v371 = vadd.f32 %v333, %v369
        %v372 = vadd.f32 %v334, %v370
        %s373 = sld [smem:[#allocation2 + $0x2a]]
        %v374 = vstv %s373
        %v375 = vmul.f32 %v374, %v363
        %v376 = vmul.f32 %v374, %v364
        %v377 = vadd.f32 %v339, %v375
        %v378 = vadd.f32 %v340, %v376
        %s379 = sld [smem:[#allocation2 + $0x4e]]
        %v380 = vstv %s379
        %v381 = vmul.f32 %v380, %v363
        %v382 = vmul.f32 %v380, %v364
        %v383 = vadd.f32 %v345, %v381
        %v384 = vadd.f32 %v346, %v382
        %s385 = sld [smem:[#allocation2 + $0x72]]
        %v386 = vstv %s385
        %v387 = vmul.f32 %v386, %v363
        %v388 = vmul.f32 %v386, %v364
        %v389 = vadd.f32 %v351, %v387
        %v390 = vadd.f32 %v352, %v388
        %s391 = sld [smem:[#allocation2 + $0x7]]
        %v392 = vstv %s391
        %v393 = vmul.f32 %v392, %v353
        %v394 = vmul.f32 %v392, %v354
        %v395 = vadd.f32 %v371, %v393
        %v396 = vadd.f32 %v372, %v394
        %s397 = sld [smem:[#allocation2 + $0x2b]]
        %v398 = vstv %s397
        %v399 = vmul.f32 %v398, %v353
        %v400 = vmul.f32 %v398, %v354
        %v401 = vadd.f32 %v377, %v399
        %v402 = vadd.f32 %v378, %v400
        %s403 = sld [smem:[#allocation2 + $0x4f]]
        %v404 = vstv %s403
        %v405 = vmul.f32 %v404, %v353
        %v406 = vmul.f32 %v404, %v354
        %v407 = vadd.f32 %v383, %v405
        %v408 = vadd.f32 %v384, %v406
        %s409 = sld [smem:[#allocation2 + $0x73]]
        %v410 = vstv %s409
        %v411 = vmul.f32 %v410, %v353
        %v412 = vmul.f32 %v410, %v354
        %v413 = vadd.f32 %v389, %v411
        %v414 = vadd.f32 %v390, %v412
        %s415 = sld [smem:[#allocation2 + $0x8]]
        %v416 = vstv %s415
        %v417 = vmul.f32 %v416, %v365
        %v418 = vmul.f32 %v416, %v366
        %v419 = vadd.f32 %v395, %v417
        %v420 = vadd.f32 %v396, %v418
        %s421 = sld [smem:[#allocation2 + $0x2c]]
        %v422 = vstv %s421
        %v423 = vmul.f32 %v422, %v365
        %v424 = vmul.f32 %v422, %v366
        %v425 = vadd.f32 %v401, %v423
        %v426 = vadd.f32 %v402, %v424
        %s427 = sld [smem:[#allocation2 + $0x50]]
        %v428 = vstv %s427
        %v429 = vmul.f32 %v428, %v365
        %v430 = vmul.f32 %v428, %v366
        %v431 = vadd.f32 %v407, %v429
        %v432 = vadd.f32 %v408, %v430
        %s433 = sld [smem:[#allocation2 + $0x74]]
        %v434 = vstv %s433
        %v435 = vmul.f32 %v434, %v365
        %v436 = vmul.f32 %v434, %v366
        %v437 = vadd.f32 %v413, %v435
        %v438 = vadd.f32 %v414, %v436
        %s439 = scalar_lea.vmem %s183, 24
        %v440 = vld [vmem:[%s439] sm:$0xff]
        %v441 = vld [vmem:[%s439 + $0x8] sm:$0xff]
        %442 = vrot.lane.b32.xlu0 %v440, 1
        %v443 = vpop.permute.xlu0 %442
        %444 = vrot.lane.b32.xlu0 %v441, 1
        %v445 = vpop.permute.xlu0 %444
        %446 = vrot.lane.b32.xlu0 %v440, 127
        %v447 = vpop.permute.xlu0 %446
        %448 = vrot.lane.b32.xlu0 %v441, 127
        %v449 = vpop.permute.xlu0 %448
        %v450 = vsel %vm187, %v447, %v443
        %v451 = vsel %vm187, %v449, %v445
        %v452 = vsel %vm188, %v443, %v447
        %v453 = vsel %vm188, %v445, %v449
        %s454 = sld [smem:[#allocation2 + $0x9]]
        %v455 = vstv %s454
        %v456 = vmul.f32 %v455, %v450
        %v457 = vmul.f32 %v455, %v451
        %v458 = vadd.f32 %v419, %v456
        %v459 = vadd.f32 %v420, %v457
        %s460 = sld [smem:[#allocation2 + $0x2d]]
        %v461 = vstv %s460
        %v462 = vmul.f32 %v461, %v450
        %v463 = vmul.f32 %v461, %v451
        %v464 = vadd.f32 %v425, %v462
        %v465 = vadd.f32 %v426, %v463
        %s466 = sld [smem:[#allocation2 + $0x51]]
        %v467 = vstv %s466
        %v468 = vmul.f32 %v467, %v450
        %v469 = vmul.f32 %v467, %v451
        %v470 = vadd.f32 %v431, %v468
        %v471 = vadd.f32 %v432, %v469
        %s472 = sld [smem:[#allocation2 + $0x75]]
        %v473 = vstv %s472
        %v474 = vmul.f32 %v473, %v450
        %v475 = vmul.f32 %v473, %v451
        %v476 = vadd.f32 %v437, %v474
        %v477 = vadd.f32 %v438, %v475
        %s478 = sld [smem:[#allocation2 + $0xa]]
        %v479 = vstv %s478
        %v480 = vmul.f32 %v479, %v440
        %v481 = vmul.f32 %v479, %v441
        %v482 = vadd.f32 %v458, %v480
        %v483 = vadd.f32 %v459, %v481
        %s484 = sld [smem:[#allocation2 + $0x2e]]
        %v485 = vstv %s484
        %v486 = vmul.f32 %v485, %v440
        %v487 = vmul.f32 %v485, %v441
        %v488 = vadd.f32 %v464, %v486
        %v489 = vadd.f32 %v465, %v487
        %s490 = sld [smem:[#allocation2 + $0x52]]
        %v491 = vstv %s490
        %v492 = vmul.f32 %v491, %v440
        %v493 = vmul.f32 %v491, %v441
        %v494 = vadd.f32 %v470, %v492
        %v495 = vadd.f32 %v471, %v493
        %s496 = sld [smem:[#allocation2 + $0x76]]
        %v497 = vstv %s496
        %v498 = vmul.f32 %v497, %v440
        %v499 = vmul.f32 %v497, %v441
        %v500 = vadd.f32 %v476, %v498
        %v501 = vadd.f32 %v477, %v499
        %s502 = sld [smem:[#allocation2 + $0xb]]
        %v503 = vstv %s502
        %v504 = vmul.f32 %v503, %v452
        %v505 = vmul.f32 %v503, %v453
        %v506 = vadd.f32 %v482, %v504
        %v507 = vadd.f32 %v483, %v505
        %s508 = sld [smem:[#allocation2 + $0x2f]]
        %v509 = vstv %s508
        %v510 = vmul.f32 %v509, %v452
        %v511 = vmul.f32 %v509, %v453
        %v512 = vadd.f32 %v488, %v510
        %v513 = vadd.f32 %v489, %v511
        %s514 = sld [smem:[#allocation2 + $0x53]]
        %v515 = vstv %s514
        %v516 = vmul.f32 %v515, %v452
        %v517 = vmul.f32 %v515, %v453
        %v518 = vadd.f32 %v494, %v516
        %v519 = vadd.f32 %v495, %v517
        %s520 = sld [smem:[#allocation2 + $0x77]]
        %v521 = vstv %s520
        %v522 = vmul.f32 %v521, %v452
        %v523 = vmul.f32 %v521, %v453
        %v524 = vadd.f32 %v500, %v522
        %v525 = vadd.f32 %v501, %v523
        %v526 = vld [vmem:[%s439 + $0x1] sm:$0xff]
        %v527 = vld [vmem:[%s439 + $0x9] sm:$0xff]
        %528 = vrot.lane.b32.xlu0 %v526, 1
        %v529 = vpop.permute.xlu0 %528
        %530 = vrot.lane.b32.xlu0 %v527, 1
        %v531 = vpop.permute.xlu0 %530
        %532 = vrot.lane.b32.xlu0 %v526, 127
        %v533 = vpop.permute.xlu0 %532
        %534 = vrot.lane.b32.xlu0 %v527, 127
        %v535 = vpop.permute.xlu0 %534
        %v536 = vsel %vm187, %v533, %v529
        %v537 = vsel %vm187, %v535, %v531
        %v538 = vsel %vm188, %v529, %v533
        %v539 = vsel %vm188, %v531, %v535
        %s540 = sld [smem:[#allocation2 + $0xc]]
        %v541 = vstv %s540
        %v542 = vmul.f32 %v541, %v536
        %v543 = vmul.f32 %v541, %v537
        %v544 = vadd.f32 %v506, %v542
        %v545 = vadd.f32 %v507, %v543
        %s546 = sld [smem:[#allocation2 + $0x30]]
        %v547 = vstv %s546
        %v548 = vmul.f32 %v547, %v536
        %v549 = vmul.f32 %v547, %v537
        %v550 = vadd.f32 %v512, %v548
        %v551 = vadd.f32 %v513, %v549
        %s552 = sld [smem:[#allocation2 + $0x54]]
        %v553 = vstv %s552
        %v554 = vmul.f32 %v553, %v536
        %v555 = vmul.f32 %v553, %v537
        %v556 = vadd.f32 %v518, %v554
        %v557 = vadd.f32 %v519, %v555
        %s558 = sld [smem:[#allocation2 + $0x78]]
        %v559 = vstv %s558
        %v560 = vmul.f32 %v559, %v536
        %v561 = vmul.f32 %v559, %v537
        %v562 = vadd.f32 %v524, %v560
        %v563 = vadd.f32 %v525, %v561
        %s564 = sld [smem:[#allocation2 + $0xd]]
        %v565 = vstv %s564
        %v566 = vmul.f32 %v565, %v526
        %v567 = vmul.f32 %v565, %v527
        %v568 = vadd.f32 %v544, %v566
        %v569 = vadd.f32 %v545, %v567
        %s570 = sld [smem:[#allocation2 + $0x31]]
        %v571 = vstv %s570
        %v572 = vmul.f32 %v571, %v526
        %v573 = vmul.f32 %v571, %v527
        %v574 = vadd.f32 %v550, %v572
        %v575 = vadd.f32 %v551, %v573
        %s576 = sld [smem:[#allocation2 + $0x55]]
        %v577 = vstv %s576
        %v578 = vmul.f32 %v577, %v526
        %v579 = vmul.f32 %v577, %v527
        %v580 = vadd.f32 %v556, %v578
        %v581 = vadd.f32 %v557, %v579
        %s582 = sld [smem:[#allocation2 + $0x79]]
        %v583 = vstv %s582
        %v584 = vmul.f32 %v583, %v526
        %v585 = vmul.f32 %v583, %v527
        %v586 = vadd.f32 %v562, %v584
        %v587 = vadd.f32 %v563, %v585
        %s588 = sld [smem:[#allocation2 + $0xe]]
        %v589 = vstv %s588
        %v590 = vmul.f32 %v589, %v538
        %v591 = vmul.f32 %v589, %v539
        %v592 = vadd.f32 %v568, %v590
        %v593 = vadd.f32 %v569, %v591
        %s594 = sld [smem:[#allocation2 + $0x32]]
        %v595 = vstv %s594
        %v596 = vmul.f32 %v595, %v538
        %v597 = vmul.f32 %v595, %v539
        %v598 = vadd.f32 %v574, %v596
        %v599 = vadd.f32 %v575, %v597
        %s600 = sld [smem:[#allocation2 + $0x56]]
        %v601 = vstv %s600
        %v602 = vmul.f32 %v601, %v538
        %v603 = vmul.f32 %v601, %v539
        %v604 = vadd.f32 %v580, %v602
        %v605 = vadd.f32 %v581, %v603
        %s606 = sld [smem:[#allocation2 + $0x7a]]
        %v607 = vstv %s606
        %v608 = vmul.f32 %v607, %v538
        %v609 = vmul.f32 %v607, %v539
        %v610 = vadd.f32 %v586, %v608
        %v611 = vadd.f32 %v587, %v609
        %v612 = vld [vmem:[%s439 + $0x2] sm:$0xff]
        %v613 = vld [vmem:[%s439 + $0xa] sm:$0xff]
        %614 = vrot.lane.b32.xlu0 %v612, 1
        %v615 = vpop.permute.xlu0 %614
        %616 = vrot.lane.b32.xlu0 %v613, 1
        %v617 = vpop.permute.xlu0 %616
        %618 = vrot.lane.b32.xlu0 %v612, 127
        %v619 = vpop.permute.xlu0 %618
        %620 = vrot.lane.b32.xlu0 %v613, 127
        %v621 = vpop.permute.xlu0 %620
        %v622 = vsel %vm187, %v619, %v615
        %v623 = vsel %vm187, %v621, %v617
        %v624 = vsel %vm188, %v615, %v619
        %v625 = vsel %vm188, %v617, %v621
        %s626 = sld [smem:[#allocation2 + $0xf]]
        %v627 = vstv %s626
        %v628 = vmul.f32 %v627, %v622
        %v629 = vmul.f32 %v627, %v623
        %v630 = vadd.f32 %v592, %v628
        %v631 = vadd.f32 %v593, %v629
        %s632 = sld [smem:[#allocation2 + $0x33]]
        %v633 = vstv %s632
        %v634 = vmul.f32 %v633, %v622
        %v635 = vmul.f32 %v633, %v623
        %v636 = vadd.f32 %v598, %v634
        %v637 = vadd.f32 %v599, %v635
        %s638 = sld [smem:[#allocation2 + $0x57]]
        %v639 = vstv %s638
        %v640 = vmul.f32 %v639, %v622
        %v641 = vmul.f32 %v639, %v623
        %v642 = vadd.f32 %v604, %v640
        %v643 = vadd.f32 %v605, %v641
        %s644 = sld [smem:[#allocation2 + $0x7b]]
        %v645 = vstv %s644
        %v646 = vmul.f32 %v645, %v622
        %v647 = vmul.f32 %v645, %v623
        %v648 = vadd.f32 %v610, %v646
        %v649 = vadd.f32 %v611, %v647
        %s650 = sld [smem:[#allocation2 + $0x10]]
        %v651 = vstv %s650
        %v652 = vmul.f32 %v651, %v612
        %v653 = vmul.f32 %v651, %v613
        %v654 = vadd.f32 %v630, %v652
        %v655 = vadd.f32 %v631, %v653
        %s656 = sld [smem:[#allocation2 + $0x34]]
        %v657 = vstv %s656
        %v658 = vmul.f32 %v657, %v612
        %v659 = vmul.f32 %v657, %v613
        %v660 = vadd.f32 %v636, %v658
        %v661 = vadd.f32 %v637, %v659
        %s662 = sld [smem:[#allocation2 + $0x58]]
        %v663 = vstv %s662
        %v664 = vmul.f32 %v663, %v612
        %v665 = vmul.f32 %v663, %v613
        %v666 = vadd.f32 %v642, %v664
        %v667 = vadd.f32 %v643, %v665
        %s668 = sld [smem:[#allocation2 + $0x7c]]
        %v669 = vstv %s668
        %v670 = vmul.f32 %v669, %v612
        %v671 = vmul.f32 %v669, %v613
        %v672 = vadd.f32 %v648, %v670
        %v673 = vadd.f32 %v649, %v671
        %s674 = sld [smem:[#allocation2 + $0x11]]
        %v675 = vstv %s674
        %v676 = vmul.f32 %v675, %v624
        %v677 = vmul.f32 %v675, %v625
        %v678 = vadd.f32 %v654, %v676
        %v679 = vadd.f32 %v655, %v677
        %s680 = sld [smem:[#allocation2 + $0x35]]
        %v681 = vstv %s680
        %v682 = vmul.f32 %v681, %v624
        %v683 = vmul.f32 %v681, %v625
        %v684 = vadd.f32 %v660, %v682
        %v685 = vadd.f32 %v661, %v683
        %s686 = sld [smem:[#allocation2 + $0x59]]
        %v687 = vstv %s686
        %v688 = vmul.f32 %v687, %v624
        %v689 = vmul.f32 %v687, %v625
        %v690 = vadd.f32 %v666, %v688
        %v691 = vadd.f32 %v667, %v689
        %s692 = sld [smem:[#allocation2 + $0x7d]]
        %v693 = vstv %s692
        %v694 = vmul.f32 %v693, %v624
        %v695 = vmul.f32 %v693, %v625
        %v696 = vadd.f32 %v672, %v694
        %v697 = vadd.f32 %v673, %v695
        %s698 = scalar_lea.vmem %s183, 48
        %v699 = vld [vmem:[%s698] sm:$0xff]
        %v700 = vld [vmem:[%s698 + $0x8] sm:$0xff]
        %701 = vrot.lane.b32.xlu0 %v699, 1
        %v702 = vpop.permute.xlu0 %701
        %703 = vrot.lane.b32.xlu0 %v700, 1
        %v704 = vpop.permute.xlu0 %703
        %705 = vrot.lane.b32.xlu0 %v699, 127
        %v706 = vpop.permute.xlu0 %705
        %707 = vrot.lane.b32.xlu0 %v700, 127
        %v708 = vpop.permute.xlu0 %707
        %v709 = vsel %vm187, %v706, %v702
        %v710 = vsel %vm187, %v708, %v704
        %v711 = vsel %vm188, %v702, %v706
        %v712 = vsel %vm188, %v704, %v708
        %s713 = sld [smem:[#allocation2 + $0x12]]
        %v714 = vstv %s713
        %v715 = vmul.f32 %v714, %v709
        %v716 = vmul.f32 %v714, %v710
        %v717 = vadd.f32 %v678, %v715
        %v718 = vadd.f32 %v679, %v716
        %s719 = sld [smem:[#allocation2 + $0x36]]
        %v720 = vstv %s719
        %v721 = vmul.f32 %v720, %v709
        %v722 = vmul.f32 %v720, %v710
        %v723 = vadd.f32 %v684, %v721
        %v724 = vadd.f32 %v685, %v722
        %s725 = sld [smem:[#allocation2 + $0x5a]]
        %v726 = vstv %s725
        %v727 = vmul.f32 %v726, %v709
        %v728 = vmul.f32 %v726, %v710
        %v729 = vadd.f32 %v690, %v727
        %v730 = vadd.f32 %v691, %v728
        %s731 = sld [smem:[#allocation2 + $0x7e]]
        %v732 = vstv %s731
        %v733 = vmul.f32 %v732, %v709
        %v734 = vmul.f32 %v732, %v710
        %v735 = vadd.f32 %v696, %v733
        %v736 = vadd.f32 %v697, %v734
        %s737 = sld [smem:[#allocation2 + $0x13]]
        %v738 = vstv %s737
        %v739 = vmul.f32 %v738, %v699
        %v740 = vmul.f32 %v738, %v700
        %v741 = vadd.f32 %v717, %v739
        %v742 = vadd.f32 %v718, %v740
        %s743 = sld [smem:[#allocation2 + $0x37]]
        %v744 = vstv %s743
        %v745 = vmul.f32 %v744, %v699
        %v746 = vmul.f32 %v744, %v700
        %v747 = vadd.f32 %v723, %v745
        %v748 = vadd.f32 %v724, %v746
        %s749 = sld [smem:[#allocation2 + $0x5b]]
        %v750 = vstv %s749
        %v751 = vmul.f32 %v750, %v699
        %v752 = vmul.f32 %v750, %v700
        %v753 = vadd.f32 %v729, %v751
        %v754 = vadd.f32 %v730, %v752
        %s755 = sld [smem:[#allocation2 + $0x7f]]
        %v756 = vstv %s755
        %v757 = vmul.f32 %v756, %v699
        %v758 = vmul.f32 %v756, %v700
        %v759 = vadd.f32 %v735, %v757
        %v760 = vadd.f32 %v736, %v758
        %s761 = sld [smem:[#allocation2 + $0x14]]
        %v762 = vstv %s761
        %v763 = vmul.f32 %v762, %v711
        %v764 = vmul.f32 %v762, %v712
        %v765 = vadd.f32 %v741, %v763
        %v766 = vadd.f32 %v742, %v764
        %s767 = sld [smem:[#allocation2 + $0x38]]
        %v768 = vstv %s767
        %v769 = vmul.f32 %v768, %v711
        %v770 = vmul.f32 %v768, %v712
        %v771 = vadd.f32 %v747, %v769
        %v772 = vadd.f32 %v748, %v770
        %s773 = sld [smem:[#allocation2 + $0x5c]]
        %v774 = vstv %s773
        %v775 = vmul.f32 %v774, %v711
        %v776 = vmul.f32 %v774, %v712
        %v777 = vadd.f32 %v753, %v775
        %v778 = vadd.f32 %v754, %v776
        %s779 = sld [smem:[#allocation2 + $0x80]]
        %v780 = vstv %s779
        %v781 = vmul.f32 %v780, %v711
        %v782 = vmul.f32 %v780, %v712
        %v783 = vadd.f32 %v759, %v781
        %v784 = vadd.f32 %v760, %v782
        %v785 = vld [vmem:[%s698 + $0x1] sm:$0xff]
        %v786 = vld [vmem:[%s698 + $0x9] sm:$0xff]
        %787 = vrot.lane.b32.xlu0 %v785, 1
        %v788 = vpop.permute.xlu0 %787
        %789 = vrot.lane.b32.xlu0 %v786, 1
        %v790 = vpop.permute.xlu0 %789
        %791 = vrot.lane.b32.xlu0 %v785, 127
        %v792 = vpop.permute.xlu0 %791
        %793 = vrot.lane.b32.xlu0 %v786, 127
        %v794 = vpop.permute.xlu0 %793
        %v795 = vsel %vm187, %v792, %v788
        %v796 = vsel %vm187, %v794, %v790
        %v797 = vsel %vm188, %v788, %v792
        %v798 = vsel %vm188, %v790, %v794
        %s799 = sld [smem:[#allocation2 + $0x15]]
        %v800 = vstv %s799
        %v801 = vmul.f32 %v800, %v795
        %v802 = vmul.f32 %v800, %v796
        %v803 = vadd.f32 %v765, %v801
        %v804 = vadd.f32 %v766, %v802
        %s805 = sld [smem:[#allocation2 + $0x39]]
        %v806 = vstv %s805
        %v807 = vmul.f32 %v806, %v795
        %v808 = vmul.f32 %v806, %v796
        %v809 = vadd.f32 %v771, %v807
        %v810 = vadd.f32 %v772, %v808
        %s811 = sld [smem:[#allocation2 + $0x5d]]
        %v812 = vstv %s811
        %v813 = vmul.f32 %v812, %v795
        %v814 = vmul.f32 %v812, %v796
        %v815 = vadd.f32 %v777, %v813
        %v816 = vadd.f32 %v778, %v814
        %s817 = sld [smem:[#allocation2 + $0x81]]
        %v818 = vstv %s817
        %v819 = vmul.f32 %v818, %v795
        %v820 = vmul.f32 %v818, %v796
        %v821 = vadd.f32 %v783, %v819
        %v822 = vadd.f32 %v784, %v820
        %s823 = sld [smem:[#allocation2 + $0x16]]
        %v824 = vstv %s823
        %v825 = vmul.f32 %v824, %v785
        %v826 = vmul.f32 %v824, %v786
        %v827 = vadd.f32 %v803, %v825
        %v828 = vadd.f32 %v804, %v826
        %s829 = sld [smem:[#allocation2 + $0x3a]]
        %v830 = vstv %s829
        %v831 = vmul.f32 %v830, %v785
        %v832 = vmul.f32 %v830, %v786
        %v833 = vadd.f32 %v809, %v831
        %v834 = vadd.f32 %v810, %v832
        %s835 = sld [smem:[#allocation2 + $0x5e]]
        %v836 = vstv %s835
        %v837 = vmul.f32 %v836, %v785
        %v838 = vmul.f32 %v836, %v786
        %v839 = vadd.f32 %v815, %v837
        %v840 = vadd.f32 %v816, %v838
        %s841 = sld [smem:[#allocation2 + $0x82]]
        %v842 = vstv %s841
        %v843 = vmul.f32 %v842, %v785
        %v844 = vmul.f32 %v842, %v786
        %v845 = vadd.f32 %v821, %v843
        %v846 = vadd.f32 %v822, %v844
        %s847 = sld [smem:[#allocation2 + $0x17]]
        %v848 = vstv %s847
        %v849 = vmul.f32 %v848, %v797
        %v850 = vmul.f32 %v848, %v798
        %v851 = vadd.f32 %v827, %v849
        %v852 = vadd.f32 %v828, %v850
        %s853 = sld [smem:[#allocation2 + $0x3b]]
        %v854 = vstv %s853
        %v855 = vmul.f32 %v854, %v797
        %v856 = vmul.f32 %v854, %v798
        %v857 = vadd.f32 %v833, %v855
        %v858 = vadd.f32 %v834, %v856
        %s859 = sld [smem:[#allocation2 + $0x5f]]
        %v860 = vstv %s859
        %v861 = vmul.f32 %v860, %v797
        %v862 = vmul.f32 %v860, %v798
        %v863 = vadd.f32 %v839, %v861
        %v864 = vadd.f32 %v840, %v862
        %s865 = sld [smem:[#allocation2 + $0x83]]
        %v866 = vstv %s865
        %v867 = vmul.f32 %v866, %v797
        %v868 = vmul.f32 %v866, %v798
        %v869 = vadd.f32 %v845, %v867
        %v870 = vadd.f32 %v846, %v868
        %v871 = vld [vmem:[%s698 + $0x2] sm:$0xff]
        %v872 = vld [vmem:[%s698 + $0xa] sm:$0xff]
        %873 = vrot.lane.b32.xlu0 %v871, 1
        %v874 = vpop.permute.xlu0 %873
        %875 = vrot.lane.b32.xlu0 %v872, 1
        %v876 = vpop.permute.xlu0 %875
        %877 = vrot.lane.b32.xlu0 %v871, 127
        %v878 = vpop.permute.xlu0 %877
        %879 = vrot.lane.b32.xlu0 %v872, 127
        %v880 = vpop.permute.xlu0 %879
        %v881 = vsel %vm187, %v878, %v874
        %v882 = vsel %vm187, %v880, %v876
        %v883 = vsel %vm188, %v874, %v878
        %v884 = vsel %vm188, %v876, %v880
        %s885 = sld [smem:[#allocation2 + $0x18]]
        %v886 = vstv %s885
        %v887 = vmul.f32 %v886, %v881
        %v888 = vmul.f32 %v886, %v882
        %v889 = vadd.f32 %v851, %v887
        %v890 = vadd.f32 %v852, %v888
        %s891 = sld [smem:[#allocation2 + $0x3c]]
        %v892 = vstv %s891
        %v893 = vmul.f32 %v892, %v881
        %v894 = vmul.f32 %v892, %v882
        %v895 = vadd.f32 %v857, %v893
        %v896 = vadd.f32 %v858, %v894
        %s897 = sld [smem:[#allocation2 + $0x60]]
        %v898 = vstv %s897
        %v899 = vmul.f32 %v898, %v881
        %v900 = vmul.f32 %v898, %v882
        %v901 = vadd.f32 %v863, %v899
        %v902 = vadd.f32 %v864, %v900
        %s903 = sld [smem:[#allocation2 + $0x84]]
        %v904 = vstv %s903
        %v905 = vmul.f32 %v904, %v881
        %v906 = vmul.f32 %v904, %v882
        %v907 = vadd.f32 %v869, %v905
        %v908 = vadd.f32 %v870, %v906
        %s909 = sld [smem:[#allocation2 + $0x19]]
        %v910 = vstv %s909
        %v911 = vmul.f32 %v910, %v871
        %v912 = vmul.f32 %v910, %v872
        %v913 = vadd.f32 %v889, %v911
        %v914 = vadd.f32 %v890, %v912
        %s915 = sld [smem:[#allocation2 + $0x3d]]
        %v916 = vstv %s915
        %v917 = vmul.f32 %v916, %v871
        %v918 = vmul.f32 %v916, %v872
        %v919 = vadd.f32 %v895, %v917
        %v920 = vadd.f32 %v896, %v918
        %s921 = sld [smem:[#allocation2 + $0x61]]
        %v922 = vstv %s921
        %v923 = vmul.f32 %v922, %v871
        %v924 = vmul.f32 %v922, %v872
        %v925 = vadd.f32 %v901, %v923
        %v926 = vadd.f32 %v902, %v924
        %s927 = sld [smem:[#allocation2 + $0x85]]
        %v928 = vstv %s927
        %v929 = vmul.f32 %v928, %v871
        %v930 = vmul.f32 %v928, %v872
        %v931 = vadd.f32 %v907, %v929
        %v932 = vadd.f32 %v908, %v930
        %s933 = sld [smem:[#allocation2 + $0x1a]]
        %v934 = vstv %s933
        %v935 = vmul.f32 %v934, %v883
        %v936 = vmul.f32 %v934, %v884
        %v937 = vadd.f32 %v913, %v935
        %v938 = vadd.f32 %v914, %v936
        %s939 = sld [smem:[#allocation2 + $0x3e]]
        %v940 = vstv %s939
        %v941 = vmul.f32 %v940, %v883
        %v942 = vmul.f32 %v940, %v884
        %v943 = vadd.f32 %v919, %v941
        %v944 = vadd.f32 %v920, %v942
        %s945 = sld [smem:[#allocation2 + $0x62]]
        %v946 = vstv %s945
        %v947 = vmul.f32 %v946, %v883
        %v948 = vmul.f32 %v946, %v884
        %v949 = vadd.f32 %v925, %v947
        %v950 = vadd.f32 %v926, %v948
        %s951 = sld [smem:[#allocation2 + $0x86]]
        %v952 = vstv %s951
        %v953 = vmul.f32 %v952, %v883
        %v954 = vmul.f32 %v952, %v884
        %v955 = vadd.f32 %v931, %v953
        %v956 = vadd.f32 %v932, %v954
        %s957 = scalar_lea.vmem %s183, 72
        %v958 = vld [vmem:[%s957] sm:$0xff]
        %v959 = vld [vmem:[%s957 + $0x8] sm:$0xff]
        %960 = vrot.lane.b32.xlu0 %v958, 1
        %v961 = vpop.permute.xlu0 %960
        %962 = vrot.lane.b32.xlu0 %v959, 1
        %v963 = vpop.permute.xlu0 %962
        %964 = vrot.lane.b32.xlu0 %v958, 127
        %v965 = vpop.permute.xlu0 %964
        %966 = vrot.lane.b32.xlu0 %v959, 127
        %v967 = vpop.permute.xlu0 %966
        %v968 = vsel %vm187, %v965, %v961
        %v969 = vsel %vm187, %v967, %v963
        %v970 = vsel %vm188, %v961, %v965
        %v971 = vsel %vm188, %v963, %v967
        %s972 = sld [smem:[#allocation2 + $0x1b]]
        %v973 = vstv %s972
        %v974 = vmul.f32 %v973, %v968
        %v975 = vmul.f32 %v973, %v969
        %v976 = vadd.f32 %v937, %v974
        %v977 = vadd.f32 %v938, %v975
        %s978 = sld [smem:[#allocation2 + $0x3f]]
        %v979 = vstv %s978
        %v980 = vmul.f32 %v979, %v968
        %v981 = vmul.f32 %v979, %v969
        %v982 = vadd.f32 %v943, %v980
        %v983 = vadd.f32 %v944, %v981
        %s984 = sld [smem:[#allocation2 + $0x63]]
        %v985 = vstv %s984
        %v986 = vmul.f32 %v985, %v968
        %v987 = vmul.f32 %v985, %v969
        %v988 = vadd.f32 %v949, %v986
        %v989 = vadd.f32 %v950, %v987
        %s990 = sld [smem:[#allocation2 + $0x87]]
        %v991 = vstv %s990
        %v992 = vmul.f32 %v991, %v968
        %v993 = vmul.f32 %v991, %v969
        %v994 = vadd.f32 %v955, %v992
        %v995 = vadd.f32 %v956, %v993
        %s996 = sld [smem:[#allocation2 + $0x1c]]
        %v997 = vstv %s996
        %v998 = vmul.f32 %v997, %v958
        %v999 = vmul.f32 %v997, %v959
        %v1000 = vadd.f32 %v976, %v998
        %v1001 = vadd.f32 %v977, %v999
        %s1002 = sld [smem:[#allocation2 + $0x40]]
        %v1003 = vstv %s1002
        %v1004 = vmul.f32 %v1003, %v958
        %v1005 = vmul.f32 %v1003, %v959
        %v1006 = vadd.f32 %v982, %v1004
        %v1007 = vadd.f32 %v983, %v1005
        %s1008 = sld [smem:[#allocation2 + $0x64]]
        %v1009 = vstv %s1008
        %v1010 = vmul.f32 %v1009, %v958
        %v1011 = vmul.f32 %v1009, %v959
        %v1012 = vadd.f32 %v988, %v1010
        %v1013 = vadd.f32 %v989, %v1011
        %s1014 = sld [smem:[#allocation2 + $0x88]]
        %v1015 = vstv %s1014
        %v1016 = vmul.f32 %v1015, %v958
        %v1017 = vmul.f32 %v1015, %v959
        %v1018 = vadd.f32 %v994, %v1016
        %v1019 = vadd.f32 %v995, %v1017
        %s1020 = sld [smem:[#allocation2 + $0x1d]]
        %v1021 = vstv %s1020
        %v1022 = vmul.f32 %v1021, %v970
        %v1023 = vmul.f32 %v1021, %v971
        %v1024 = vadd.f32 %v1000, %v1022
        %v1025 = vadd.f32 %v1001, %v1023
        %s1026 = sld [smem:[#allocation2 + $0x41]]
        %v1027 = vstv %s1026
        %v1028 = vmul.f32 %v1027, %v970
        %v1029 = vmul.f32 %v1027, %v971
        %v1030 = vadd.f32 %v1006, %v1028
        %v1031 = vadd.f32 %v1007, %v1029
        %s1032 = sld [smem:[#allocation2 + $0x65]]
        %v1033 = vstv %s1032
        %v1034 = vmul.f32 %v1033, %v970
        %v1035 = vmul.f32 %v1033, %v971
        %v1036 = vadd.f32 %v1012, %v1034
        %v1037 = vadd.f32 %v1013, %v1035
        %s1038 = sld [smem:[#allocation2 + $0x89]]
        %v1039 = vstv %s1038
        %v1040 = vmul.f32 %v1039, %v970
        %v1041 = vmul.f32 %v1039, %v971
        %v1042 = vadd.f32 %v1018, %v1040
        %v1043 = vadd.f32 %v1019, %v1041
        %v1044 = vld [vmem:[%s957 + $0x1] sm:$0xff]
        %v1045 = vld [vmem:[%s957 + $0x9] sm:$0xff]
        %1046 = vrot.lane.b32.xlu0 %v1044, 1
        %v1047 = vpop.permute.xlu0 %1046
        %1048 = vrot.lane.b32.xlu0 %v1045, 1
        %v1049 = vpop.permute.xlu0 %1048
        %1050 = vrot.lane.b32.xlu0 %v1044, 127
        %v1051 = vpop.permute.xlu0 %1050
        %1052 = vrot.lane.b32.xlu0 %v1045, 127
        %v1053 = vpop.permute.xlu0 %1052
        %v1054 = vsel %vm187, %v1051, %v1047
        %v1055 = vsel %vm187, %v1053, %v1049
        %v1056 = vsel %vm188, %v1047, %v1051
        %v1057 = vsel %vm188, %v1049, %v1053
        %s1058 = sld [smem:[#allocation2 + $0x1e]]
        %v1059 = vstv %s1058
        %v1060 = vmul.f32 %v1059, %v1054
        %v1061 = vmul.f32 %v1059, %v1055
        %v1062 = vadd.f32 %v1024, %v1060
        %v1063 = vadd.f32 %v1025, %v1061
        %s1064 = sld [smem:[#allocation2 + $0x42]]
        %v1065 = vstv %s1064
        %v1066 = vmul.f32 %v1065, %v1054
        %v1067 = vmul.f32 %v1065, %v1055
        %v1068 = vadd.f32 %v1030, %v1066
        %v1069 = vadd.f32 %v1031, %v1067
        %s1070 = sld [smem:[#allocation2 + $0x66]]
        %v1071 = vstv %s1070
        %v1072 = vmul.f32 %v1071, %v1054
        %v1073 = vmul.f32 %v1071, %v1055
        %v1074 = vadd.f32 %v1036, %v1072
        %v1075 = vadd.f32 %v1037, %v1073
        %s1076 = sld [smem:[#allocation2 + $0x8a]]
        %v1077 = vstv %s1076
        %v1078 = vmul.f32 %v1077, %v1054
        %v1079 = vmul.f32 %v1077, %v1055
        %v1080 = vadd.f32 %v1042, %v1078
        %v1081 = vadd.f32 %v1043, %v1079
        %s1082 = sld [smem:[#allocation2 + $0x1f]]
        %v1083 = vstv %s1082
        %v1084 = vmul.f32 %v1083, %v1044
        %v1085 = vmul.f32 %v1083, %v1045
        %v1086 = vadd.f32 %v1062, %v1084
        %v1087 = vadd.f32 %v1063, %v1085
        %s1088 = sld [smem:[#allocation2 + $0x43]]
        %v1089 = vstv %s1088
        %v1090 = vmul.f32 %v1089, %v1044
        %v1091 = vmul.f32 %v1089, %v1045
        %v1092 = vadd.f32 %v1068, %v1090
        %v1093 = vadd.f32 %v1069, %v1091
        %s1094 = sld [smem:[#allocation2 + $0x67]]
        %v1095 = vstv %s1094
        %v1096 = vmul.f32 %v1095, %v1044
        %v1097 = vmul.f32 %v1095, %v1045
        %v1098 = vadd.f32 %v1074, %v1096
        %v1099 = vadd.f32 %v1075, %v1097
        %s1100 = sld [smem:[#allocation2 + $0x8b]]
        %v1101 = vstv %s1100
        %v1102 = vmul.f32 %v1101, %v1044
        %v1103 = vmul.f32 %v1101, %v1045
        %v1104 = vadd.f32 %v1080, %v1102
        %v1105 = vadd.f32 %v1081, %v1103
        %s1106 = sld [smem:[#allocation2 + $0x20]]
        %v1107 = vstv %s1106
        %v1108 = vmul.f32 %v1107, %v1056
        %v1109 = vmul.f32 %v1107, %v1057
        %v1110 = vadd.f32 %v1086, %v1108
        %v1111 = vadd.f32 %v1087, %v1109
        %s1112 = sld [smem:[#allocation2 + $0x44]]
        %v1113 = vstv %s1112
        %v1114 = vmul.f32 %v1113, %v1056
        %v1115 = vmul.f32 %v1113, %v1057
        %v1116 = vadd.f32 %v1092, %v1114
        %v1117 = vadd.f32 %v1093, %v1115
        %s1118 = sld [smem:[#allocation2 + $0x68]]
        %v1119 = vstv %s1118
        %v1120 = vmul.f32 %v1119, %v1056
        %v1121 = vmul.f32 %v1119, %v1057
        %v1122 = vadd.f32 %v1098, %v1120
        %v1123 = vadd.f32 %v1099, %v1121
        %s1124 = sld [smem:[#allocation2 + $0x8c]]
        %v1125 = vstv %s1124
        %v1126 = vmul.f32 %v1125, %v1056
        %v1127 = vmul.f32 %v1125, %v1057
        %v1128 = vadd.f32 %v1104, %v1126
        %v1129 = vadd.f32 %v1105, %v1127
        %v1130 = vld [vmem:[%s957 + $0x2] sm:$0xff]
        %v1131 = vld [vmem:[%s957 + $0xa] sm:$0xff]
        %1132 = vrot.lane.b32.xlu0 %v1130, 1
        %v1133 = vpop.permute.xlu0 %1132
        %1134 = vrot.lane.b32.xlu0 %v1131, 1
        %v1135 = vpop.permute.xlu0 %1134
        %1136 = vrot.lane.b32.xlu0 %v1130, 127
        %v1137 = vpop.permute.xlu0 %1136
        %1138 = vrot.lane.b32.xlu0 %v1131, 127
        %v1139 = vpop.permute.xlu0 %1138
        %v1140 = vsel %vm187, %v1137, %v1133
        %v1141 = vsel %vm187, %v1139, %v1135
        %v1142 = vsel %vm188, %v1133, %v1137
        %v1143 = vsel %vm188, %v1135, %v1139
        %s1144 = sld [smem:[#allocation2 + $0x21]]
        %v1145 = vstv %s1144
        %v1146 = vmul.f32 %v1145, %v1140
        %v1147 = vmul.f32 %v1145, %v1141
        %v1148 = vadd.f32 %v1110, %v1146
        %v1149 = vadd.f32 %v1111, %v1147
        %s1150 = sld [smem:[#allocation2 + $0x45]]
        %v1151 = vstv %s1150
        %v1152 = vmul.f32 %v1151, %v1140
        %v1153 = vmul.f32 %v1151, %v1141
        %v1154 = vadd.f32 %v1116, %v1152
        %v1155 = vadd.f32 %v1117, %v1153
        %s1156 = sld [smem:[#allocation2 + $0x69]]
        %v1157 = vstv %s1156
        %v1158 = vmul.f32 %v1157, %v1140
        %v1159 = vmul.f32 %v1157, %v1141
        %v1160 = vadd.f32 %v1122, %v1158
        %v1161 = vadd.f32 %v1123, %v1159
        %s1162 = sld [smem:[#allocation2 + $0x8d]]
        %v1163 = vstv %s1162
        %v1164 = vmul.f32 %v1163, %v1140
        %v1165 = vmul.f32 %v1163, %v1141
        %v1166 = vadd.f32 %v1128, %v1164
        %v1167 = vadd.f32 %v1129, %v1165
        %s1168 = sld [smem:[#allocation2 + $0x22]]
        %v1169 = vstv %s1168
        %v1170 = vmul.f32 %v1169, %v1130
        %v1171 = vmul.f32 %v1169, %v1131
        %v1172 = vadd.f32 %v1148, %v1170
        %v1173 = vadd.f32 %v1149, %v1171
        %s1174 = sld [smem:[#allocation2 + $0x46]]
        %v1175 = vstv %s1174
        %v1176 = vmul.f32 %v1175, %v1130
        %v1177 = vmul.f32 %v1175, %v1131
        %v1178 = vadd.f32 %v1154, %v1176
        %v1179 = vadd.f32 %v1155, %v1177
        %s1180 = sld [smem:[#allocation2 + $0x6a]]
        %v1181 = vstv %s1180
        %v1182 = vmul.f32 %v1181, %v1130
        %v1183 = vmul.f32 %v1181, %v1131
        %v1184 = vadd.f32 %v1160, %v1182
        %v1185 = vadd.f32 %v1161, %v1183
        %s1186 = sld [smem:[#allocation2 + $0x8e]]
        %v1187 = vstv %s1186
        %v1188 = vmul.f32 %v1187, %v1130
        %v1189 = vmul.f32 %v1187, %v1131
        %v1190 = vadd.f32 %v1166, %v1188
        %v1191 = vadd.f32 %v1167, %v1189
        %s1192 = sld [smem:[#allocation2 + $0x23]]
        %v1193 = vstv %s1192
        %v1194 = vmul.f32 %v1193, %v1142
        %v1195 = vmul.f32 %v1193, %v1143
        %v1196 = vadd.f32 %v1172, %v1194
        %v1197 = vadd.f32 %v1173, %v1195
        %s1198 = sld [smem:[#allocation2 + $0x47]]
        %v1199 = vstv %s1198
        %v1200 = vmul.f32 %v1199, %v1142
        %v1201 = vmul.f32 %v1199, %v1143
        %v1202 = vadd.f32 %v1178, %v1200
        %v1203 = vadd.f32 %v1179, %v1201
        %s1204 = sld [smem:[#allocation2 + $0x6b]]
        %v1205 = vstv %s1204
        %v1206 = vmul.f32 %v1205, %v1142
        %v1207 = vmul.f32 %v1205, %v1143
        %v1208 = vadd.f32 %v1184, %v1206
        %v1209 = vadd.f32 %v1185, %v1207
        %s1210 = sld [smem:[#allocation2 + $0x8f]]
        %v1211 = vstv %s1210
        %v1212 = vmul.f32 %v1211, %v1142
        %v1213 = vmul.f32 %v1211, %v1143
        %v1214 = vadd.f32 %v1190, %v1212
        %v1215 = vadd.f32 %v1191, %v1213
        %1216 = vst [vmem:[%s174] sm:$0xff] %v1196
        %1217 = vst [vmem:[%s174 + $0x8] sm:$0xff] %v1197
        %s1218 = scalar_lea.vmem %s174, 16 [#allocation5]
        %1219 = vst [vmem:[%s1218] sm:$0xff] %v1202
        %1220 = vst [vmem:[%s1218 + $0x8] sm:$0xff] %v1203
        %s1221 = scalar_lea.vmem %s174, 32 [#allocation5]
        %1222 = vst [vmem:[%s1221] sm:$0xff] %v1208
        %1223 = vst [vmem:[%s1221 + $0x8] sm:$0xff] %v1209
        %s1224 = scalar_lea.vmem %s174, 48 [#allocation5]
        %1225 = vst [vmem:[%s1224] sm:$0xff] %v1214
        %1226 = vst [vmem:[%s1224 + $0x8] sm:$0xff] %v1215
        %v1227 = vld [vmem:[%s183] sm:$0xff]
        %v1228 = vld [vmem:[%s183 + $0x8] sm:$0xff]
        %1229 = vrot.lane.b32.xlu0 %v1227, 1
        %v1230 = vpop.permute.xlu0 %1229
        %1231 = vrot.lane.b32.xlu0 %v1228, 1
        %v1232 = vpop.permute.xlu0 %1231
        %1233 = vrot.lane.b32.xlu0 %v1227, 127
        %v1234 = vpop.permute.xlu0 %1233
        %1235 = vrot.lane.b32.xlu0 %v1228, 127
        %v1236 = vpop.permute.xlu0 %1235
        %v1237 = vsel %vm187, %v1234, %v1230
        %v1238 = vsel %vm187, %v1236, %v1232
        %v1239 = vsel %vm188, %v1230, %v1234
        %v1240 = vsel %vm188, %v1232, %v1236
        %s1241 = sld [smem:[#allocation2 + $0x90]]
        %v1242 = vstv %s1241
        %v1243 = vmul.f32 %v1242, %v1237
        %v1244 = vmul.f32 %v1242, %v1238
        %s1245 = sld [smem:[#allocation2 + $0xb4]]
        %v1246 = vstv %s1245
        %v1247 = vmul.f32 %v1246, %v1237
        %v1248 = vmul.f32 %v1246, %v1238
        %s1249 = sld [smem:[#allocation2 + $0xd8]]
        %v1250 = vstv %s1249
        %v1251 = vmul.f32 %v1250, %v1237
        %v1252 = vmul.f32 %v1250, %v1238
        %s1253 = sld [smem:[#allocation2 + $0xfc]]
        %v1254 = vstv %s1253
        %v1255 = vmul.f32 %v1254, %v1237
        %v1256 = vmul.f32 %v1254, %v1238
        %s1257 = sld [smem:[#allocation2 + $0x91]]
        %v1258 = vstv %s1257
        %v1259 = vmul.f32 %v1258, %v1227
        %v1260 = vmul.f32 %v1258, %v1228
        %v1261 = vadd.f32 %v1243, %v1259
        %v1262 = vadd.f32 %v1244, %v1260
        %s1263 = sld [smem:[#allocation2 + $0xb5]]
        %v1264 = vstv %s1263
        %v1265 = vmul.f32 %v1264, %v1227
        %v1266 = vmul.f32 %v1264, %v1228
        %v1267 = vadd.f32 %v1247, %v1265
        %v1268 = vadd.f32 %v1248, %v1266
        %s1269 = sld [smem:[#allocation2 + $0xd9]]
        %v1270 = vstv %s1269
        %v1271 = vmul.f32 %v1270, %v1227
        %v1272 = vmul.f32 %v1270, %v1228
        %v1273 = vadd.f32 %v1251, %v1271
        %v1274 = vadd.f32 %v1252, %v1272
        %s1275 = sld [smem:[#allocation2 + $0xfd]]
        %v1276 = vstv %s1275
        %v1277 = vmul.f32 %v1276, %v1227
        %v1278 = vmul.f32 %v1276, %v1228
        %v1279 = vadd.f32 %v1255, %v1277
        %v1280 = vadd.f32 %v1256, %v1278
        %s1281 = sld [smem:[#allocation2 + $0x92]]
        %v1282 = vstv %s1281
        %v1283 = vmul.f32 %v1282, %v1239
        %v1284 = vmul.f32 %v1282, %v1240
        %v1285 = vadd.f32 %v1261, %v1283
        %v1286 = vadd.f32 %v1262, %v1284
        %s1287 = sld [smem:[#allocation2 + $0xb6]]
        %v1288 = vstv %s1287
        %v1289 = vmul.f32 %v1288, %v1239
        %v1290 = vmul.f32 %v1288, %v1240
        %v1291 = vadd.f32 %v1267, %v1289
        %v1292 = vadd.f32 %v1268, %v1290
        %s1293 = sld [smem:[#allocation2 + $0xda]]
        %v1294 = vstv %s1293
        %v1295 = vmul.f32 %v1294, %v1239
        %v1296 = vmul.f32 %v1294, %v1240
        %v1297 = vadd.f32 %v1273, %v1295
        %v1298 = vadd.f32 %v1274, %v1296
        %s1299 = sld [smem:[#allocation2 + $0xfe]]
        %v1300 = vstv %s1299
        %v1301 = vmul.f32 %v1300, %v1239
        %v1302 = vmul.f32 %v1300, %v1240
        %v1303 = vadd.f32 %v1279, %v1301
        %v1304 = vadd.f32 %v1280, %v1302
        %v1305 = vld [vmem:[%s183 + $0x1] sm:$0xff]
        %v1306 = vld [vmem:[%s183 + $0x9] sm:$0xff]
        %1307 = vrot.lane.b32.xlu0 %v1305, 1
        %v1308 = vpop.permute.xlu0 %1307
        %1309 = vrot.lane.b32.xlu0 %v1306, 1
        %v1310 = vpop.permute.xlu0 %1309
        %1311 = vrot.lane.b32.xlu0 %v1305, 127
        %v1312 = vpop.permute.xlu0 %1311
        %1313 = vrot.lane.b32.xlu0 %v1306, 127
        %v1314 = vpop.permute.xlu0 %1313
        %v1315 = vsel %vm187, %v1312, %v1308
        %v1316 = vsel %vm187, %v1314, %v1310
        %v1317 = vsel %vm188, %v1308, %v1312
        %v1318 = vsel %vm188, %v1310, %v1314
        %s1319 = sld [smem:[#allocation2 + $0x93]]
        %v1320 = vstv %s1319
        %v1321 = vmul.f32 %v1320, %v1315
        %v1322 = vmul.f32 %v1320, %v1316
        %v1323 = vadd.f32 %v1285, %v1321
        %v1324 = vadd.f32 %v1286, %v1322
        %s1325 = sld [smem:[#allocation2 + $0xb7]]
        %v1326 = vstv %s1325
        %v1327 = vmul.f32 %v1326, %v1315
        %v1328 = vmul.f32 %v1326, %v1316
        %v1329 = vadd.f32 %v1291, %v1327
        %v1330 = vadd.f32 %v1292, %v1328
        %s1331 = sld [smem:[#allocation2 + $0xdb]]
        %v1332 = vstv %s1331
        %v1333 = vmul.f32 %v1332, %v1315
        %v1334 = vmul.f32 %v1332, %v1316
        %v1335 = vadd.f32 %v1297, %v1333
        %v1336 = vadd.f32 %v1298, %v1334
        %s1337 = sld [smem:[#allocation2 + $0xff]]
        %v1338 = vstv %s1337
        %v1339 = vmul.f32 %v1338, %v1315
        %v1340 = vmul.f32 %v1338, %v1316
        %v1341 = vadd.f32 %v1303, %v1339
        %v1342 = vadd.f32 %v1304, %v1340
        %s1343 = sld [smem:[#allocation2 + $0x94]]
        %v1344 = vstv %s1343
        %v1345 = vmul.f32 %v1344, %v1305
        %v1346 = vmul.f32 %v1344, %v1306
        %v1347 = vadd.f32 %v1323, %v1345
        %v1348 = vadd.f32 %v1324, %v1346
        %s1349 = sld [smem:[#allocation2 + $0xb8]]
        %v1350 = vstv %s1349
        %v1351 = vmul.f32 %v1350, %v1305
        %v1352 = vmul.f32 %v1350, %v1306
        %v1353 = vadd.f32 %v1329, %v1351
        %v1354 = vadd.f32 %v1330, %v1352
        %s1355 = sld [smem:[#allocation2 + $0xdc]]
        %v1356 = vstv %s1355
        %v1357 = vmul.f32 %v1356, %v1305
        %v1358 = vmul.f32 %v1356, %v1306
        %v1359 = vadd.f32 %v1335, %v1357
        %v1360 = vadd.f32 %v1336, %v1358
        %s1361 = sld [smem:[#allocation2 + $0x100]]
        %v1362 = vstv %s1361
        %v1363 = vmul.f32 %v1362, %v1305
        %v1364 = vmul.f32 %v1362, %v1306
        %v1365 = vadd.f32 %v1341, %v1363
        %v1366 = vadd.f32 %v1342, %v1364
        %s1367 = sld [smem:[#allocation2 + $0x95]]
        %v1368 = vstv %s1367
        %v1369 = vmul.f32 %v1368, %v1317
        %v1370 = vmul.f32 %v1368, %v1318
        %v1371 = vadd.f32 %v1347, %v1369
        %v1372 = vadd.f32 %v1348, %v1370
        %s1373 = sld [smem:[#allocation2 + $0xb9]]
        %v1374 = vstv %s1373
        %v1375 = vmul.f32 %v1374, %v1317
        %v1376 = vmul.f32 %v1374, %v1318
        %v1377 = vadd.f32 %v1353, %v1375
        %v1378 = vadd.f32 %v1354, %v1376
        %s1379 = sld [smem:[#allocation2 + $0xdd]]
        %v1380 = vstv %s1379
        %v1381 = vmul.f32 %v1380, %v1317
        %v1382 = vmul.f32 %v1380, %v1318
        %v1383 = vadd.f32 %v1359, %v1381
        %v1384 = vadd.f32 %v1360, %v1382
        %s1385 = sld [smem:[#allocation2 + $0x101]]
        %v1386 = vstv %s1385
        %v1387 = vmul.f32 %v1386, %v1317
        %v1388 = vmul.f32 %v1386, %v1318
        %v1389 = vadd.f32 %v1365, %v1387
        %v1390 = vadd.f32 %v1366, %v1388
        %v1391 = vld [vmem:[%s183 + $0x2] sm:$0xff]
        %v1392 = vld [vmem:[%s183 + $0xa] sm:$0xff]
        %1393 = vrot.lane.b32.xlu0 %v1391, 1
        %v1394 = vpop.permute.xlu0 %1393
        %1395 = vrot.lane.b32.xlu0 %v1392, 1
        %v1396 = vpop.permute.xlu0 %1395
        %1397 = vrot.lane.b32.xlu0 %v1391, 127
        %v1398 = vpop.permute.xlu0 %1397
        %1399 = vrot.lane.b32.xlu0 %v1392, 127
        %v1400 = vpop.permute.xlu0 %1399
        %v1401 = vsel %vm187, %v1398, %v1394
        %v1402 = vsel %vm187, %v1400, %v1396
        %v1403 = vsel %vm188, %v1394, %v1398
        %v1404 = vsel %vm188, %v1396, %v1400
        %s1405 = sld [smem:[#allocation2 + $0x96]]
        %v1406 = vstv %s1405
        %v1407 = vmul.f32 %v1406, %v1401
        %v1408 = vmul.f32 %v1406, %v1402
        %v1409 = vadd.f32 %v1371, %v1407
        %v1410 = vadd.f32 %v1372, %v1408
        %s1411 = sld [smem:[#allocation2 + $0xba]]
        %v1412 = vstv %s1411
        %v1413 = vmul.f32 %v1412, %v1401
        %v1414 = vmul.f32 %v1412, %v1402
        %v1415 = vadd.f32 %v1377, %v1413
        %v1416 = vadd.f32 %v1378, %v1414
        %s1417 = sld [smem:[#allocation2 + $0xde]]
        %v1418 = vstv %s1417
        %v1419 = vmul.f32 %v1418, %v1401
        %v1420 = vmul.f32 %v1418, %v1402
        %v1421 = vadd.f32 %v1383, %v1419
        %v1422 = vadd.f32 %v1384, %v1420
        %s1423 = sld [smem:[#allocation2 + $0x102]]
        %v1424 = vstv %s1423
        %v1425 = vmul.f32 %v1424, %v1401
        %v1426 = vmul.f32 %v1424, %v1402
        %v1427 = vadd.f32 %v1389, %v1425
        %v1428 = vadd.f32 %v1390, %v1426
        %s1429 = sld [smem:[#allocation2 + $0x97]]
        %v1430 = vstv %s1429
        %v1431 = vmul.f32 %v1430, %v1391
        %v1432 = vmul.f32 %v1430, %v1392
        %v1433 = vadd.f32 %v1409, %v1431
        %v1434 = vadd.f32 %v1410, %v1432
        %s1435 = sld [smem:[#allocation2 + $0xbb]]
        %v1436 = vstv %s1435
        %v1437 = vmul.f32 %v1436, %v1391
        %v1438 = vmul.f32 %v1436, %v1392
        %v1439 = vadd.f32 %v1415, %v1437
        %v1440 = vadd.f32 %v1416, %v1438
        %s1441 = sld [smem:[#allocation2 + $0xdf]]
        %v1442 = vstv %s1441
        %v1443 = vmul.f32 %v1442, %v1391
        %v1444 = vmul.f32 %v1442, %v1392
        %v1445 = vadd.f32 %v1421, %v1443
        %v1446 = vadd.f32 %v1422, %v1444
        %s1447 = sld [smem:[#allocation2 + $0x103]]
        %v1448 = vstv %s1447
        %v1449 = vmul.f32 %v1448, %v1391
        %v1450 = vmul.f32 %v1448, %v1392
        %v1451 = vadd.f32 %v1427, %v1449
        %v1452 = vadd.f32 %v1428, %v1450
        %s1453 = sld [smem:[#allocation2 + $0x98]]
        %v1454 = vstv %s1453
        %v1455 = vmul.f32 %v1454, %v1403
        %v1456 = vmul.f32 %v1454, %v1404
        %v1457 = vadd.f32 %v1433, %v1455
        %v1458 = vadd.f32 %v1434, %v1456
        %s1459 = sld [smem:[#allocation2 + $0xbc]]
        %v1460 = vstv %s1459
        %v1461 = vmul.f32 %v1460, %v1403
        %v1462 = vmul.f32 %v1460, %v1404
        %v1463 = vadd.f32 %v1439, %v1461
        %v1464 = vadd.f32 %v1440, %v1462
        %s1465 = sld [smem:[#allocation2 + $0xe0]]
        %v1466 = vstv %s1465
        %v1467 = vmul.f32 %v1466, %v1403
        %v1468 = vmul.f32 %v1466, %v1404
        %v1469 = vadd.f32 %v1445, %v1467
        %v1470 = vadd.f32 %v1446, %v1468
        %s1471 = sld [smem:[#allocation2 + $0x104]]
        %v1472 = vstv %s1471
        %v1473 = vmul.f32 %v1472, %v1403
        %v1474 = vmul.f32 %v1472, %v1404
        %v1475 = vadd.f32 %v1451, %v1473
        %v1476 = vadd.f32 %v1452, %v1474
        %v1477 = vld [vmem:[%s439] sm:$0xff]
        %v1478 = vld [vmem:[%s439 + $0x8] sm:$0xff]
        %1479 = vrot.lane.b32.xlu0 %v1477, 1
        %v1480 = vpop.permute.xlu0 %1479
        %1481 = vrot.lane.b32.xlu0 %v1478, 1
        %v1482 = vpop.permute.xlu0 %1481
        %1483 = vrot.lane.b32.xlu0 %v1477, 127
        %v1484 = vpop.permute.xlu0 %1483
        %1485 = vrot.lane.b32.xlu0 %v1478, 127
        %v1486 = vpop.permute.xlu0 %1485
        %v1487 = vsel %vm187, %v1484, %v1480
        %v1488 = vsel %vm187, %v1486, %v1482
        %v1489 = vsel %vm188, %v1480, %v1484
        %v1490 = vsel %vm188, %v1482, %v1486
        %s1491 = sld [smem:[#allocation2 + $0x99]]
        %v1492 = vstv %s1491
        %v1493 = vmul.f32 %v1492, %v1487
        %v1494 = vmul.f32 %v1492, %v1488
        %v1495 = vadd.f32 %v1457, %v1493
        %v1496 = vadd.f32 %v1458, %v1494
        %s1497 = sld [smem:[#allocation2 + $0xbd]]
        %v1498 = vstv %s1497
        %v1499 = vmul.f32 %v1498, %v1487
        %v1500 = vmul.f32 %v1498, %v1488
        %v1501 = vadd.f32 %v1463, %v1499
        %v1502 = vadd.f32 %v1464, %v1500
        %s1503 = sld [smem:[#allocation2 + $0xe1]]
        %v1504 = vstv %s1503
        %v1505 = vmul.f32 %v1504, %v1487
        %v1506 = vmul.f32 %v1504, %v1488
        %v1507 = vadd.f32 %v1469, %v1505
        %v1508 = vadd.f32 %v1470, %v1506
        %s1509 = sld [smem:[#allocation2 + $0x105]]
        %v1510 = vstv %s1509
        %v1511 = vmul.f32 %v1510, %v1487
        %v1512 = vmul.f32 %v1510, %v1488
        %v1513 = vadd.f32 %v1475, %v1511
        %v1514 = vadd.f32 %v1476, %v1512
        %s1515 = sld [smem:[#allocation2 + $0x9a]]
        %v1516 = vstv %s1515
        %v1517 = vmul.f32 %v1516, %v1477
        %v1518 = vmul.f32 %v1516, %v1478
        %v1519 = vadd.f32 %v1495, %v1517
        %v1520 = vadd.f32 %v1496, %v1518
        %s1521 = sld [smem:[#allocation2 + $0xbe]]
        %v1522 = vstv %s1521
        %v1523 = vmul.f32 %v1522, %v1477
        %v1524 = vmul.f32 %v1522, %v1478
        %v1525 = vadd.f32 %v1501, %v1523
        %v1526 = vadd.f32 %v1502, %v1524
        %s1527 = sld [smem:[#allocation2 + $0xe2]]
        %v1528 = vstv %s1527
        %v1529 = vmul.f32 %v1528, %v1477
        %v1530 = vmul.f32 %v1528, %v1478
        %v1531 = vadd.f32 %v1507, %v1529
        %v1532 = vadd.f32 %v1508, %v1530
        %s1533 = sld [smem:[#allocation2 + $0x106]]
        %v1534 = vstv %s1533
        %v1535 = vmul.f32 %v1534, %v1477
        %v1536 = vmul.f32 %v1534, %v1478
        %v1537 = vadd.f32 %v1513, %v1535
        %v1538 = vadd.f32 %v1514, %v1536
        %s1539 = sld [smem:[#allocation2 + $0x9b]]
        %v1540 = vstv %s1539
        %v1541 = vmul.f32 %v1540, %v1489
        %v1542 = vmul.f32 %v1540, %v1490
        %v1543 = vadd.f32 %v1519, %v1541
        %v1544 = vadd.f32 %v1520, %v1542
        %s1545 = sld [smem:[#allocation2 + $0xbf]]
        %v1546 = vstv %s1545
        %v1547 = vmul.f32 %v1546, %v1489
        %v1548 = vmul.f32 %v1546, %v1490
        %v1549 = vadd.f32 %v1525, %v1547
        %v1550 = vadd.f32 %v1526, %v1548
        %s1551 = sld [smem:[#allocation2 + $0xe3]]
        %v1552 = vstv %s1551
        %v1553 = vmul.f32 %v1552, %v1489
        %v1554 = vmul.f32 %v1552, %v1490
        %v1555 = vadd.f32 %v1531, %v1553
        %v1556 = vadd.f32 %v1532, %v1554
        %s1557 = sld [smem:[#allocation2 + $0x107]]
        %v1558 = vstv %s1557
        %v1559 = vmul.f32 %v1558, %v1489
        %v1560 = vmul.f32 %v1558, %v1490
        %v1561 = vadd.f32 %v1537, %v1559
        %v1562 = vadd.f32 %v1538, %v1560
        %v1563 = vld [vmem:[%s439 + $0x1] sm:$0xff]
        %v1564 = vld [vmem:[%s439 + $0x9] sm:$0xff]
        %1565 = vrot.lane.b32.xlu0 %v1563, 1
        %v1566 = vpop.permute.xlu0 %1565
        %1567 = vrot.lane.b32.xlu0 %v1564, 1
        %v1568 = vpop.permute.xlu0 %1567
        %1569 = vrot.lane.b32.xlu0 %v1563, 127
        %v1570 = vpop.permute.xlu0 %1569
        %1571 = vrot.lane.b32.xlu0 %v1564, 127
        %v1572 = vpop.permute.xlu0 %1571
        %v1573 = vsel %vm187, %v1570, %v1566
        %v1574 = vsel %vm187, %v1572, %v1568
        %v1575 = vsel %vm188, %v1566, %v1570
        %v1576 = vsel %vm188, %v1568, %v1572
        %s1577 = sld [smem:[#allocation2 + $0x9c]]
        %v1578 = vstv %s1577
        %v1579 = vmul.f32 %v1578, %v1573
        %v1580 = vmul.f32 %v1578, %v1574
        %v1581 = vadd.f32 %v1543, %v1579
        %v1582 = vadd.f32 %v1544, %v1580
        %s1583 = sld [smem:[#allocation2 + $0xc0]]
        %v1584 = vstv %s1583
        %v1585 = vmul.f32 %v1584, %v1573
        %v1586 = vmul.f32 %v1584, %v1574
        %v1587 = vadd.f32 %v1549, %v1585
        %v1588 = vadd.f32 %v1550, %v1586
        %s1589 = sld [smem:[#allocation2 + $0xe4]]
        %v1590 = vstv %s1589
        %v1591 = vmul.f32 %v1590, %v1573
        %v1592 = vmul.f32 %v1590, %v1574
        %v1593 = vadd.f32 %v1555, %v1591
        %v1594 = vadd.f32 %v1556, %v1592
        %s1595 = sld [smem:[#allocation2 + $0x108]]
        %v1596 = vstv %s1595
        %v1597 = vmul.f32 %v1596, %v1573
        %v1598 = vmul.f32 %v1596, %v1574
        %v1599 = vadd.f32 %v1561, %v1597
        %v1600 = vadd.f32 %v1562, %v1598
        %s1601 = sld [smem:[#allocation2 + $0x9d]]
        %v1602 = vstv %s1601
        %v1603 = vmul.f32 %v1602, %v1563
        %v1604 = vmul.f32 %v1602, %v1564
        %v1605 = vadd.f32 %v1581, %v1603
        %v1606 = vadd.f32 %v1582, %v1604
        %s1607 = sld [smem:[#allocation2 + $0xc1]]
        %v1608 = vstv %s1607
        %v1609 = vmul.f32 %v1608, %v1563
        %v1610 = vmul.f32 %v1608, %v1564
        %v1611 = vadd.f32 %v1587, %v1609
        %v1612 = vadd.f32 %v1588, %v1610
        %s1613 = sld [smem:[#allocation2 + $0xe5]]
        %v1614 = vstv %s1613
        %v1615 = vmul.f32 %v1614, %v1563
        %v1616 = vmul.f32 %v1614, %v1564
        %v1617 = vadd.f32 %v1593, %v1615
        %v1618 = vadd.f32 %v1594, %v1616
        %s1619 = sld [smem:[#allocation2 + $0x109]]
        %v1620 = vstv %s1619
        %v1621 = vmul.f32 %v1620, %v1563
        %v1622 = vmul.f32 %v1620, %v1564
        %v1623 = vadd.f32 %v1599, %v1621
        %v1624 = vadd.f32 %v1600, %v1622
        %s1625 = sld [smem:[#allocation2 + $0x9e]]
        %v1626 = vstv %s1625
        %v1627 = vmul.f32 %v1626, %v1575
        %v1628 = vmul.f32 %v1626, %v1576
        %v1629 = vadd.f32 %v1605, %v1627
        %v1630 = vadd.f32 %v1606, %v1628
        %s1631 = sld [smem:[#allocation2 + $0xc2]]
        %v1632 = vstv %s1631
        %v1633 = vmul.f32 %v1632, %v1575
        %v1634 = vmul.f32 %v1632, %v1576
        %v1635 = vadd.f32 %v1611, %v1633
        %v1636 = vadd.f32 %v1612, %v1634
        %s1637 = sld [smem:[#allocation2 + $0xe6]]
        %v1638 = vstv %s1637
        %v1639 = vmul.f32 %v1638, %v1575
        %v1640 = vmul.f32 %v1638, %v1576
        %v1641 = vadd.f32 %v1617, %v1639
        %v1642 = vadd.f32 %v1618, %v1640
        %s1643 = sld [smem:[#allocation2 + $0x10a]]
        %v1644 = vstv %s1643
        %v1645 = vmul.f32 %v1644, %v1575
        %v1646 = vmul.f32 %v1644, %v1576
        %v1647 = vadd.f32 %v1623, %v1645
        %v1648 = vadd.f32 %v1624, %v1646
        %v1649 = vld [vmem:[%s439 + $0x2] sm:$0xff]
        %v1650 = vld [vmem:[%s439 + $0xa] sm:$0xff]
        %1651 = vrot.lane.b32.xlu0 %v1649, 1
        %v1652 = vpop.permute.xlu0 %1651
        %1653 = vrot.lane.b32.xlu0 %v1650, 1
        %v1654 = vpop.permute.xlu0 %1653
        %1655 = vrot.lane.b32.xlu0 %v1649, 127
        %v1656 = vpop.permute.xlu0 %1655
        %1657 = vrot.lane.b32.xlu0 %v1650, 127
        %v1658 = vpop.permute.xlu0 %1657
        %v1659 = vsel %vm187, %v1656, %v1652
        %v1660 = vsel %vm187, %v1658, %v1654
        %v1661 = vsel %vm188, %v1652, %v1656
        %v1662 = vsel %vm188, %v1654, %v1658
        %s1663 = sld [smem:[#allocation2 + $0x9f]]
        %v1664 = vstv %s1663
        %v1665 = vmul.f32 %v1664, %v1659
        %v1666 = vmul.f32 %v1664, %v1660
        %v1667 = vadd.f32 %v1629, %v1665
        %v1668 = vadd.f32 %v1630, %v1666
        %s1669 = sld [smem:[#allocation2 + $0xc3]]
        %v1670 = vstv %s1669
        %v1671 = vmul.f32 %v1670, %v1659
        %v1672 = vmul.f32 %v1670, %v1660
        %v1673 = vadd.f32 %v1635, %v1671
        %v1674 = vadd.f32 %v1636, %v1672
        %s1675 = sld [smem:[#allocation2 + $0xe7]]
        %v1676 = vstv %s1675
        %v1677 = vmul.f32 %v1676, %v1659
        %v1678 = vmul.f32 %v1676, %v1660
        %v1679 = vadd.f32 %v1641, %v1677
        %v1680 = vadd.f32 %v1642, %v1678
        %s1681 = sld [smem:[#allocation2 + $0x10b]]
        %v1682 = vstv %s1681
        %v1683 = vmul.f32 %v1682, %v1659
        %v1684 = vmul.f32 %v1682, %v1660
        %v1685 = vadd.f32 %v1647, %v1683
        %v1686 = vadd.f32 %v1648, %v1684
        %s1687 = sld [smem:[#allocation2 + $0xa0]]
        %v1688 = vstv %s1687
        %v1689 = vmul.f32 %v1688, %v1649
        %v1690 = vmul.f32 %v1688, %v1650
        %v1691 = vadd.f32 %v1667, %v1689
        %v1692 = vadd.f32 %v1668, %v1690
        %s1693 = sld [smem:[#allocation2 + $0xc4]]
        %v1694 = vstv %s1693
        %v1695 = vmul.f32 %v1694, %v1649
        %v1696 = vmul.f32 %v1694, %v1650
        %v1697 = vadd.f32 %v1673, %v1695
        %v1698 = vadd.f32 %v1674, %v1696
        %s1699 = sld [smem:[#allocation2 + $0xe8]]
        %v1700 = vstv %s1699
        %v1701 = vmul.f32 %v1700, %v1649
        %v1702 = vmul.f32 %v1700, %v1650
        %v1703 = vadd.f32 %v1679, %v1701
        %v1704 = vadd.f32 %v1680, %v1702
        %s1705 = sld [smem:[#allocation2 + $0x10c]]
        %v1706 = vstv %s1705
        %v1707 = vmul.f32 %v1706, %v1649
        %v1708 = vmul.f32 %v1706, %v1650
        %v1709 = vadd.f32 %v1685, %v1707
        %v1710 = vadd.f32 %v1686, %v1708
        %s1711 = sld [smem:[#allocation2 + $0xa1]]
        %v1712 = vstv %s1711
        %v1713 = vmul.f32 %v1712, %v1661
        %v1714 = vmul.f32 %v1712, %v1662
        %v1715 = vadd.f32 %v1691, %v1713
        %v1716 = vadd.f32 %v1692, %v1714
        %s1717 = sld [smem:[#allocation2 + $0xc5]]
        %v1718 = vstv %s1717
        %v1719 = vmul.f32 %v1718, %v1661
        %v1720 = vmul.f32 %v1718, %v1662
        %v1721 = vadd.f32 %v1697, %v1719
        %v1722 = vadd.f32 %v1698, %v1720
        %s1723 = sld [smem:[#allocation2 + $0xe9]]
        %v1724 = vstv %s1723
        %v1725 = vmul.f32 %v1724, %v1661
        %v1726 = vmul.f32 %v1724, %v1662
        %v1727 = vadd.f32 %v1703, %v1725
        %v1728 = vadd.f32 %v1704, %v1726
        %s1729 = sld [smem:[#allocation2 + $0x10d]]
        %v1730 = vstv %s1729
        %v1731 = vmul.f32 %v1730, %v1661
        %v1732 = vmul.f32 %v1730, %v1662
        %v1733 = vadd.f32 %v1709, %v1731
        %v1734 = vadd.f32 %v1710, %v1732
        %v1735 = vld [vmem:[%s698] sm:$0xff]
        %v1736 = vld [vmem:[%s698 + $0x8] sm:$0xff]
        %1737 = vrot.lane.b32.xlu0 %v1735, 1
        %v1738 = vpop.permute.xlu0 %1737
        %1739 = vrot.lane.b32.xlu0 %v1736, 1
        %v1740 = vpop.permute.xlu0 %1739
        %1741 = vrot.lane.b32.xlu0 %v1735, 127
        %v1742 = vpop.permute.xlu0 %1741
        %1743 = vrot.lane.b32.xlu0 %v1736, 127
        %v1744 = vpop.permute.xlu0 %1743
        %v1745 = vsel %vm187, %v1742, %v1738
        %v1746 = vsel %vm187, %v1744, %v1740
        %v1747 = vsel %vm188, %v1738, %v1742
        %v1748 = vsel %vm188, %v1740, %v1744
        %s1749 = sld [smem:[#allocation2 + $0xa2]]
        %v1750 = vstv %s1749
        %v1751 = vmul.f32 %v1750, %v1745
        %v1752 = vmul.f32 %v1750, %v1746
        %v1753 = vadd.f32 %v1715, %v1751
        %v1754 = vadd.f32 %v1716, %v1752
        %s1755 = sld [smem:[#allocation2 + $0xc6]]
        %v1756 = vstv %s1755
        %v1757 = vmul.f32 %v1756, %v1745
        %v1758 = vmul.f32 %v1756, %v1746
        %v1759 = vadd.f32 %v1721, %v1757
        %v1760 = vadd.f32 %v1722, %v1758
        %s1761 = sld [smem:[#allocation2 + $0xea]]
        %v1762 = vstv %s1761
        %v1763 = vmul.f32 %v1762, %v1745
        %v1764 = vmul.f32 %v1762, %v1746
        %v1765 = vadd.f32 %v1727, %v1763
        %v1766 = vadd.f32 %v1728, %v1764
        %s1767 = sld [smem:[#allocation2 + $0x10e]]
        %v1768 = vstv %s1767
        %v1769 = vmul.f32 %v1768, %v1745
        %v1770 = vmul.f32 %v1768, %v1746
        %v1771 = vadd.f32 %v1733, %v1769
        %v1772 = vadd.f32 %v1734, %v1770
        %s1773 = sld [smem:[#allocation2 + $0xa3]]
        %v1774 = vstv %s1773
        %v1775 = vmul.f32 %v1774, %v1735
        %v1776 = vmul.f32 %v1774, %v1736
        %v1777 = vadd.f32 %v1753, %v1775
        %v1778 = vadd.f32 %v1754, %v1776
        %s1779 = sld [smem:[#allocation2 + $0xc7]]
        %v1780 = vstv %s1779
        %v1781 = vmul.f32 %v1780, %v1735
        %v1782 = vmul.f32 %v1780, %v1736
        %v1783 = vadd.f32 %v1759, %v1781
        %v1784 = vadd.f32 %v1760, %v1782
        %s1785 = sld [smem:[#allocation2 + $0xeb]]
        %v1786 = vstv %s1785
        %v1787 = vmul.f32 %v1786, %v1735
        %v1788 = vmul.f32 %v1786, %v1736
        %v1789 = vadd.f32 %v1765, %v1787
        %v1790 = vadd.f32 %v1766, %v1788
        %s1791 = sld [smem:[#allocation2 + $0x10f]]
        %v1792 = vstv %s1791
        %v1793 = vmul.f32 %v1792, %v1735
        %v1794 = vmul.f32 %v1792, %v1736
        %v1795 = vadd.f32 %v1771, %v1793
        %v1796 = vadd.f32 %v1772, %v1794
        %s1797 = sld [smem:[#allocation2 + $0xa4]]
        %v1798 = vstv %s1797
        %v1799 = vmul.f32 %v1798, %v1747
        %v1800 = vmul.f32 %v1798, %v1748
        %v1801 = vadd.f32 %v1777, %v1799
        %v1802 = vadd.f32 %v1778, %v1800
        %s1803 = sld [smem:[#allocation2 + $0xc8]]
        %v1804 = vstv %s1803
        %v1805 = vmul.f32 %v1804, %v1747
        %v1806 = vmul.f32 %v1804, %v1748
        %v1807 = vadd.f32 %v1783, %v1805
        %v1808 = vadd.f32 %v1784, %v1806
        %s1809 = sld [smem:[#allocation2 + $0xec]]
        %v1810 = vstv %s1809
        %v1811 = vmul.f32 %v1810, %v1747
        %v1812 = vmul.f32 %v1810, %v1748
        %v1813 = vadd.f32 %v1789, %v1811
        %v1814 = vadd.f32 %v1790, %v1812
        %s1815 = sld [smem:[#allocation2 + $0x110]]
        %v1816 = vstv %s1815
        %v1817 = vmul.f32 %v1816, %v1747
        %v1818 = vmul.f32 %v1816, %v1748
        %v1819 = vadd.f32 %v1795, %v1817
        %v1820 = vadd.f32 %v1796, %v1818
        %v1821 = vld [vmem:[%s698 + $0x1] sm:$0xff]
        %v1822 = vld [vmem:[%s698 + $0x9] sm:$0xff]
        %1823 = vrot.lane.b32.xlu0 %v1821, 1
        %v1824 = vpop.permute.xlu0 %1823
        %1825 = vrot.lane.b32.xlu0 %v1822, 1
        %v1826 = vpop.permute.xlu0 %1825
        %1827 = vrot.lane.b32.xlu0 %v1821, 127
        %v1828 = vpop.permute.xlu0 %1827
        %1829 = vrot.lane.b32.xlu0 %v1822, 127
        %v1830 = vpop.permute.xlu0 %1829
        %v1831 = vsel %vm187, %v1828, %v1824
        %v1832 = vsel %vm187, %v1830, %v1826
        %v1833 = vsel %vm188, %v1824, %v1828
        %v1834 = vsel %vm188, %v1826, %v1830
        %s1835 = sld [smem:[#allocation2 + $0xa5]]
        %v1836 = vstv %s1835
        %v1837 = vmul.f32 %v1836, %v1831
        %v1838 = vmul.f32 %v1836, %v1832
        %v1839 = vadd.f32 %v1801, %v1837
        %v1840 = vadd.f32 %v1802, %v1838
        %s1841 = sld [smem:[#allocation2 + $0xc9]]
        %v1842 = vstv %s1841
        %v1843 = vmul.f32 %v1842, %v1831
        %v1844 = vmul.f32 %v1842, %v1832
        %v1845 = vadd.f32 %v1807, %v1843
        %v1846 = vadd.f32 %v1808, %v1844
        %s1847 = sld [smem:[#allocation2 + $0xed]]
        %v1848 = vstv %s1847
        %v1849 = vmul.f32 %v1848, %v1831
        %v1850 = vmul.f32 %v1848, %v1832
        %v1851 = vadd.f32 %v1813, %v1849
        %v1852 = vadd.f32 %v1814, %v1850
        %s1853 = sld [smem:[#allocation2 + $0x111]]
        %v1854 = vstv %s1853
        %v1855 = vmul.f32 %v1854, %v1831
        %v1856 = vmul.f32 %v1854, %v1832
        %v1857 = vadd.f32 %v1819, %v1855
        %v1858 = vadd.f32 %v1820, %v1856
        %s1859 = sld [smem:[#allocation2 + $0xa6]]
        %v1860 = vstv %s1859
        %v1861 = vmul.f32 %v1860, %v1821
        %v1862 = vmul.f32 %v1860, %v1822
        %v1863 = vadd.f32 %v1839, %v1861
        %v1864 = vadd.f32 %v1840, %v1862
        %s1865 = sld [smem:[#allocation2 + $0xca]]
        %v1866 = vstv %s1865
        %v1867 = vmul.f32 %v1866, %v1821
        %v1868 = vmul.f32 %v1866, %v1822
        %v1869 = vadd.f32 %v1845, %v1867
        %v1870 = vadd.f32 %v1846, %v1868
        %s1871 = sld [smem:[#allocation2 + $0xee]]
        %v1872 = vstv %s1871
        %v1873 = vmul.f32 %v1872, %v1821
        %v1874 = vmul.f32 %v1872, %v1822
        %v1875 = vadd.f32 %v1851, %v1873
        %v1876 = vadd.f32 %v1852, %v1874
        %s1877 = sld [smem:[#allocation2 + $0x112]]
        %v1878 = vstv %s1877
        %v1879 = vmul.f32 %v1878, %v1821
        %v1880 = vmul.f32 %v1878, %v1822
        %v1881 = vadd.f32 %v1857, %v1879
        %v1882 = vadd.f32 %v1858, %v1880
        %s1883 = sld [smem:[#allocation2 + $0xa7]]
        %v1884 = vstv %s1883
        %v1885 = vmul.f32 %v1884, %v1833
        %v1886 = vmul.f32 %v1884, %v1834
        %v1887 = vadd.f32 %v1863, %v1885
        %v1888 = vadd.f32 %v1864, %v1886
        %s1889 = sld [smem:[#allocation2 + $0xcb]]
        %v1890 = vstv %s1889
        %v1891 = vmul.f32 %v1890, %v1833
        %v1892 = vmul.f32 %v1890, %v1834
        %v1893 = vadd.f32 %v1869, %v1891
        %v1894 = vadd.f32 %v1870, %v1892
        %s1895 = sld [smem:[#allocation2 + $0xef]]
        %v1896 = vstv %s1895
        %v1897 = vmul.f32 %v1896, %v1833
        %v1898 = vmul.f32 %v1896, %v1834
        %v1899 = vadd.f32 %v1875, %v1897
        %v1900 = vadd.f32 %v1876, %v1898
        %s1901 = sld [smem:[#allocation2 + $0x113]]
        %v1902 = vstv %s1901
        %v1903 = vmul.f32 %v1902, %v1833
        %v1904 = vmul.f32 %v1902, %v1834
        %v1905 = vadd.f32 %v1881, %v1903
        %v1906 = vadd.f32 %v1882, %v1904
        %v1907 = vld [vmem:[%s698 + $0x2] sm:$0xff]
        %v1908 = vld [vmem:[%s698 + $0xa] sm:$0xff]
        %1909 = vrot.lane.b32.xlu0 %v1907, 1
        %v1910 = vpop.permute.xlu0 %1909
        %1911 = vrot.lane.b32.xlu0 %v1908, 1
        %v1912 = vpop.permute.xlu0 %1911
        %1913 = vrot.lane.b32.xlu0 %v1907, 127
        %v1914 = vpop.permute.xlu0 %1913
        %1915 = vrot.lane.b32.xlu0 %v1908, 127
        %v1916 = vpop.permute.xlu0 %1915
        %v1917 = vsel %vm187, %v1914, %v1910
        %v1918 = vsel %vm187, %v1916, %v1912
        %v1919 = vsel %vm188, %v1910, %v1914
        %v1920 = vsel %vm188, %v1912, %v1916
        %s1921 = sld [smem:[#allocation2 + $0xa8]]
        %v1922 = vstv %s1921
        %v1923 = vmul.f32 %v1922, %v1917
        %v1924 = vmul.f32 %v1922, %v1918
        %v1925 = vadd.f32 %v1887, %v1923
        %v1926 = vadd.f32 %v1888, %v1924
        %s1927 = sld [smem:[#allocation2 + $0xcc]]
        %v1928 = vstv %s1927
        %v1929 = vmul.f32 %v1928, %v1917
        %v1930 = vmul.f32 %v1928, %v1918
        %v1931 = vadd.f32 %v1893, %v1929
        %v1932 = vadd.f32 %v1894, %v1930
        %s1933 = sld [smem:[#allocation2 + $0xf0]]
        %v1934 = vstv %s1933
        %v1935 = vmul.f32 %v1934, %v1917
        %v1936 = vmul.f32 %v1934, %v1918
        %v1937 = vadd.f32 %v1899, %v1935
        %v1938 = vadd.f32 %v1900, %v1936
        %s1939 = sld [smem:[#allocation2 + $0x114]]
        %v1940 = vstv %s1939
        %v1941 = vmul.f32 %v1940, %v1917
        %v1942 = vmul.f32 %v1940, %v1918
        %v1943 = vadd.f32 %v1905, %v1941
        %v1944 = vadd.f32 %v1906, %v1942
        %s1945 = sld [smem:[#allocation2 + $0xa9]]
        %v1946 = vstv %s1945
        %v1947 = vmul.f32 %v1946, %v1907
        %v1948 = vmul.f32 %v1946, %v1908
        %v1949 = vadd.f32 %v1925, %v1947
        %v1950 = vadd.f32 %v1926, %v1948
        %s1951 = sld [smem:[#allocation2 + $0xcd]]
        %v1952 = vstv %s1951
        %v1953 = vmul.f32 %v1952, %v1907
        %v1954 = vmul.f32 %v1952, %v1908
        %v1955 = vadd.f32 %v1931, %v1953
        %v1956 = vadd.f32 %v1932, %v1954
        %s1957 = sld [smem:[#allocation2 + $0xf1]]
        %v1958 = vstv %s1957
        %v1959 = vmul.f32 %v1958, %v1907
        %v1960 = vmul.f32 %v1958, %v1908
        %v1961 = vadd.f32 %v1937, %v1959
        %v1962 = vadd.f32 %v1938, %v1960
        %s1963 = sld [smem:[#allocation2 + $0x115]]
        %v1964 = vstv %s1963
        %v1965 = vmul.f32 %v1964, %v1907
        %v1966 = vmul.f32 %v1964, %v1908
        %v1967 = vadd.f32 %v1943, %v1965
        %v1968 = vadd.f32 %v1944, %v1966
        %s1969 = sld [smem:[#allocation2 + $0xaa]]
        %v1970 = vstv %s1969
        %v1971 = vmul.f32 %v1970, %v1919
        %v1972 = vmul.f32 %v1970, %v1920
        %v1973 = vadd.f32 %v1949, %v1971
        %v1974 = vadd.f32 %v1950, %v1972
        %s1975 = sld [smem:[#allocation2 + $0xce]]
        %v1976 = vstv %s1975
        %v1977 = vmul.f32 %v1976, %v1919
        %v1978 = vmul.f32 %v1976, %v1920
        %v1979 = vadd.f32 %v1955, %v1977
        %v1980 = vadd.f32 %v1956, %v1978
        %s1981 = sld [smem:[#allocation2 + $0xf2]]
        %v1982 = vstv %s1981
        %v1983 = vmul.f32 %v1982, %v1919
        %v1984 = vmul.f32 %v1982, %v1920
        %v1985 = vadd.f32 %v1961, %v1983
        %v1986 = vadd.f32 %v1962, %v1984
        %s1987 = sld [smem:[#allocation2 + $0x116]]
        %v1988 = vstv %s1987
        %v1989 = vmul.f32 %v1988, %v1919
        %v1990 = vmul.f32 %v1988, %v1920
        %v1991 = vadd.f32 %v1967, %v1989
        %v1992 = vadd.f32 %v1968, %v1990
        %v1993 = vld [vmem:[%s957] sm:$0xff]
        %v1994 = vld [vmem:[%s957 + $0x8] sm:$0xff]
        %1995 = vrot.lane.b32.xlu0 %v1993, 1
        %v1996 = vpop.permute.xlu0 %1995
        %1997 = vrot.lane.b32.xlu0 %v1994, 1
        %v1998 = vpop.permute.xlu0 %1997
        %1999 = vrot.lane.b32.xlu0 %v1993, 127
        %v2000 = vpop.permute.xlu0 %1999
        %2001 = vrot.lane.b32.xlu0 %v1994, 127
        %v2002 = vpop.permute.xlu0 %2001
        %v2003 = vsel %vm187, %v2000, %v1996
        %v2004 = vsel %vm187, %v2002, %v1998
        %v2005 = vsel %vm188, %v1996, %v2000
        %v2006 = vsel %vm188, %v1998, %v2002
        %s2007 = sld [smem:[#allocation2 + $0xab]]
        %v2008 = vstv %s2007
        %v2009 = vmul.f32 %v2008, %v2003
        %v2010 = vmul.f32 %v2008, %v2004
        %v2011 = vadd.f32 %v1973, %v2009
        %v2012 = vadd.f32 %v1974, %v2010
        %s2013 = sld [smem:[#allocation2 + $0xcf]]
        %v2014 = vstv %s2013
        %v2015 = vmul.f32 %v2014, %v2003
        %v2016 = vmul.f32 %v2014, %v2004
        %v2017 = vadd.f32 %v1979, %v2015
        %v2018 = vadd.f32 %v1980, %v2016
        %s2019 = sld [smem:[#allocation2 + $0xf3]]
        %v2020 = vstv %s2019
        %v2021 = vmul.f32 %v2020, %v2003
        %v2022 = vmul.f32 %v2020, %v2004
        %v2023 = vadd.f32 %v1985, %v2021
        %v2024 = vadd.f32 %v1986, %v2022
        %s2025 = sld [smem:[#allocation2 + $0x117]]
        %v2026 = vstv %s2025
        %v2027 = vmul.f32 %v2026, %v2003
        %v2028 = vmul.f32 %v2026, %v2004
        %v2029 = vadd.f32 %v1991, %v2027
        %v2030 = vadd.f32 %v1992, %v2028
        %s2031 = sld [smem:[#allocation2 + $0xac]]
        %v2032 = vstv %s2031
        %v2033 = vmul.f32 %v2032, %v1993
        %v2034 = vmul.f32 %v2032, %v1994
        %v2035 = vadd.f32 %v2011, %v2033
        %v2036 = vadd.f32 %v2012, %v2034
        %s2037 = sld [smem:[#allocation2 + $0xd0]]
        %v2038 = vstv %s2037
        %v2039 = vmul.f32 %v2038, %v1993
        %v2040 = vmul.f32 %v2038, %v1994
        %v2041 = vadd.f32 %v2017, %v2039
        %v2042 = vadd.f32 %v2018, %v2040
        %s2043 = sld [smem:[#allocation2 + $0xf4]]
        %v2044 = vstv %s2043
        %v2045 = vmul.f32 %v2044, %v1993
        %v2046 = vmul.f32 %v2044, %v1994
        %v2047 = vadd.f32 %v2023, %v2045
        %v2048 = vadd.f32 %v2024, %v2046
        %s2049 = sld [smem:[#allocation2 + $0x118]]
        %v2050 = vstv %s2049
        %v2051 = vmul.f32 %v2050, %v1993
        %v2052 = vmul.f32 %v2050, %v1994
        %v2053 = vadd.f32 %v2029, %v2051
        %v2054 = vadd.f32 %v2030, %v2052
        %s2055 = sld [smem:[#allocation2 + $0xad]]
        %v2056 = vstv %s2055
        %v2057 = vmul.f32 %v2056, %v2005
        %v2058 = vmul.f32 %v2056, %v2006
        %v2059 = vadd.f32 %v2035, %v2057
        %v2060 = vadd.f32 %v2036, %v2058
        %s2061 = sld [smem:[#allocation2 + $0xd1]]
        %v2062 = vstv %s2061
        %v2063 = vmul.f32 %v2062, %v2005
        %v2064 = vmul.f32 %v2062, %v2006
        %v2065 = vadd.f32 %v2041, %v2063
        %v2066 = vadd.f32 %v2042, %v2064
        %s2067 = sld [smem:[#allocation2 + $0xf5]]
        %v2068 = vstv %s2067
        %v2069 = vmul.f32 %v2068, %v2005
        %v2070 = vmul.f32 %v2068, %v2006
        %v2071 = vadd.f32 %v2047, %v2069
        %v2072 = vadd.f32 %v2048, %v2070
        %s2073 = sld [smem:[#allocation2 + $0x119]]
        %v2074 = vstv %s2073
        %v2075 = vmul.f32 %v2074, %v2005
        %v2076 = vmul.f32 %v2074, %v2006
        %v2077 = vadd.f32 %v2053, %v2075
        %v2078 = vadd.f32 %v2054, %v2076
        %v2079 = vld [vmem:[%s957 + $0x1] sm:$0xff]
        %v2080 = vld [vmem:[%s957 + $0x9] sm:$0xff]
        %2081 = vrot.lane.b32.xlu0 %v2079, 1
        %v2082 = vpop.permute.xlu0 %2081
        %2083 = vrot.lane.b32.xlu0 %v2080, 1
        %v2084 = vpop.permute.xlu0 %2083
        %2085 = vrot.lane.b32.xlu0 %v2079, 127
        %v2086 = vpop.permute.xlu0 %2085
        %2087 = vrot.lane.b32.xlu0 %v2080, 127
        %v2088 = vpop.permute.xlu0 %2087
        %v2089 = vsel %vm187, %v2086, %v2082
        %v2090 = vsel %vm187, %v2088, %v2084
        %v2091 = vsel %vm188, %v2082, %v2086
        %v2092 = vsel %vm188, %v2084, %v2088
        %s2093 = sld [smem:[#allocation2 + $0xae]]
        %v2094 = vstv %s2093
        %v2095 = vmul.f32 %v2094, %v2089
        %v2096 = vmul.f32 %v2094, %v2090
        %v2097 = vadd.f32 %v2059, %v2095
        %v2098 = vadd.f32 %v2060, %v2096
        %s2099 = sld [smem:[#allocation2 + $0xd2]]
        %v2100 = vstv %s2099
        %v2101 = vmul.f32 %v2100, %v2089
        %v2102 = vmul.f32 %v2100, %v2090
        %v2103 = vadd.f32 %v2065, %v2101
        %v2104 = vadd.f32 %v2066, %v2102
        %s2105 = sld [smem:[#allocation2 + $0xf6]]
        %v2106 = vstv %s2105
        %v2107 = vmul.f32 %v2106, %v2089
        %v2108 = vmul.f32 %v2106, %v2090
        %v2109 = vadd.f32 %v2071, %v2107
        %v2110 = vadd.f32 %v2072, %v2108
        %s2111 = sld [smem:[#allocation2 + $0x11a]]
        %v2112 = vstv %s2111
        %v2113 = vmul.f32 %v2112, %v2089
        %v2114 = vmul.f32 %v2112, %v2090
        %v2115 = vadd.f32 %v2077, %v2113
        %v2116 = vadd.f32 %v2078, %v2114
        %s2117 = sld [smem:[#allocation2 + $0xaf]]
        %v2118 = vstv %s2117
        %v2119 = vmul.f32 %v2118, %v2079
        %v2120 = vmul.f32 %v2118, %v2080
        %v2121 = vadd.f32 %v2097, %v2119
        %v2122 = vadd.f32 %v2098, %v2120
        %s2123 = sld [smem:[#allocation2 + $0xd3]]
        %v2124 = vstv %s2123
        %v2125 = vmul.f32 %v2124, %v2079
        %v2126 = vmul.f32 %v2124, %v2080
        %v2127 = vadd.f32 %v2103, %v2125
        %v2128 = vadd.f32 %v2104, %v2126
        %s2129 = sld [smem:[#allocation2 + $0xf7]]
        %v2130 = vstv %s2129
        %v2131 = vmul.f32 %v2130, %v2079
        %v2132 = vmul.f32 %v2130, %v2080
        %v2133 = vadd.f32 %v2109, %v2131
        %v2134 = vadd.f32 %v2110, %v2132
        %s2135 = sld [smem:[#allocation2 + $0x11b]]
        %v2136 = vstv %s2135
        %v2137 = vmul.f32 %v2136, %v2079
        %v2138 = vmul.f32 %v2136, %v2080
        %v2139 = vadd.f32 %v2115, %v2137
        %v2140 = vadd.f32 %v2116, %v2138
        %s2141 = sld [smem:[#allocation2 + $0xb0]]
        %v2142 = vstv %s2141
        %v2143 = vmul.f32 %v2142, %v2091
        %v2144 = vmul.f32 %v2142, %v2092
        %v2145 = vadd.f32 %v2121, %v2143
        %v2146 = vadd.f32 %v2122, %v2144
        %s2147 = sld [smem:[#allocation2 + $0xd4]]
        %v2148 = vstv %s2147
        %v2149 = vmul.f32 %v2148, %v2091
        %v2150 = vmul.f32 %v2148, %v2092
        %v2151 = vadd.f32 %v2127, %v2149
        %v2152 = vadd.f32 %v2128, %v2150
        %s2153 = sld [smem:[#allocation2 + $0xf8]]
        %v2154 = vstv %s2153
        %v2155 = vmul.f32 %v2154, %v2091
        %v2156 = vmul.f32 %v2154, %v2092
        %v2157 = vadd.f32 %v2133, %v2155
        %v2158 = vadd.f32 %v2134, %v2156
        %s2159 = sld [smem:[#allocation2 + $0x11c]]
        %v2160 = vstv %s2159
        %v2161 = vmul.f32 %v2160, %v2091
        %v2162 = vmul.f32 %v2160, %v2092
        %v2163 = vadd.f32 %v2139, %v2161
        %v2164 = vadd.f32 %v2140, %v2162
        %v2165 = vld [vmem:[%s957 + $0x2] sm:$0xff]
        %v2166 = vld [vmem:[%s957 + $0xa] sm:$0xff]
        %2167 = vrot.lane.b32.xlu0 %v2165, 1
        %v2168 = vpop.permute.xlu0 %2167
        %2169 = vrot.lane.b32.xlu0 %v2166, 1
        %v2170 = vpop.permute.xlu0 %2169
        %2171 = vrot.lane.b32.xlu0 %v2165, 127
        %v2172 = vpop.permute.xlu0 %2171
        %2173 = vrot.lane.b32.xlu0 %v2166, 127
        %v2174 = vpop.permute.xlu0 %2173
        %v2175 = vsel %vm187, %v2172, %v2168
        %v2176 = vsel %vm187, %v2174, %v2170
        %v2177 = vsel %vm188, %v2168, %v2172
        %v2178 = vsel %vm188, %v2170, %v2174
        %s2179 = sld [smem:[#allocation2 + $0xb1]]
        %v2180 = vstv %s2179
        %v2181 = vmul.f32 %v2180, %v2175
        %v2182 = vmul.f32 %v2180, %v2176
        %v2183 = vadd.f32 %v2145, %v2181
        %v2184 = vadd.f32 %v2146, %v2182
        %s2185 = sld [smem:[#allocation2 + $0xd5]]
        %v2186 = vstv %s2185
        %v2187 = vmul.f32 %v2186, %v2175
        %v2188 = vmul.f32 %v2186, %v2176
        %v2189 = vadd.f32 %v2151, %v2187
        %v2190 = vadd.f32 %v2152, %v2188
        %s2191 = sld [smem:[#allocation2 + $0xf9]]
        %v2192 = vstv %s2191
        %v2193 = vmul.f32 %v2192, %v2175
        %v2194 = vmul.f32 %v2192, %v2176
        %v2195 = vadd.f32 %v2157, %v2193
        %v2196 = vadd.f32 %v2158, %v2194
        %s2197 = sld [smem:[#allocation2 + $0x11d]]
        %v2198 = vstv %s2197
        %v2199 = vmul.f32 %v2198, %v2175
        %v2200 = vmul.f32 %v2198, %v2176
        %v2201 = vadd.f32 %v2163, %v2199
        %v2202 = vadd.f32 %v2164, %v2200
        %s2203 = sld [smem:[#allocation2 + $0xb2]]
        %v2204 = vstv %s2203
        %v2205 = vmul.f32 %v2204, %v2165
        %v2206 = vmul.f32 %v2204, %v2166
        %v2207 = vadd.f32 %v2183, %v2205
        %v2208 = vadd.f32 %v2184, %v2206
        %s2209 = sld [smem:[#allocation2 + $0xd6]]
        %v2210 = vstv %s2209
        %v2211 = vmul.f32 %v2210, %v2165
        %v2212 = vmul.f32 %v2210, %v2166
        %v2213 = vadd.f32 %v2189, %v2211
        %v2214 = vadd.f32 %v2190, %v2212
        %s2215 = sld [smem:[#allocation2 + $0xfa]]
        %v2216 = vstv %s2215
        %v2217 = vmul.f32 %v2216, %v2165
        %v2218 = vmul.f32 %v2216, %v2166
        %v2219 = vadd.f32 %v2195, %v2217
        %v2220 = vadd.f32 %v2196, %v2218
        %s2221 = sld [smem:[#allocation2 + $0x11e]]
        %v2222 = vstv %s2221
        %v2223 = vmul.f32 %v2222, %v2165
        %v2224 = vmul.f32 %v2222, %v2166
        %v2225 = vadd.f32 %v2201, %v2223
        %v2226 = vadd.f32 %v2202, %v2224
        %s2227 = sld [smem:[#allocation2 + $0xb3]]
        %v2228 = vstv %s2227
        %v2229 = vmul.f32 %v2228, %v2177
        %v2230 = vmul.f32 %v2228, %v2178
        %v2231 = vadd.f32 %v2207, %v2229
        %v2232 = vadd.f32 %v2208, %v2230
        %s2233 = sld [smem:[#allocation2 + $0xd7]]
        %v2234 = vstv %s2233
        %v2235 = vmul.f32 %v2234, %v2177
        %v2236 = vmul.f32 %v2234, %v2178
        %v2237 = vadd.f32 %v2213, %v2235
        %v2238 = vadd.f32 %v2214, %v2236
        %s2239 = sld [smem:[#allocation2 + $0xfb]]
        %v2240 = vstv %s2239
        %v2241 = vmul.f32 %v2240, %v2177
        %v2242 = vmul.f32 %v2240, %v2178
        %v2243 = vadd.f32 %v2219, %v2241
        %v2244 = vadd.f32 %v2220, %v2242
        %s2245 = sld [smem:[#allocation2 + $0x11f]]
        %v2246 = vstv %s2245
        %v2247 = vmul.f32 %v2246, %v2177
        %v2248 = vmul.f32 %v2246, %v2178
        %v2249 = vadd.f32 %v2225, %v2247
        %v2250 = vadd.f32 %v2226, %v2248
        %s2251 = scalar_lea.vmem %s174, 64 [#allocation5]
        %2252 = vst [vmem:[%s2251] sm:$0xff] %v2231
        %2253 = vst [vmem:[%s2251 + $0x8] sm:$0xff] %v2232
        %s2254 = scalar_lea.vmem %s174, 80 [#allocation5]
        %2255 = vst [vmem:[%s2254] sm:$0xff] %v2237
        %2256 = vst [vmem:[%s2254 + $0x8] sm:$0xff] %v2238
        %s2257 = scalar_lea.vmem %s174, 96 [#allocation5]
        %2258 = vst [vmem:[%s2257] sm:$0xff] %v2243
        %2259 = vst [vmem:[%s2257 + $0x8] sm:$0xff] %v2244
        %s2260 = scalar_lea.vmem %s174, 112 [#allocation5]
        %2261 = vst [vmem:[%s2260] sm:$0xff] %v2249
        %2262 = vst [vmem:[%s2260 + $0x8] sm:$0xff] %v2250
        %s2263 = sand.u32 %s88, 1
        %s2264 = scalar_lea.sflag [#allocation3], %s2263
        %s2265 = sand.u32 %s88, 1
        %s2266 = smul.addr %s2265, 128
        %s2267 = scalar_lea.vmem [#allocation5], %s2266
        // Predicated region
        $region33: #{tpu_custom_call.1} parent=27 // pred_check
          %p2268 = pneg %p98
        $region34: #{tpu_custom_call.1} parent=27 // pred_check_branch
          %2270 = sbr.rel (%p2268) target = $region36
        $region35: #{tpu_custom_call.1} parent=27 // pred_region
          %s2271 = smul.u32 2, %s22
          %2273 = vsyncadd %s2264, 0
          %s2274 = smul.addr %s21, 16
          %s2275 = sadd.s32 %s2271, %s2274
          %s2276 = smul.addr %s2275, 8
          %s2277 = scalar_lea.hbm %s2, %s2276
          %s2278 = sshll.u32 %s2267, 4
          %s2279 = int_to_ptr.vmem [resolvable:$true] %s2278
          %s2280 = sshll.u32 %s2277, 4
          %s2281 = int_to_ptr.hbm [resolvable:$true] %s2280
          %2286 = dma.vmem_to_hbm [thread:$0]  %s2279, 2048, %s2281, %s2264, 128, 128, 8
        $region36: #{tpu_custom_call.1} parent=27 // pred_fallthru
          _
      $region28: #{tpu_custom_call.1} parent=5 // pred_fallthru
        _
      %p2287 = scmp.le.s32.totalorder 2, %s12
      // Predicated region
      $region37: #{tpu_custom_call.1} parent=5 // pred_check
        %p2288 = pneg %p2287
      $region38: #{tpu_custom_call.1} parent=5 // pred_check_branch
        %2290 = sbr.rel (%p2288) target = $region40
      $region39: #{tpu_custom_call.1} parent=5 // pred_region
        %s2291 = ssub.s32 %s12, 2
        // Predicated region
        $region41: #{tpu_custom_call.1} parent=39 // pred_check
          %p2292 = pneg %p104
        $region42: #{tpu_custom_call.1} parent=39 // pred_check_branch
          %2294 = sbr.rel (%p2292) target = $region44
        $region43: #{tpu_custom_call.1} parent=39 // pred_region
          %s2295 = sand.u32 %s89, 1
          %s2296 = scalar_lea.sflag [#allocation3], %s2295
          %s2297 = sand.u32 %s89, 1
          %s2298 = smul.addr %s2297, 128
          %s2299 = scalar_lea.vmem [#allocation5], %s2298
          %2301 = dma.done %s2296, 2048
        $region44: #{tpu_custom_call.1} parent=39 // pred_fallthru
          _
      $region40: #{tpu_custom_call.1} parent=5 // pred_fallthru
        _
    $region6: #{tpu_custom_call.1} parent=1 // loop_footer
      %s16 = sadd.s32 1, %s12
    $region7: #{tpu_custom_call.1} parent=1 // loop_footer_branch
      %11 = sbr.rel target = $region3
    $region8: #{tpu_custom_call.1} parent=1 // loop_exit
      _
    %2302 = vsyncpa [#allocation3], 1
    %s2303 = scalar_lea.sflag [#allocation3], 1
    %2304 = vsyncpa %s2303, 1
    %2305 = vsyncpa [#allocation4], 1
    %s2306 = scalar_lea.sflag [#allocation4], 1
    %2307 = vsyncpa %s2306, 1

</llo_original>
